<compile_context>
chip_gen: v7x
topology: tpu7x:2x2x1
jax: 0.10.0
libtpu: 0.0.40
codegen_flags: <defaults>
</compile_context>

<pallas_src>
import functools

import jax
import jax.numpy as jnp
from jax.experimental import pallas as pl
from jax.experimental.pallas import tpu as pltpu


# ------------------------------ fused Pallas kernel ------------------------------

def _first_cell_kernel(x_ref, xp_ref, inv_ref, wc_ref, wp_ref, bs_ref,
                       dw1_5_ref, pw1_5_ref, b1_5_ref,
                       dw1_3_ref, pw1_3_ref, b1_3_ref,
                       dw2_5_ref, pw2_5_ref, b2_5_ref,
                       dw2_3_ref, pw2_3_ref, b2_3_ref,
                       o_ref, pad5_ref, pad3_ref, poolpad_ref,
                       *, H, W, C, Bblk):
    """Fused FirstCell forward for a block of Bblk batch elements.

    C = out_channels_right = 2 * out_channels_left.
    5x5 chain slab (width 2C): [comb_iter_0_left (x_right), comb_iter_1_left (x_left)]
    3x3 chain slab (width 3C): [comb_iter_0_right, comb_iter_1_right (x_left),
                                comb_iter_4_left (x_right)]
    Output lane groups (width C each): [x_left, c0, c1, c2, c3, c4].
    """
    f32 = jnp.float32
    bf16 = jnp.bfloat16
    M = Bblk * H * W

    # ---- zero ONLY the halo border strips of the pad scratch slabs; their
    # interiors are fully overwritten before every use, so re-zeroing the whole
    # slab would be pure store-slot waste.  Done every step (a few vregs) so
    # correctness does not depend on which TensorCore ran grid step 0.
    def zero_halo(ref, halo):
        wp2 = ref.shape[2]
        ch = ref.shape[3]
        ref[:, 0:halo, :, :] = jnp.zeros((Bblk, halo, wp2, ch), f32)
        ref[:, H + halo:H + 2 * halo, :, :] = jnp.zeros((Bblk, halo, wp2, ch), f32)
        ref[:, halo:H + halo, 0:halo, :] = jnp.zeros((Bblk, H, halo, ch), f32)
        ref[:, halo:H + halo, W + halo:W + 2 * halo, :] = jnp.zeros(
            (Bblk, H, halo, ch), f32)

    zero_halo(pad5_ref, 2)
    zero_halo(pad3_ref, 1)
    zero_halo(poolpad_ref, 1)

    def pointwise(hval, pw_ref, b_ref):
        # 1x1 conv (+ folded BN scale) on the MXU (bf16 in, f32 acc); bias = BN shift.
        width = hval.shape[-1]
        hb = hval.reshape(M, width).astype(bf16)
        if len(pw_ref.shape) == 3:
            # Grouped form (G, C, C): selected when the dense block-diagonal
            # weight would exceed one MXU lane tile -- skips the zero blocks
            # (5x fewer MXU FLOPs / weight bytes at large C).
            g_n = pw_ref.shape[0]
            parts = [
                jnp.dot(hb[:, g * C:(g + 1) * C], pw_ref[g],
                        preferred_element_type=f32)
                for g in range(g_n)
            ]
            y = jnp.concatenate(parts, axis=-1)
        else:
            # Dense block-diagonal (width, width): free while width <= one tile.
            y = jnp.dot(hb, pw_ref[...], preferred_element_type=f32)
        return (y + b_ref[...]).reshape(Bblk, H, W, width)

    def depthwise(xval, w_ref, pad_ref, k):
        # k x k depthwise conv, stride 1, 'same' zero padding.  Taps are sliced
        # directly off the padded VMEM ref (free static views feeding vlds) so
        # the whole padded slab is never held live in vregs.
        halo = k // 2
        pad_ref[:, halo:halo + H, halo:halo + W, :] = xval
        wv = w_ref[...]                              # (k*k, groups*C), tiny
        acc = jnp.zeros(xval.shape, f32)
        for di in range(k):
            for dj in range(k):
                t = di * k + dj
                acc = acc + pad_ref[:, di:di + H, dj:dj + W, :] * wv[t:t + 1, :]
        return acc

    # ---- stem: ReLU -> {conv_1x1 + bn | path_1/path_2 + final_path_bn}.
    # K is split (x vs. subsampled x_prev: no zero K rows); output columns are
    # replicated per consumer group [R | L | L | L | R] so the chain and pool
    # inputs come straight out of the MXU (no lane concatenation).
    xr = jnp.maximum(x_ref[...], 0.0).reshape(M, x_ref.shape[-1]).astype(bf16)
    xp = jnp.maximum(xp_ref[...], 0.0).reshape(M, xp_ref.shape[-1]).astype(bf16)
    ycat = (jnp.dot(xr, wc_ref[...], preferred_element_type=f32)
            + jnp.dot(xp, wp_ref[...], preferred_element_type=f32)
            + bs_ref[...]).reshape(Bblk, H, W, 5 * C)

    x_right = ycat[..., 0:C]
    x_left = ycat[..., C:2 * C]
    cat2 = ycat[..., 0:2 * C]         # [x_right | x_left]          : pool + 5x5 chains
    cat3 = ycat[..., 2 * C:5 * C]     # [x_left | x_left | x_right] : 3x3 chains

    # ---- five BranchSeparables chains, batched along channels, split by
    # kernel size (25-tap pass over 2C lanes, 9-tap pass over 3C lanes):
    # ReLU -> depthwise -> pointwise(+BN) -> ReLU -> depthwise -> pointwise(+BN)
    h5 = depthwise(jnp.maximum(cat2, 0.0), dw1_5_ref, pad5_ref, 5)
    h5 = pointwise(h5, pw1_5_ref, b1_5_ref)
    h5 = depthwise(jnp.maximum(h5, 0.0), dw2_5_ref, pad5_ref, 5)
    h5 = pointwise(h5, pw2_5_ref, b2_5_ref)     # [comb0_left | comb1_left]

    h3 = depthwise(jnp.maximum(cat3, 0.0), dw1_3_ref, pad3_ref, 3)
    h3 = pointwise(h3, pw1_3_ref, b1_3_ref)
    h3 = depthwise(jnp.maximum(h3, 0.0), dw2_3_ref, pad3_ref, 3)
    h3 = pointwise(h3, pw2_3_ref, b2_3_ref)     # [comb0_right | comb1_right | comb4_left]

    # ---- batched 3x3 / s1 / p1 avg-pool (count_include_pad=False) over
    # [x_right | x_left]; divisor reciprocals come in as a tiny (1,H,W,1) map
    # that lane-broadcasts for free.
    poolpad_ref[:, 1:1 + H, 1:1 + W, :] = cat2
    pacc = jnp.zeros((Bblk, H, W, 2 * C), f32)
    for di in range(3):
        for dj in range(3):
            pacc = pacc + poolpad_ref[:, di:di + H, dj:dj + W, :]
    pool = pacc * inv_ref[...]
    pool_r = pool[..., 0:C]
    pool_l = pool[..., C:2 * C]

    # ---- fused comb_iter_* adds, written as lane slices of ONE channel-last
    # (Bblk, H, W, 6C) slab (lane-dense output block, no group axis).
    o_ref[:, :, :, 0:C] = x_left
    o_ref[:, :, :, C:2 * C] = h5[..., 0:C] + h3[..., 0:C]              # comb_iter_0
    o_ref[:, :, :, 2 * C:3 * C] = h5[..., C:2 * C] + h3[..., C:2 * C]  # comb_iter_1
    o_ref[:, :, :, 3 * C:4 * C] = pool_r + x_left                      # comb_iter_2
    o_ref[:, :, :, 4 * C:5 * C] = pool_l + pool_l                      # comb_iter_3 (=2*pool_l)
    o_ref[:, :, :, 5 * C:6 * C] = h3[..., 2 * C:3 * C] + x_right       # comb_iter_4


# ------------------------------ wrapper ------------------------------

_PARAM_ORDER = ('w_conv_rep', 'w_path_rep', 'b_stem',
                'dw1_5', 'pw1_5', 'b1_5', 'dw1_3', 'pw1_3', 'b1_3',
                'dw2_5', 'pw2_5', 'b2_5', 'dw2_3', 'pw2_3', 'b2_3')


def _pool_inv_counts(H, W):
    # 3x3 / stride 1 / pad 1 avg-pool with count_include_pad=False: reciprocal
    # of the number of valid elements per window.  Only (1, H, W, 1) is kept.
    row = jnp.arange(H, dtype=jnp.int32)[:, None]
    col = jnp.arange(W, dtype=jnp.int32)[None, :]
    cnt_h = jnp.minimum(row + 1, H - 1) - jnp.maximum(row - 1, 0) + 1
    cnt_w = jnp.minimum(col + 1, W - 1) - jnp.maximum(col - 1, 0) + 1
    inv = 1.0 / (cnt_h * cnt_w).astype(jnp.float32)
    return inv[None, :, :, None]


def first_cell_forward(x_nchw, x_prev_nchw, packed, c_r_out, block_b=None):
    x = jnp.transpose(x_nchw, (0, 2, 3, 1)).astype(jnp.float32)        # NHWC
    xp = jnp.transpose(x_prev_nchw, (0, 2, 3, 1)).astype(jnp.float32)  # NHWC
    B, H, W, c_r_in = x.shape
    C = c_r_out

    # path_1 == xp[::2, ::2]; path_2 (pad + crop + stride-2 pool) == xp[1::2, 1::2].
    # ReLU commutes with pure subsampling and is applied inside the kernel, so
    # only the two small subsampled views are materialized -- x goes in
    # untouched (no host-side concat of a full stem slab through HBM).
    xp_paths = jnp.concatenate([xp[:, ::2, ::2, :], xp[:, 1::2, 1::2, :]], axis=-1)
    c_p = xp_paths.shape[-1]                                           # 2 * c_l_in

    if block_b is None:
        # Grow the matmul M (= block_b*H*W) toward the MXU row tile while
        # keeping >= 2 parallel grid steps so both v7x TensorCores have work.
        block_b = 1
        while (B % (2 * block_b) == 0 and B // (2 * block_b) >= 2
               and block_b * H * W < 256):
            block_b *= 2
    assert B % block_b == 0
    grid_b = B // block_b

    inv_cnt = _pool_inv_counts(H, W)
    w_args = [packed[k] for k in _PARAM_ORDER]

    def _const_spec(arr):
        n = arr.ndim
        return pl.BlockSpec(tuple(arr.shape), lambda b, _n=n: (0,) * _n)

    in_specs = [
        pl.BlockSpec((block_b, H, W, c_r_in), lambda b: (b, 0, 0, 0)),
        pl.BlockSpec((block_b, H, W, c_p), lambda b: (b, 0, 0, 0)),
        _const_spec(inv_cnt),
    ] + [_const_spec(a) for a in w_args]

    # Explicit VMEM budget: double-buffered in/out blocks + resident weights +
    # f32 scratch pads, 2x headroom, floor 16 MiB, cap 100 MiB (v7x has 64 MiB
    # physical; TODO(synk): at real NASNet sizes tile over spatial row blocks).
    block_bytes = 4 * block_b * H * W * (c_r_in + c_p + 6 * C)
    scratch_bytes = 4 * block_b * ((H + 4) * (W + 4) * 2 * C
                                   + (H + 2) * (W + 2) * 5 * C)
    weight_bytes = sum(int(a.size) * a.dtype.itemsize for a in w_args)
    weight_bytes += int(inv_cnt.size) * 4
    vmem_bytes = 2 * (2 * block_bytes + 2 * weight_bytes + scratch_bytes)
    vmem_bytes = int(min(max(vmem_bytes, 16 * 1024 * 1024), 100 * 1024 * 1024))

    kernel = functools.partial(_first_cell_kernel, H=H, W=W, C=C, Bblk=block_b)
    out = pl.pallas_call(
        kernel,
        out_shape=jax.ShapeDtypeStruct((B, H, W, 6 * C), jnp.float32),
        grid=(grid_b,),
        in_specs=in_specs,
        out_specs=pl.BlockSpec((block_b, H, W, 6 * C), lambda b: (b, 0, 0, 0)),
        scratch_shapes=[
            pltpu.VMEM((block_b, H + 4, W + 4, 2 * C), jnp.float32),  # 5x5 dw pad
            pltpu.VMEM((block_b, H + 2, W + 2, 3 * C), jnp.float32),  # 3x3 dw pad
            pltpu.VMEM((block_b, H + 2, W + 2, 2 * C), jnp.float32),  # avg-pool pad
        ],
        compiler_params=pltpu.CompilerParams(
            dimension_semantics=("parallel",),
            vmem_limit_bytes=vmem_bytes),
    )(x, xp_paths, inv_cnt, *w_args)

    # Lane-dense (B, H, W, 6C) -> NCHW; lane-group order [x_left, c0..c4]
    # matches torch.cat([x_left, c0, c1, c2, c3, c4], 1) of the reference.
    return jnp.transpose(out, (0, 3, 1, 2))


# ------------------------------ parameter setup ------------------------------

def _bn_params(key, c, eps=1e-3):
    k1, k2, k3, k4 = jax.random.split(key, 4)
    gamma = 1.0 + 0.1 * jax.random.normal(k1, (c,), jnp.float32)
    beta = 0.1 * jax.random.normal(k2, (c,), jnp.float32)
    mean = 0.1 * jax.random.normal(k3, (c,), jnp.float32)
    var = 1.0 + 0.1 * jax.random.uniform(k4, (c,), jnp.float32)
    scale = gamma / jnp.sqrt(var + eps)
    shift = beta - mean * scale
    return scale, shift


def _branch_sep_params(key, cin, cout, k):
    ks = jax.random.split(key, 6)
    bn1 = _bn_params(ks[2], cin)
    bn2 = _bn_params(ks[5], cout)
    return dict(
        dw1=0.1 * jax.random.normal(ks[0], (k, k, cin), jnp.float32),
        pw1=0.1 * jax.random.normal(ks[1], (cin, cin), jnp.float32),
        bn1_scale=bn1[0], bn1_shift=bn1[1],
        dw2=0.1 * jax.random.normal(ks[3], (k, k, cin), jnp.float32),
        pw2=0.1 * jax.random.normal(ks[4], (cin, cout), jnp.float32),
        bn2_scale=bn2[0], bn2_shift=bn2[1],
    )


def make_first_cell_params(key, c_l_in, c_l_out, c_r_in, c_r_out):
    ks = jax.random.split(key, 10)
    conv_bn = _bn_params(ks[1], c_r_out)
    final_bn = _bn_params(ks[4], 2 * c_l_out)
    return dict(
        conv1x1_w=0.1 * jax.random.normal(ks[0], (c_r_in, c_r_out), jnp.float32),
        conv1x1_bn_scale=conv_bn[0], conv1x1_bn_shift=conv_bn[1],
        path1_w=0.1 * jax.random.normal(ks[2], (c_l_in, c_l_out), jnp.float32),
        path2_w=0.1 * jax.random.normal(ks[3], (c_l_in, c_l_out), jnp.float32),
        final_bn_scale=final_bn[0], final_bn_shift=final_bn[1],
        comb0_left=_branch_sep_params(ks[5], c_r_out, c_r_out, 5),
        comb0_right=_branch_sep_params(ks[6], c_r_out, c_r_out, 3),
        comb1_left=_branch_sep_params(ks[7], c_r_out, c_r_out, 5),
        comb1_right=_branch_sep_params(ks[8], c_r_out, c_r_out, 3),
        comb4_left=_branch_sep_params(ks[9], c_r_out, c_r_out, 3),
    )


_CHAINS_5 = ('comb0_left', 'comb1_left')                    # 5x5; inputs [x_right, x_left]
_CHAINS_3 = ('comb0_right', 'comb1_right', 'comb4_left')    # 3x3; inputs [x_left, x_left, x_right]


def pack_first_cell_params(p, c_l_in, c_l_out, c_r_in, c_r_out, dense_pw_max=128):
    """Pack per-branch params into the fused / channel-batched kernel layout."""
    assert 2 * c_l_out == c_r_out, "NASNet FirstCell invariant"
    C = c_r_out
    f32, bf16 = jnp.float32, jnp.bfloat16

    # Stem with K split: conv_1x1 (+bn folded) reads only x; path_1/path_2
    # (+final_path_bn halves folded) read only the two subsampled x_prev views.
    w_c = p['conv1x1_w'] * p['conv1x1_bn_scale'][None, :]              # (c_r_in, C)
    b_c = p['conv1x1_bn_shift']
    w_p = jnp.zeros((2 * c_l_in, C), f32)
    w_p = w_p.at[:c_l_in, :c_l_out].set(
        p['path1_w'] * p['final_bn_scale'][None, :c_l_out])
    w_p = w_p.at[c_l_in:, c_l_out:].set(
        p['path2_w'] * p['final_bn_scale'][None, c_l_out:])
    b_p = p['final_bn_shift']

    # Output columns replicated per consumer group [R | L | L | L | R].
    zc, zp = jnp.zeros_like(w_c), jnp.zeros_like(w_p)
    w_conv_rep = jnp.concatenate([w_c, zc, zc, zc, w_c], axis=1).astype(bf16)
    w_path_rep = jnp.concatenate([zp, w_p, w_p, w_p, zp], axis=1).astype(bf16)
    b_stem = jnp.concatenate([b_c, b_p, b_p, b_p, b_c])[None, :]

    def stack_dw(keys, name, k):
        dw = jnp.concatenate([p[ck][name] for ck in keys], axis=-1)    # (k, k, G*C)
        return dw.reshape(k * k, len(keys) * C)                        # row = di*k + dj

    def pack_pw(keys, name, scale_name):
        mats = [p[ck][name] * p[ck][scale_name][None, :] for ck in keys]
        g_n = len(keys)
        if g_n * C <= dense_pw_max:
            out = jnp.zeros((g_n * C, g_n * C), f32)
            for g, m in enumerate(mats):
                out = out.at[g * C:(g + 1) * C, g * C:(g + 1) * C].set(m)
        else:
            out = jnp.stack(mats, axis=0)      # grouped (G, C, C): skip 0-blocks
        return out.astype(bf16)

    def stack_shift(keys, name):
        return jnp.concatenate([p[ck][name] for ck in keys])[None, :]

    return dict(
        w_conv_rep=w_conv_rep, w_path_rep=w_path_rep, b_stem=b_stem,
        dw1_5=stack_dw(_CHAINS_5, 'dw1', 5),
        pw1_5=pack_pw(_CHAINS_5, 'pw1', 'bn1_scale'),
        b1_5=stack_shift(_CHAINS_5, 'bn1_shift'),
        dw1_3=stack_dw(_CHAINS_3, 'dw1', 3),
        pw1_3=pack_pw(_CHAINS_3, 'pw1', 'bn1_scale'),
        b1_3=stack_shift(_CHAINS_3, 'bn1_shift'),
        dw2_5=stack_dw(_CHAINS_5, 'dw2', 5),
        pw2_5=pack_pw(_CHAINS_5, 'pw2', 'bn2_scale'),
        b2_5=stack_shift(_CHAINS_5, 'bn2_shift'),
        dw2_3=stack_dw(_CHAINS_3, 'dw2', 3),
        pw2_3=pack_pw(_CHAINS_3, 'pw2', 'bn2_scale'),
        b2_3=stack_shift(_CHAINS_3, 'bn2_shift'),
    )


# ------------------------------------ main ------------------------------------

if __name__ == "__main__":
    keys = jax.random.split(jax.random.PRNGKey(0), 6)

    # --- config 1: toy NASNet FirstCell shapes ---
    B, H, W = 2, 8, 8
    c_l_in, c_l_out = 6, 4
    c_r_in, c_r_out = 12, 8              # invariant: 2 * c_l_out == c_r_out
    x = jax.random.normal(keys[0], (B, c_r_in, H, W), jnp.float32)
    x_prev = jax.random.normal(keys[1], (B, c_l_in, 2 * H, 2 * W), jnp.float32)
    params = make_first_cell_params(keys[2], c_l_in, c_l_out, c_r_in, c_r_out)
    packed = pack_first_cell_params(params, c_l_in, c_l_out, c_r_in, c_r_out)
    fwd = jax.jit(functools.partial(first_cell_forward, c_r_out=c_r_out))
    out = fwd(x, x_prev, packed)
    jax.block_until_ready(out)
    assert out.shape == (B, 2 * c_l_out + 5 * c_r_out, H, W), out.shape
    assert bool(jnp.all(jnp.isfinite(out)))

    # --- config 2: B=4 exercises multi-image MXU-M batching (block_b=2, grid
    # length still 2 so both v7x TensorCores have work) ---
    B2, c_l_in2, c_l_out2, c_r_in2, c_r_out2 = 4, 8, 8, 24, 16
    x2 = jax.random.normal(keys[3], (B2, c_r_in2, H, W), jnp.float32)
    x_prev2 = jax.random.normal(keys[4], (B2, c_l_in2, 2 * H, 2 * W), jnp.float32)
    params2 = make_first_cell_params(keys[5], c_l_in2, c_l_out2, c_r_in2, c_r_out2)
    packed2 = pack_first_cell_params(params2, c_l_in2, c_l_out2, c_r_in2, c_r_out2)
    fwd2 = jax.jit(functools.partial(first_cell_forward, c_r_out=c_r_out2))
    out2 = fwd2(x2, x_prev2, packed2)
    jax.block_until_ready(out2)
    assert out2.shape == (B2, 2 * c_l_out2 + 5 * c_r_out2, H, W), out2.shape
    assert bool(jnp.all(jnp.isfinite(out2)))

    print("KERNEL_OK")
</pallas_src>

<mosaic_0001>
module attributes {stable_mosaic.version = 11 : i64} {
  func.func @_first_cell_kernel(%arg0: i32, %arg1: memref<1x8x8x12xf32, #tpu.memory_space<vmem>>, %arg2: memref<1x8x8x12xf32, #tpu.memory_space<vmem>>, %arg3: memref<1x8x8x1xf32, #tpu.memory_space<vmem>>, %arg4: memref<12x40xbf16, #tpu.memory_space<vmem>>, %arg5: memref<12x40xbf16, #tpu.memory_space<vmem>>, %arg6: memref<1x40xf32, #tpu.memory_space<vmem>>, %arg7: memref<25x16xf32, #tpu.memory_space<vmem>>, %arg8: memref<16x16xbf16, #tpu.memory_space<vmem>>, %arg9: memref<1x16xf32, #tpu.memory_space<vmem>>, %arg10: memref<9x24xf32, #tpu.memory_space<vmem>>, %arg11: memref<24x24xbf16, #tpu.memory_space<vmem>>, %arg12: memref<1x24xf32, #tpu.memory_space<vmem>>, %arg13: memref<25x16xf32, #tpu.memory_space<vmem>>, %arg14: memref<16x16xbf16, #tpu.memory_space<vmem>>, %arg15: memref<1x16xf32, #tpu.memory_space<vmem>>, %arg16: memref<9x24xf32, #tpu.memory_space<vmem>>, %arg17: memref<24x24xbf16, #tpu.memory_space<vmem>>, %arg18: memref<1x24xf32, #tpu.memory_space<vmem>>, %arg19: memref<1x8x8x48xf32, #tpu.memory_space<vmem>>, %arg20: memref<1x12x12x16xf32, #tpu.memory_space<vmem>>, %arg21: memref<1x10x10x24xf32, #tpu.memory_space<vmem>>, %arg22: memref<1x10x10x16xf32, #tpu.memory_space<vmem>>) attributes {dimension_semantics = [#tpu.dimension_semantics<parallel>], iteration_bounds = array<i64: 2>, scalar_prefetch = 0 : i64, scratch_operands = 3 : i64, tpu.core_type = #tpu.core_type<tc>, window_params = [{transform_indices = @transform_0, window_bounds = array<i64: 1, 8, 8, 12>}, {transform_indices = @transform_1, window_bounds = array<i64: 1, 8, 8, 12>}, {pipeline_mode = #tpu.pipeline_mode<synchronous>, transform_indices = @transform_2, window_bounds = array<i64: 1, 8, 8, 1>}, {pipeline_mode = #tpu.pipeline_mode<synchronous>, transform_indices = @transform_3, window_bounds = array<i64: 12, 40>}, {pipeline_mode = #tpu.pipeline_mode<synchronous>, transform_indices = @transform_4, window_bounds = array<i64: 12, 40>}, {pipeline_mode = #tpu.pipeline_mode<synchronous>, transform_indices = @transform_5, window_bounds = array<i64: 1, 40>}, {pipeline_mode = #tpu.pipeline_mode<synchronous>, transform_indices = @transform_6, window_bounds = array<i64: 25, 16>}, {pipeline_mode = #tpu.pipeline_mode<synchronous>, transform_indices = @transform_7, window_bounds = array<i64: 16, 16>}, {pipeline_mode = #tpu.pipeline_mode<synchronous>, transform_indices = @transform_8, window_bounds = array<i64: 1, 16>}, {pipeline_mode = #tpu.pipeline_mode<synchronous>, transform_indices = @transform_9, window_bounds = array<i64: 9, 24>}, {pipeline_mode = #tpu.pipeline_mode<synchronous>, transform_indices = @transform_10, window_bounds = array<i64: 24, 24>}, {pipeline_mode = #tpu.pipeline_mode<synchronous>, transform_indices = @transform_11, window_bounds = array<i64: 1, 24>}, {pipeline_mode = #tpu.pipeline_mode<synchronous>, transform_indices = @transform_12, window_bounds = array<i64: 25, 16>}, {pipeline_mode = #tpu.pipeline_mode<synchronous>, transform_indices = @transform_13, window_bounds = array<i64: 16, 16>}, {pipeline_mode = #tpu.pipeline_mode<synchronous>, transform_indices = @transform_14, window_bounds = array<i64: 1, 16>}, {pipeline_mode = #tpu.pipeline_mode<synchronous>, transform_indices = @transform_15, window_bounds = array<i64: 9, 24>}, {pipeline_mode = #tpu.pipeline_mode<synchronous>, transform_indices = @transform_16, window_bounds = array<i64: 24, 24>}, {pipeline_mode = #tpu.pipeline_mode<synchronous>, transform_indices = @transform_17, window_bounds = array<i64: 1, 24>}, {transform_indices = @transform_18, window_bounds = array<i64: 1, 8, 8, 48>}]} {
    %cst = arith.constant 0.000000e+00 : f32
    %0 = vector.broadcast %cst : f32 to vector<1x2x12x16xf32>
    %c0 = arith.constant 0 : index
    %c0_0 = arith.constant 0 : index
    %c0_1 = arith.constant 0 : index
    %c0_2 = arith.constant 0 : index
    %1 = vector.load %arg20[%c0, %c0_0, %c0_1, %c0_2] : memref<1x12x12x16xf32, #tpu.memory_space<vmem>>, vector<1x2x12x16xf32>
    tpu.vector_store %arg20[%c0, %c0_0, %c0_1, %c0_2], %0 {strides = array<i32>} : memref<1x12x12x16xf32, #tpu.memory_space<vmem>>, vector<1x2x12x16xf32>,
    %cst_3 = arith.constant 0.000000e+00 : f32
    %2 = vector.broadcast %cst_3 : f32 to vector<1x2x12x16xf32>
    %c0_4 = arith.constant 0 : index
    %c10 = arith.constant 10 : index
    %c0_5 = arith.constant 0 : index
    %c0_6 = arith.constant 0 : index
    %3 = vector.load %arg20[%c0_4, %c10, %c0_5, %c0_6] : memref<1x12x12x16xf32, #tpu.memory_space<vmem>>, vector<1x2x12x16xf32>
    tpu.vector_store %arg20[%c0_4, %c10, %c0_5, %c0_6], %2 {strides = array<i32>} : memref<1x12x12x16xf32, #tpu.memory_space<vmem>>, vector<1x2x12x16xf32>,
    %cst_7 = arith.constant 0.000000e+00 : f32
    %4 = vector.broadcast %cst_7 : f32 to vector<1x8x2x16xf32>
    %c0_8 = arith.constant 0 : index
    %c2 = arith.constant 2 : index
    %c0_9 = arith.constant 0 : index
    %c0_10 = arith.constant 0 : index
    %5 = vector.load %arg20[%c0_8, %c2, %c0_9, %c0_10] : memref<1x12x12x16xf32, #tpu.memory_space<vmem>>, vector<1x8x2x16xf32>
    tpu.vector_store %arg20[%c0_8, %c2, %c0_9, %c0_10], %4 {strides = array<i32>} : memref<1x12x12x16xf32, #tpu.memory_space<vmem>>, vector<1x8x2x16xf32>,
    %cst_11 = arith.constant 0.000000e+00 : f32
    %6 = vector.broadcast %cst_11 : f32 to vector<1x8x2x16xf32>
    %c0_12 = arith.constant 0 : index
    %c2_13 = arith.constant 2 : index
    %c10_14 = arith.constant 10 : index
    %c0_15 = arith.constant 0 : index
    %7 = vector.load %arg20[%c0_12, %c2_13, %c10_14, %c0_15] : memref<1x12x12x16xf32, #tpu.memory_space<vmem>>, vector<1x8x2x16xf32>
    tpu.vector_store %arg20[%c0_12, %c2_13, %c10_14, %c0_15], %6 {strides = array<i32>} : memref<1x12x12x16xf32, #tpu.memory_space<vmem>>, vector<1x8x2x16xf32>,
    %cst_16 = arith.constant 0.000000e+00 : f32
    %8 = vector.broadcast %cst_16 : f32 to vector<1x1x10x24xf32>
    %c0_17 = arith.constant 0 : index
    %c0_18 = arith.constant 0 : index
    %c0_19 = arith.constant 0 : index
    %c0_20 = arith.constant 0 : index
    %9 = vector.load %arg21[%c0_17, %c0_18, %c0_19, %c0_20] : memref<1x10x10x24xf32, #tpu.memory_space<vmem>>, vector<1x1x10x24xf32>
    tpu.vector_store %arg21[%c0_17, %c0_18, %c0_19, %c0_20], %8 {strides = array<i32>} : memref<1x10x10x24xf32, #tpu.memory_space<vmem>>, vector<1x1x10x24xf32>,
    %cst_21 = arith.constant 0.000000e+00 : f32
    %10 = vector.broadcast %cst_21 : f32 to vector<1x1x10x24xf32>
    %c0_22 = arith.constant 0 : index
    %c9 = arith.constant 9 : index
    %c0_23 = arith.constant 0 : index
    %c0_24 = arith.constant 0 : index
    %11 = vector.load %arg21[%c0_22, %c9, %c0_23, %c0_24] : memref<1x10x10x24xf32, #tpu.memory_space<vmem>>, vector<1x1x10x24xf32>
    tpu.vector_store %arg21[%c0_22, %c9, %c0_23, %c0_24], %10 {strides = array<i32>} : memref<1x10x10x24xf32, #tpu.memory_space<vmem>>, vector<1x1x10x24xf32>,
    %cst_25 = arith.constant 0.000000e+00 : f32
    %12 = vector.broadcast %cst_25 : f32 to vector<1x8x1x24xf32>
    %c0_26 = arith.constant 0 : index
    %c1 = arith.constant 1 : index
    %c0_27 = arith.constant 0 : index
    %c0_28 = arith.constant 0 : index
    %13 = vector.load %arg21[%c0_26, %c1, %c0_27, %c0_28] : memref<1x10x10x24xf32, #tpu.memory_space<vmem>>, vector<1x8x1x24xf32>
    tpu.vector_store %arg21[%c0_26, %c1, %c0_27, %c0_28], %12 {strides = array<i32>} : memref<1x10x10x24xf32, #tpu.memory_space<vmem>>, vector<1x8x1x24xf32>,
    %cst_29 = arith.constant 0.000000e+00 : f32
    %14 = vector.broadcast %cst_29 : f32 to vector<1x8x1x24xf32>
    %c0_30 = arith.constant 0 : index
    %c1_31 = arith.constant 1 : index
    %c9_32 = arith.constant 9 : index
    %c0_33 = arith.constant 0 : index
    %15 = vector.load %arg21[%c0_30, %c1_31, %c9_32, %c0_33] : memref<1x10x10x24xf32, #tpu.memory_space<vmem>>, vector<1x8x1x24xf32>
    tpu.vector_store %arg21[%c0_30, %c1_31, %c9_32, %c0_33], %14 {strides = array<i32>} : memref<1x10x10x24xf32, #tpu.memory_space<vmem>>, vector<1x8x1x24xf32>,
    %cst_34 = arith.constant 0.000000e+00 : f32
    %16 = vector.broadcast %cst_34 : f32 to vector<1x1x10x16xf32>
    %c0_35 = arith.constant 0 : index
    %c0_36 = arith.constant 0 : index
    %c0_37 = arith.constant 0 : index
    %c0_38 = arith.constant 0 : index
    %17 = vector.load %arg22[%c0_35, %c0_36, %c0_37, %c0_38] : memref<1x10x10x16xf32, #tpu.memory_space<vmem>>, vector<1x1x10x16xf32>
    tpu.vector_store %arg22[%c0_35, %c0_36, %c0_37, %c0_38], %16 {strides = array<i32>} : memref<1x10x10x16xf32, #tpu.memory_space<vmem>>, vector<1x1x10x16xf32>,
    %cst_39 = arith.constant 0.000000e+00 : f32
    %18 = vector.broadcast %cst_39 : f32 to vector<1x1x10x16xf32>
    %c0_40 = arith.constant 0 : index
    %c9_41 = arith.constant 9 : index
    %c0_42 = arith.constant 0 : index
    %c0_43 = arith.constant 0 : index
    %19 = vector.load %arg22[%c0_40, %c9_41, %c0_42, %c0_43] : memref<1x10x10x16xf32, #tpu.memory_space<vmem>>, vector<1x1x10x16xf32>
    tpu.vector_store %arg22[%c0_40, %c9_41, %c0_42, %c0_43], %18 {strides = array<i32>} : memref<1x10x10x16xf32, #tpu.memory_space<vmem>>, vector<1x1x10x16xf32>,
    %cst_44 = arith.constant 0.000000e+00 : f32
    %20 = vector.broadcast %cst_44 : f32 to vector<1x8x1x16xf32>
    %c0_45 = arith.constant 0 : index
    %c1_46 = arith.constant 1 : index
    %c0_47 = arith.constant 0 : index
    %c0_48 = arith.constant 0 : index
    %21 = vector.load %arg22[%c0_45, %c1_46, %c0_47, %c0_48] : memref<1x10x10x16xf32, #tpu.memory_space<vmem>>, vector<1x8x1x16xf32>
    tpu.vector_store %arg22[%c0_45, %c1_46, %c0_47, %c0_48], %20 {strides = array<i32>} : memref<1x10x10x16xf32, #tpu.memory_space<vmem>>, vector<1x8x1x16xf32>,
    %cst_49 = arith.constant 0.000000e+00 : f32
    %22 = vector.broadcast %cst_49 : f32 to vector<1x8x1x16xf32>
    %c0_50 = arith.constant 0 : index
    %c1_51 = arith.constant 1 : index
    %c9_52 = arith.constant 9 : index
    %c0_53 = arith.constant 0 : index
    %23 = vector.load %arg22[%c0_50, %c1_51, %c9_52, %c0_53] : memref<1x10x10x16xf32, #tpu.memory_space<vmem>>, vector<1x8x1x16xf32>
    tpu.vector_store %arg22[%c0_50, %c1_51, %c9_52, %c0_53], %22 {strides = array<i32>} : memref<1x10x10x16xf32, #tpu.memory_space<vmem>>, vector<1x8x1x16xf32>,
    %c0_54 = arith.constant 0 : index
    %c0_55 = arith.constant 0 : index
    %c0_56 = arith.constant 0 : index
    %c0_57 = arith.constant 0 : index
    %24 = vector.load %arg1[%c0_54, %c0_55, %c0_56, %c0_57] : memref<1x8x8x12xf32, #tpu.memory_space<vmem>>, vector<1x8x8x12xf32>
    %cst_58 = arith.constant 0.000000e+00 : f32
    %25 = vector.broadcast %cst_58 : f32 to vector<1x8x8x12xf32>
    %26 = arith.maximumf %24, %25 : vector<1x8x8x12xf32>
    %27 = vector.shape_cast %26 : vector<1x8x8x12xf32> to vector<64x12xf32>
    %28 = arith.truncf %27 : vector<64x12xf32> to vector<64x12xbf16>
    %c0_59 = arith.constant 0 : index
    %c0_60 = arith.constant 0 : index
    %c0_61 = arith.constant 0 : index
    %c0_62 = arith.constant 0 : index
    %29 = vector.load %arg2[%c0_59, %c0_60, %c0_61, %c0_62] : memref<1x8x8x12xf32, #tpu.memory_space<vmem>>, vector<1x8x8x12xf32>
    %cst_63 = arith.constant 0.000000e+00 : f32
    %30 = vector.broadcast %cst_63 : f32 to vector<1x8x8x12xf32>
    %31 = arith.maximumf %29, %30 : vector<1x8x8x12xf32>
    %32 = vector.shape_cast %31 : vector<1x8x8x12xf32> to vector<64x12xf32>
    %33 = arith.truncf %32 : vector<64x12xf32> to vector<64x12xbf16>
    %c0_64 = arith.constant 0 : index
    %c0_65 = arith.constant 0 : index
    %34 = vector.load %arg4[%c0_64, %c0_65] : memref<12x40xbf16, #tpu.memory_space<vmem>>, vector<12x40xbf16>
    %cst_66 = arith.constant dense<0.000000e+00> : vector<64x40xf32>
    %35 = tpu.matmul %28, %34, %cst_66 {dimension_numbers = #tpu.dot_dimension_numbers<[1], [0], [0], [1], [0, 0, 1, 1], [], []>} : vector<64x12xbf16>, vector<12x40xbf16>, vector<64x40xf32> -> vector<64x40xf32>
    %c0_67 = arith.constant 0 : index
    %c0_68 = arith.constant 0 : index
    %36 = vector.load %arg5[%c0_67, %c0_68] : memref<12x40xbf16, #tpu.memory_space<vmem>>, vector<12x40xbf16>
    %cst_69 = arith.constant dense<0.000000e+00> : vector<64x40xf32>
    %37 = tpu.matmul %33, %36, %cst_69 {dimension_numbers = #tpu.dot_dimension_numbers<[1], [0], [0], [1], [0, 0, 1, 1], [], []>} : vector<64x12xbf16>, vector<12x40xbf16>, vector<64x40xf32> -> vector<64x40xf32>
    %38 = arith.addf %35, %37 : vector<64x40xf32>
    %c0_70 = arith.constant 0 : index
    %c0_71 = arith.constant 0 : index
    %39 = vector.load %arg6[%c0_70, %c0_71] : memref<1x40xf32, #tpu.memory_space<vmem>>, vector<1x40xf32>
    %40 = vector.broadcast %39 : vector<1x40xf32> to vector<64x40xf32>
    %41 = arith.addf %38, %40 : vector<64x40xf32>
    %42 = vector.shape_cast %41 : vector<64x40xf32> to vector<1x8x8x40xf32>
    %43 = vector.extract_strided_slice %42 {offsets = [0, 0, 0, 0], sizes = [1, 8, 8, 8], strides = [1, 1, 1, 1]} : vector<1x8x8x40xf32> to vector<1x8x8x8xf32>
    %44 = vector.extract_strided_slice %42 {offsets = [0, 0, 0, 8], sizes = [1, 8, 8, 8], strides = [1, 1, 1, 1]} : vector<1x8x8x40xf32> to vector<1x8x8x8xf32>
    %45 = vector.extract_strided_slice %42 {offsets = [0, 0, 0, 0], sizes = [1, 8, 8, 16], strides = [1, 1, 1, 1]} : vector<1x8x8x40xf32> to vector<1x8x8x16xf32>
    %46 = vector.extract_strided_slice %42 {offsets = [0, 0, 0, 16], sizes = [1, 8, 8, 24], strides = [1, 1, 1, 1]} : vector<1x8x8x40xf32> to vector<1x8x8x24xf32>
    %cst_72 = arith.constant 0.000000e+00 : f32
    %47 = vector.broadcast %cst_72 : f32 to vector<1x8x8x16xf32>
    %48 = arith.maximumf %45, %47 : vector<1x8x8x16xf32>
    %c0_73 = arith.constant 0 : index
    %c2_74 = arith.constant 2 : index
    %c2_75 = arith.constant 2 : index
    %c0_76 = arith.constant 0 : index
    %49 = vector.load %arg20[%c0_73, %c2_74, %c2_75, %c0_76] : memref<1x12x12x16xf32, #tpu.memory_space<vmem>>, vector<1x8x8x16xf32>
    tpu.vector_store %arg20[%c0_73, %c2_74, %c2_75, %c0_76], %48 {strides = array<i32>} : memref<1x12x12x16xf32, #tpu.memory_space<vmem>>, vector<1x8x8x16xf32>,
    %c0_77 = arith.constant 0 : index
    %c0_78 = arith.constant 0 : index
    %50 = vector.load %arg7[%c0_77, %c0_78] : memref<25x16xf32, #tpu.memory_space<vmem>>, vector<25x16xf32>
    %cst_79 = arith.constant 0.000000e+00 : f32
    %51 = vector.broadcast %cst_79 : f32 to vector<1x8x8x16xf32>
    %c0_80 = arith.constant 0 : index
    %c0_81 = arith.constant 0 : index
    %c0_82 = arith.constant 0 : index
    %c0_83 = arith.constant 0 : index
    %52 = vector.load %arg20[%c0_80, %c0_81, %c0_82, %c0_83] : memref<1x12x12x16xf32, #tpu.memory_space<vmem>>, vector<1x8x8x16xf32>
    %53 = vector.extract_strided_slice %50 {offsets = [0, 0], sizes = [1, 16], strides = [1, 1]} : vector<25x16xf32> to vector<1x16xf32>
    %54 = vector.shape_cast %53 : vector<1x16xf32> to vector<1x1x1x16xf32>
    %55 = vector.broadcast %54 : vector<1x1x1x16xf32> to vector<1x8x8x16xf32>
    %56 = arith.mulf %52, %55 : vector<1x8x8x16xf32>
    %57 = arith.addf %51, %56 : vector<1x8x8x16xf32>
    %c0_84 = arith.constant 0 : index
    %c0_85 = arith.constant 0 : index
    %c1_86 = arith.constant 1 : index
    %c0_87 = arith.constant 0 : index
    %58 = vector.load %arg20[%c0_84, %c0_85, %c1_86, %c0_87] : memref<1x12x12x16xf32, #tpu.memory_space<vmem>>, vector<1x8x8x16xf32>
    %59 = vector.extract_strided_slice %50 {offsets = [1, 0], sizes = [1, 16], strides = [1, 1]} : vector<25x16xf32> to vector<1x16xf32>
    %60 = vector.shape_cast %59 : vector<1x16xf32> to vector<1x1x1x16xf32>
    %61 = vector.broadcast %60 : vector<1x1x1x16xf32> to vector<1x8x8x16xf32>
    %62 = arith.mulf %58, %61 : vector<1x8x8x16xf32>
    %63 = arith.addf %57, %62 : vector<1x8x8x16xf32>
    %c0_88 = arith.constant 0 : index
    %c0_89 = arith.constant 0 : index
    %c2_90 = arith.constant 2 : index
    %c0_91 = arith.constant 0 : index
    %64 = vector.load %arg20[%c0_88, %c0_89, %c2_90, %c0_91] : memref<1x12x12x16xf32, #tpu.memory_space<vmem>>, vector<1x8x8x16xf32>
    %65 = vector.extract_strided_slice %50 {offsets = [2, 0], sizes = [1, 16], strides = [1, 1]} : vector<25x16xf32> to vector<1x16xf32>
    %66 = vector.shape_cast %65 : vector<1x16xf32> to vector<1x1x1x16xf32>
    %67 = vector.broadcast %66 : vector<1x1x1x16xf32> to vector<1x8x8x16xf32>
    %68 = arith.mulf %64, %67 : vector<1x8x8x16xf32>
    %69 = arith.addf %63, %68 : vector<1x8x8x16xf32>
    %c0_92 = arith.constant 0 : index
    %c0_93 = arith.constant 0 : index
    %c3 = arith.constant 3 : index
    %c0_94 = arith.constant 0 : index
    %70 = vector.load %arg20[%c0_92, %c0_93, %c3, %c0_94] : memref<1x12x12x16xf32, #tpu.memory_space<vmem>>, vector<1x8x8x16xf32>
    %71 = vector.extract_strided_slice %50 {offsets = [3, 0], sizes = [1, 16], strides = [1, 1]} : vector<25x16xf32> to vector<1x16xf32>
    %72 = vector.shape_cast %71 : vector<1x16xf32> to vector<1x1x1x16xf32>
    %73 = vector.broadcast %72 : vector<1x1x1x16xf32> to vector<1x8x8x16xf32>
    %74 = arith.mulf %70, %73 : vector<1x8x8x16xf32>
    %75 = arith.addf %69, %74 : vector<1x8x8x16xf32>
    %c0_95 = arith.constant 0 : index
    %c0_96 = arith.constant 0 : index
    %c4 = arith.constant 4 : index
    %c0_97 = arith.constant 0 : index
    %76 = vector.load %arg20[%c0_95, %c0_96, %c4, %c0_97] : memref<1x12x12x16xf32, #tpu.memory_space<vmem>>, vector<1x8x8x16xf32>
    %77 = vector.extract_strided_slice %50 {offsets = [4, 0], sizes = [1, 16], strides = [1, 1]} : vector<25x16xf32> to vector<1x16xf32>
    %78 = vector.shape_cast %77 : vector<1x16xf32> to vector<1x1x1x16xf32>
    %79 = vector.broadcast %78 : vector<1x1x1x16xf32> to vector<1x8x8x16xf32>
    %80 = arith.mulf %76, %79 : vector<1x8x8x16xf32>
    %81 = arith.addf %75, %80 : vector<1x8x8x16xf32>
    %c0_98 = arith.constant 0 : index
    %c1_99 = arith.constant 1 : index
    %c0_100 = arith.constant 0 : index
    %c0_101 = arith.constant 0 : index
    %82 = vector.load %arg20[%c0_98, %c1_99, %c0_100, %c0_101] : memref<1x12x12x16xf32, #tpu.memory_space<vmem>>, vector<1x8x8x16xf32>
    %83 = vector.extract_strided_slice %50 {offsets = [5, 0], sizes = [1, 16], strides = [1, 1]} : vector<25x16xf32> to vector<1x16xf32>
    %84 = vector.shape_cast %83 : vector<1x16xf32> to vector<1x1x1x16xf32>
    %85 = vector.broadcast %84 : vector<1x1x1x16xf32> to vector<1x8x8x16xf32>
    %86 = arith.mulf %82, %85 : vector<1x8x8x16xf32>
    %87 = arith.addf %81, %86 : vector<1x8x8x16xf32>
    %c0_102 = arith.constant 0 : index
    %c1_103 = arith.constant 1 : index
    %c1_104 = arith.constant 1 : index
    %c0_105 = arith.constant 0 : index
    %88 = vector.load %arg20[%c0_102, %c1_103, %c1_104, %c0_105] : memref<1x12x12x16xf32, #tpu.memory_space<vmem>>, vector<1x8x8x16xf32>
    %89 = vector.extract_strided_slice %50 {offsets = [6, 0], sizes = [1, 16], strides = [1, 1]} : vector<25x16xf32> to vector<1x16xf32>
    %90 = vector.shape_cast %89 : vector<1x16xf32> to vector<1x1x1x16xf32>
    %91 = vector.broadcast %90 : vector<1x1x1x16xf32> to vector<1x8x8x16xf32>
    %92 = arith.mulf %88, %91 : vector<1x8x8x16xf32>
    %93 = arith.addf %87, %92 : vector<1x8x8x16xf32>
    %c0_106 = arith.constant 0 : index
    %c1_107 = arith.constant 1 : index
    %c2_108 = arith.constant 2 : index
    %c0_109 = arith.constant 0 : index
    %94 = vector.load %arg20[%c0_106, %c1_107, %c2_108, %c0_109] : memref<1x12x12x16xf32, #tpu.memory_space<vmem>>, vector<1x8x8x16xf32>
    %95 = vector.extract_strided_slice %50 {offsets = [7, 0], sizes = [1, 16], strides = [1, 1]} : vector<25x16xf32> to vector<1x16xf32>
    %96 = vector.shape_cast %95 : vector<1x16xf32> to vector<1x1x1x16xf32>
    %97 = vector.broadcast %96 : vector<1x1x1x16xf32> to vector<1x8x8x16xf32>
    %98 = arith.mulf %94, %97 : vector<1x8x8x16xf32>
    %99 = arith.addf %93, %98 : vector<1x8x8x16xf32>
    %c0_110 = arith.constant 0 : index
    %c1_111 = arith.constant 1 : index
    %c3_112 = arith.constant 3 : index
    %c0_113 = arith.constant 0 : index
    %100 = vector.load %arg20[%c0_110, %c1_111, %c3_112, %c0_113] : memref<1x12x12x16xf32, #tpu.memory_space<vmem>>, vector<1x8x8x16xf32>
    %101 = vector.extract_strided_slice %50 {offsets = [8, 0], sizes = [1, 16], strides = [1, 1]} : vector<25x16xf32> to vector<1x16xf32>
    %102 = vector.shape_cast %101 : vector<1x16xf32> to vector<1x1x1x16xf32>
    %103 = vector.broadcast %102 : vector<1x1x1x16xf32> to vector<1x8x8x16xf32>
    %104 = arith.mulf %100, %103 : vector<1x8x8x16xf32>
    %105 = arith.addf %99, %104 : vector<1x8x8x16xf32>
    %c0_114 = arith.constant 0 : index
    %c1_115 = arith.constant 1 : index
    %c4_116 = arith.constant 4 : index
    %c0_117 = arith.constant 0 : index
    %106 = vector.load %arg20[%c0_114, %c1_115, %c4_116, %c0_117] : memref<1x12x12x16xf32, #tpu.memory_space<vmem>>, vector<1x8x8x16xf32>
    %107 = vector.extract_strided_slice %50 {offsets = [9, 0], sizes = [1, 16], strides = [1, 1]} : vector<25x16xf32> to vector<1x16xf32>
    %108 = vector.shape_cast %107 : vector<1x16xf32> to vector<1x1x1x16xf32>
    %109 = vector.broadcast %108 : vector<1x1x1x16xf32> to vector<1x8x8x16xf32>
    %110 = arith.mulf %106, %109 : vector<1x8x8x16xf32>
    %111 = arith.addf %105, %110 : vector<1x8x8x16xf32>
    %c0_118 = arith.constant 0 : index
    %c2_119 = arith.constant 2 : index
    %c0_120 = arith.constant 0 : index
    %c0_121 = arith.constant 0 : index
    %112 = vector.load %arg20[%c0_118, %c2_119, %c0_120, %c0_121] : memref<1x12x12x16xf32, #tpu.memory_space<vmem>>, vector<1x8x8x16xf32>
    %113 = vector.extract_strided_slice %50 {offsets = [10, 0], sizes = [1, 16], strides = [1, 1]} : vector<25x16xf32> to vector<1x16xf32>
    %114 = vector.shape_cast %113 : vector<1x16xf32> to vector<1x1x1x16xf32>
    %115 = vector.broadcast %114 : vector<1x1x1x16xf32> to vector<1x8x8x16xf32>
    %116 = arith.mulf %112, %115 : vector<1x8x8x16xf32>
    %117 = arith.addf %111, %116 : vector<1x8x8x16xf32>
    %c0_122 = arith.constant 0 : index
    %c2_123 = arith.constant 2 : index
    %c1_124 = arith.constant 1 : index
    %c0_125 = arith.constant 0 : index
    %118 = vector.load %arg20[%c0_122, %c2_123, %c1_124, %c0_125] : memref<1x12x12x16xf32, #tpu.memory_space<vmem>>, vector<1x8x8x16xf32>
    %119 = vector.extract_strided_slice %50 {offsets = [11, 0], sizes = [1, 16], strides = [1, 1]} : vector<25x16xf32> to vector<1x16xf32>
    %120 = vector.shape_cast %119 : vector<1x16xf32> to vector<1x1x1x16xf32>
    %121 = vector.broadcast %120 : vector<1x1x1x16xf32> to vector<1x8x8x16xf32>
    %122 = arith.mulf %118, %121 : vector<1x8x8x16xf32>
    %123 = arith.addf %117, %122 : vector<1x8x8x16xf32>
    %c0_126 = arith.constant 0 : index
    %c2_127 = arith.constant 2 : index
    %c2_128 = arith.constant 2 : index
    %c0_129 = arith.constant 0 : index
    %124 = vector.load %arg20[%c0_126, %c2_127, %c2_128, %c0_129] : memref<1x12x12x16xf32, #tpu.memory_space<vmem>>, vector<1x8x8x16xf32>
    %125 = vector.extract_strided_slice %50 {offsets = [12, 0], sizes = [1, 16], strides = [1, 1]} : vector<25x16xf32> to vector<1x16xf32>
    %126 = vector.shape_cast %125 : vector<1x16xf32> to vector<1x1x1x16xf32>
    %127 = vector.broadcast %126 : vector<1x1x1x16xf32> to vector<1x8x8x16xf32>
    %128 = arith.mulf %124, %127 : vector<1x8x8x16xf32>
    %129 = arith.addf %123, %128 : vector<1x8x8x16xf32>
    %c0_130 = arith.constant 0 : index
    %c2_131 = arith.constant 2 : index
    %c3_132 = arith.constant 3 : index
    %c0_133 = arith.constant 0 : index
    %130 = vector.load %arg20[%c0_130, %c2_131, %c3_132, %c0_133] : memref<1x12x12x16xf32, #tpu.memory_space<vmem>>, vector<1x8x8x16xf32>
    %131 = vector.extract_strided_slice %50 {offsets = [13, 0], sizes = [1, 16], strides = [1, 1]} : vector<25x16xf32> to vector<1x16xf32>
    %132 = vector.shape_cast %131 : vector<1x16xf32> to vector<1x1x1x16xf32>
    %133 = vector.broadcast %132 : vector<1x1x1x16xf32> to vector<1x8x8x16xf32>
    %134 = arith.mulf %130, %133 : vector<1x8x8x16xf32>
    %135 = arith.addf %129, %134 : vector<1x8x8x16xf32>
    %c0_134 = arith.constant 0 : index
    %c2_135 = arith.constant 2 : index
    %c4_136 = arith.constant 4 : index
    %c0_137 = arith.constant 0 : index
    %136 = vector.load %arg20[%c0_134, %c2_135, %c4_136, %c0_137] : memref<1x12x12x16xf32, #tpu.memory_space<vmem>>, vector<1x8x8x16xf32>
    %137 = vector.extract_strided_slice %50 {offsets = [14, 0], sizes = [1, 16], strides = [1, 1]} : vector<25x16xf32> to vector<1x16xf32>
    %138 = vector.shape_cast %137 : vector<1x16xf32> to vector<1x1x1x16xf32>
    %139 = vector.broadcast %138 : vector<1x1x1x16xf32> to vector<1x8x8x16xf32>
    %140 = arith.mulf %136, %139 : vector<1x8x8x16xf32>
    %141 = arith.addf %135, %140 : vector<1x8x8x16xf32>
    %c0_138 = arith.constant 0 : index
    %c3_139 = arith.constant 3 : index
    %c0_140 = arith.constant 0 : index
    %c0_141 = arith.constant 0 : index
    %142 = vector.load %arg20[%c0_138, %c3_139, %c0_140, %c0_141] : memref<1x12x12x16xf32, #tpu.memory_space<vmem>>, vector<1x8x8x16xf32>
    %143 = vector.extract_strided_slice %50 {offsets = [15, 0], sizes = [1, 16], strides = [1, 1]} : vector<25x16xf32> to vector<1x16xf32>
    %144 = vector.shape_cast %143 : vector<1x16xf32> to vector<1x1x1x16xf32>
    %145 = vector.broadcast %144 : vector<1x1x1x16xf32> to vector<1x8x8x16xf32>
    %146 = arith.mulf %142, %145 : vector<1x8x8x16xf32>
    %147 = arith.addf %141, %146 : vector<1x8x8x16xf32>
    %c0_142 = arith.constant 0 : index
    %c3_143 = arith.constant 3 : index
    %c1_144 = arith.constant 1 : index
    %c0_145 = arith.constant 0 : index
    %148 = vector.load %arg20[%c0_142, %c3_143, %c1_144, %c0_145] : memref<1x12x12x16xf32, #tpu.memory_space<vmem>>, vector<1x8x8x16xf32>
    %149 = vector.extract_strided_slice %50 {offsets = [16, 0], sizes = [1, 16], strides = [1, 1]} : vector<25x16xf32> to vector<1x16xf32>
    %150 = vector.shape_cast %149 : vector<1x16xf32> to vector<1x1x1x16xf32>
    %151 = vector.broadcast %150 : vector<1x1x1x16xf32> to vector<1x8x8x16xf32>
    %152 = arith.mulf %148, %151 : vector<1x8x8x16xf32>
    %153 = arith.addf %147, %152 : vector<1x8x8x16xf32>
    %c0_146 = arith.constant 0 : index
    %c3_147 = arith.constant 3 : index
    %c2_148 = arith.constant 2 : index
    %c0_149 = arith.constant 0 : index
    %154 = vector.load %arg20[%c0_146, %c3_147, %c2_148, %c0_149] : memref<1x12x12x16xf32, #tpu.memory_space<vmem>>, vector<1x8x8x16xf32>
    %155 = vector.extract_strided_slice %50 {offsets = [17, 0], sizes = [1, 16], strides = [1, 1]} : vector<25x16xf32> to vector<1x16xf32>
    %156 = vector.shape_cast %155 : vector<1x16xf32> to vector<1x1x1x16xf32>
    %157 = vector.broadcast %156 : vector<1x1x1x16xf32> to vector<1x8x8x16xf32>
    %158 = arith.mulf %154, %157 : vector<1x8x8x16xf32>
    %159 = arith.addf %153, %158 : vector<1x8x8x16xf32>
    %c0_150 = arith.constant 0 : index
    %c3_151 = arith.constant 3 : index
    %c3_152 = arith.constant 3 : index
    %c0_153 = arith.constant 0 : index
    %160 = vector.load %arg20[%c0_150, %c3_151, %c3_152, %c0_153] : memref<1x12x12x16xf32, #tpu.memory_space<vmem>>, vector<1x8x8x16xf32>
    %161 = vector.extract_strided_slice %50 {offsets = [18, 0], sizes = [1, 16], strides = [1, 1]} : vector<25x16xf32> to vector<1x16xf32>
    %162 = vector.shape_cast %161 : vector<1x16xf32> to vector<1x1x1x16xf32>
    %163 = vector.broadcast %162 : vector<1x1x1x16xf32> to vector<1x8x8x16xf32>
    %164 = arith.mulf %160, %163 : vector<1x8x8x16xf32>
    %165 = arith.addf %159, %164 : vector<1x8x8x16xf32>
    %c0_154 = arith.constant 0 : index
    %c3_155 = arith.constant 3 : index
    %c4_156 = arith.constant 4 : index
    %c0_157 = arith.constant 0 : index
    %166 = vector.load %arg20[%c0_154, %c3_155, %c4_156, %c0_157] : memref<1x12x12x16xf32, #tpu.memory_space<vmem>>, vector<1x8x8x16xf32>
    %167 = vector.extract_strided_slice %50 {offsets = [19, 0], sizes = [1, 16], strides = [1, 1]} : vector<25x16xf32> to vector<1x16xf32>
    %168 = vector.shape_cast %167 : vector<1x16xf32> to vector<1x1x1x16xf32>
    %169 = vector.broadcast %168 : vector<1x1x1x16xf32> to vector<1x8x8x16xf32>
    %170 = arith.mulf %166, %169 : vector<1x8x8x16xf32>
    %171 = arith.addf %165, %170 : vector<1x8x8x16xf32>
    %c0_158 = arith.constant 0 : index
    %c4_159 = arith.constant 4 : index
    %c0_160 = arith.constant 0 : index
    %c0_161 = arith.constant 0 : index
    %172 = vector.load %arg20[%c0_158, %c4_159, %c0_160, %c0_161] : memref<1x12x12x16xf32, #tpu.memory_space<vmem>>, vector<1x8x8x16xf32>
    %173 = vector.extract_strided_slice %50 {offsets = [20, 0], sizes = [1, 16], strides = [1, 1]} : vector<25x16xf32> to vector<1x16xf32>
    %174 = vector.shape_cast %173 : vector<1x16xf32> to vector<1x1x1x16xf32>
    %175 = vector.broadcast %174 : vector<1x1x1x16xf32> to vector<1x8x8x16xf32>
    %176 = arith.mulf %172, %175 : vector<1x8x8x16xf32>
    %177 = arith.addf %171, %176 : vector<1x8x8x16xf32>
    %c0_162 = arith.constant 0 : index
    %c4_163 = arith.constant 4 : index
    %c1_164 = arith.constant 1 : index
    %c0_165 = arith.constant 0 : index
    %178 = vector.load %arg20[%c0_162, %c4_163, %c1_164, %c0_165] : memref<1x12x12x16xf32, #tpu.memory_space<vmem>>, vector<1x8x8x16xf32>
    %179 = vector.extract_strided_slice %50 {offsets = [21, 0], sizes = [1, 16], strides = [1, 1]} : vector<25x16xf32> to vector<1x16xf32>
    %180 = vector.shape_cast %179 : vector<1x16xf32> to vector<1x1x1x16xf32>
    %181 = vector.broadcast %180 : vector<1x1x1x16xf32> to vector<1x8x8x16xf32>
    %182 = arith.mulf %178, %181 : vector<1x8x8x16xf32>
    %183 = arith.addf %177, %182 : vector<1x8x8x16xf32>
    %c0_166 = arith.constant 0 : index
    %c4_167 = arith.constant 4 : index
    %c2_168 = arith.constant 2 : index
    %c0_169 = arith.constant 0 : index
    %184 = vector.load %arg20[%c0_166, %c4_167, %c2_168, %c0_169] : memref<1x12x12x16xf32, #tpu.memory_space<vmem>>, vector<1x8x8x16xf32>
    %185 = vector.extract_strided_slice %50 {offsets = [22, 0], sizes = [1, 16], strides = [1, 1]} : vector<25x16xf32> to vector<1x16xf32>
    %186 = vector.shape_cast %185 : vector<1x16xf32> to vector<1x1x1x16xf32>
    %187 = vector.broadcast %186 : vector<1x1x1x16xf32> to vector<1x8x8x16xf32>
    %188 = arith.mulf %184, %187 : vector<1x8x8x16xf32>
    %189 = arith.addf %183, %188 : vector<1x8x8x16xf32>
    %c0_170 = arith.constant 0 : index
    %c4_171 = arith.constant 4 : index
    %c3_172 = arith.constant 3 : index
    %c0_173 = arith.constant 0 : index
    %190 = vector.load %arg20[%c0_170, %c4_171, %c3_172, %c0_173] : memref<1x12x12x16xf32, #tpu.memory_space<vmem>>, vector<1x8x8x16xf32>
    %191 = vector.extract_strided_slice %50 {offsets = [23, 0], sizes = [1, 16], strides = [1, 1]} : vector<25x16xf32> to vector<1x16xf32>
    %192 = vector.shape_cast %191 : vector<1x16xf32> to vector<1x1x1x16xf32>
    %193 = vector.broadcast %192 : vector<1x1x1x16xf32> to vector<1x8x8x16xf32>
    %194 = arith.mulf %190, %193 : vector<1x8x8x16xf32>
    %195 = arith.addf %189, %194 : vector<1x8x8x16xf32>
    %c0_174 = arith.constant 0 : index
    %c4_175 = arith.constant 4 : index
    %c4_176 = arith.constant 4 : index
    %c0_177 = arith.constant 0 : index
    %196 = vector.load %arg20[%c0_174, %c4_175, %c4_176, %c0_177] : memref<1x12x12x16xf32, #tpu.memory_space<vmem>>, vector<1x8x8x16xf32>
    %197 = vector.extract_strided_slice %50 {offsets = [24, 0], sizes = [1, 16], strides = [1, 1]} : vector<25x16xf32> to vector<1x16xf32>
    %198 = vector.shape_cast %197 : vector<1x16xf32> to vector<1x1x1x16xf32>
    %199 = vector.broadcast %198 : vector<1x1x1x16xf32> to vector<1x8x8x16xf32>
    %200 = arith.mulf %196, %199 : vector<1x8x8x16xf32>
    %201 = arith.addf %195, %200 : vector<1x8x8x16xf32>
    %202 = vector.shape_cast %201 : vector<1x8x8x16xf32> to vector<64x16xf32>
    %203 = arith.truncf %202 : vector<64x16xf32> to vector<64x16xbf16>
    %c0_178 = arith.constant 0 : index
    %c0_179 = arith.constant 0 : index
    %204 = vector.load %arg8[%c0_178, %c0_179] : memref<16x16xbf16, #tpu.memory_space<vmem>>, vector<16x16xbf16>
    %cst_180 = arith.constant dense<0.000000e+00> : vector<64x16xf32>
    %205 = tpu.matmul %203, %204, %cst_180 {dimension_numbers = #tpu.dot_dimension_numbers<[1], [0], [0], [1], [0, 0, 1, 1], [], []>} : vector<64x16xbf16>, vector<16x16xbf16>, vector<64x16xf32> -> vector<64x16xf32>
    %c0_181 = arith.constant 0 : index
    %c0_182 = arith.constant 0 : index
    %206 = vector.load %arg9[%c0_181, %c0_182] : memref<1x16xf32, #tpu.memory_space<vmem>>, vector<1x16xf32>
    %207 = vector.broadcast %206 : vector<1x16xf32> to vector<64x16xf32>
    %208 = arith.addf %205, %207 : vector<64x16xf32>
    %209 = vector.shape_cast %208 : vector<64x16xf32> to vector<1x8x8x16xf32>
    %cst_183 = arith.constant 0.000000e+00 : f32
    %210 = vector.broadcast %cst_183 : f32 to vector<1x8x8x16xf32>
    %211 = arith.maximumf %209, %210 : vector<1x8x8x16xf32>
    %c0_184 = arith.constant 0 : index
    %c2_185 = arith.constant 2 : index
    %c2_186 = arith.constant 2 : index
    %c0_187 = arith.constant 0 : index
    %212 = vector.load %arg20[%c0_184, %c2_185, %c2_186, %c0_187] : memref<1x12x12x16xf32, #tpu.memory_space<vmem>>, vector<1x8x8x16xf32>
    tpu.vector_store %arg20[%c0_184, %c2_185, %c2_186, %c0_187], %211 {strides = array<i32>} : memref<1x12x12x16xf32, #tpu.memory_space<vmem>>, vector<1x8x8x16xf32>,
    %c0_188 = arith.constant 0 : index
    %c0_189 = arith.constant 0 : index
    %213 = vector.load %arg13[%c0_188, %c0_189] : memref<25x16xf32, #tpu.memory_space<vmem>>, vector<25x16xf32>
    %cst_190 = arith.constant 0.000000e+00 : f32
    %214 = vector.broadcast %cst_190 : f32 to vector<1x8x8x16xf32>
    %c0_191 = arith.constant 0 : index
    %c0_192 = arith.constant 0 : index
    %c0_193 = arith.constant 0 : index
    %c0_194 = arith.constant 0 : index
    %215 = vector.load %arg20[%c0_191, %c0_192, %c0_193, %c0_194] : memref<1x12x12x16xf32, #tpu.memory_space<vmem>>, vector<1x8x8x16xf32>
    %216 = vector.extract_strided_slice %213 {offsets = [0, 0], sizes = [1, 16], strides = [1, 1]} : vector<25x16xf32> to vector<1x16xf32>
    %217 = vector.shape_cast %216 : vector<1x16xf32> to vector<1x1x1x16xf32>
    %218 = vector.broadcast %217 : vector<1x1x1x16xf32> to vector<1x8x8x16xf32>
    %219 = arith.mulf %215, %218 : vector<1x8x8x16xf32>
    %220 = arith.addf %214, %219 : vector<1x8x8x16xf32>
    %c0_195 = arith.constant 0 : index
    %c0_196 = arith.constant 0 : index
    %c1_197 = arith.constant 1 : index
    %c0_198 = arith.constant 0 : index
    %221 = vector.load %arg20[%c0_195, %c0_196, %c1_197, %c0_198] : memref<1x12x12x16xf32, #tpu.memory_space<vmem>>, vector<1x8x8x16xf32>
    %222 = vector.extract_strided_slice %213 {offsets = [1, 0], sizes = [1, 16], strides = [1, 1]} : vector<25x16xf32> to vector<1x16xf32>
    %223 = vector.shape_cast %222 : vector<1x16xf32> to vector<1x1x1x16xf32>
    %224 = vector.broadcast %223 : vector<1x1x1x16xf32> to vector<1x8x8x16xf32>
    %225 = arith.mulf %221, %224 : vector<1x8x8x16xf32>
    %226 = arith.addf %220, %225 : vector<1x8x8x16xf32>
    %c0_199 = arith.constant 0 : index
    %c0_200 = arith.constant 0 : index
    %c2_201 = arith.constant 2 : index
    %c0_202 = arith.constant 0 : index
    %227 = vector.load %arg20[%c0_199, %c0_200, %c2_201, %c0_202] : memref<1x12x12x16xf32, #tpu.memory_space<vmem>>, vector<1x8x8x16xf32>
    %228 = vector.extract_strided_slice %213 {offsets = [2, 0], sizes = [1, 16], strides = [1, 1]} : vector<25x16xf32> to vector<1x16xf32>
    %229 = vector.shape_cast %228 : vector<1x16xf32> to vector<1x1x1x16xf32>
    %230 = vector.broadcast %229 : vector<1x1x1x16xf32> to vector<1x8x8x16xf32>
    %231 = arith.mulf %227, %230 : vector<1x8x8x16xf32>
    %232 = arith.addf %226, %231 : vector<1x8x8x16xf32>
    %c0_203 = arith.constant 0 : index
    %c0_204 = arith.constant 0 : index
    %c3_205 = arith.constant 3 : index
    %c0_206 = arith.constant 0 : index
    %233 = vector.load %arg20[%c0_203, %c0_204, %c3_205, %c0_206] : memref<1x12x12x16xf32, #tpu.memory_space<vmem>>, vector<1x8x8x16xf32>
    %234 = vector.extract_strided_slice %213 {offsets = [3, 0], sizes = [1, 16], strides = [1, 1]} : vector<25x16xf32> to vector<1x16xf32>
    %235 = vector.shape_cast %234 : vector<1x16xf32> to vector<1x1x1x16xf32>
    %236 = vector.broadcast %235 : vector<1x1x1x16xf32> to vector<1x8x8x16xf32>
    %237 = arith.mulf %233, %236 : vector<1x8x8x16xf32>
    %238 = arith.addf %232, %237 : vector<1x8x8x16xf32>
    %c0_207 = arith.constant 0 : index
    %c0_208 = arith.constant 0 : index
    %c4_209 = arith.constant 4 : index
    %c0_210 = arith.constant 0 : index
    %239 = vector.load %arg20[%c0_207, %c0_208, %c4_209, %c0_210] : memref<1x12x12x16xf32, #tpu.memory_space<vmem>>, vector<1x8x8x16xf32>
    %240 = vector.extract_strided_slice %213 {offsets = [4, 0], sizes = [1, 16], strides = [1, 1]} : vector<25x16xf32> to vector<1x16xf32>
    %241 = vector.shape_cast %240 : vector<1x16xf32> to vector<1x1x1x16xf32>
    %242 = vector.broadcast %241 : vector<1x1x1x16xf32> to vector<1x8x8x16xf32>
    %243 = arith.mulf %239, %242 : vector<1x8x8x16xf32>
    %244 = arith.addf %238, %243 : vector<1x8x8x16xf32>
    %c0_211 = arith.constant 0 : index
    %c1_212 = arith.constant 1 : index
    %c0_213 = arith.constant 0 : index
    %c0_214 = arith.constant 0 : index
    %245 = vector.load %arg20[%c0_211, %c1_212, %c0_213, %c0_214] : memref<1x12x12x16xf32, #tpu.memory_space<vmem>>, vector<1x8x8x16xf32>
    %246 = vector.extract_strided_slice %213 {offsets = [5, 0], sizes = [1, 16], strides = [1, 1]} : vector<25x16xf32> to vector<1x16xf32>
    %247 = vector.shape_cast %246 : vector<1x16xf32> to vector<1x1x1x16xf32>
    %248 = vector.broadcast %247 : vector<1x1x1x16xf32> to vector<1x8x8x16xf32>
    %249 = arith.mulf %245, %248 : vector<1x8x8x16xf32>
    %250 = arith.addf %244, %249 : vector<1x8x8x16xf32>
    %c0_215 = arith.constant 0 : index
    %c1_216 = arith.constant 1 : index
    %c1_217 = arith.constant 1 : index
    %c0_218 = arith.constant 0 : index
    %251 = vector.load %arg20[%c0_215, %c1_216, %c1_217, %c0_218] : memref<1x12x12x16xf32, #tpu.memory_space<vmem>>, vector<1x8x8x16xf32>
    %252 = vector.extract_strided_slice %213 {offsets = [6, 0], sizes = [1, 16], strides = [1, 1]} : vector<25x16xf32> to vector<1x16xf32>
    %253 = vector.shape_cast %252 : vector<1x16xf32> to vector<1x1x1x16xf32>
    %254 = vector.broadcast %253 : vector<1x1x1x16xf32> to vector<1x8x8x16xf32>
    %255 = arith.mulf %251, %254 : vector<1x8x8x16xf32>
    %256 = arith.addf %250, %255 : vector<1x8x8x16xf32>
    %c0_219 = arith.constant 0 : index
    %c1_220 = arith.constant 1 : index
    %c2_221 = arith.constant 2 : index
    %c0_222 = arith.constant 0 : index
    %257 = vector.load %arg20[%c0_219, %c1_220, %c2_221, %c0_222] : memref<1x12x12x16xf32, #tpu.memory_space<vmem>>, vector<1x8x8x16xf32>
    %258 = vector.extract_strided_slice %213 {offsets = [7, 0], sizes = [1, 16], strides = [1, 1]} : vector<25x16xf32> to vector<1x16xf32>
    %259 = vector.shape_cast %258 : vector<1x16xf32> to vector<1x1x1x16xf32>
    %260 = vector.broadcast %259 : vector<1x1x1x16xf32> to vector<1x8x8x16xf32>
    %261 = arith.mulf %257, %260 : vector<1x8x8x16xf32>
    %262 = arith.addf %256, %261 : vector<1x8x8x16xf32>
    %c0_223 = arith.constant 0 : index
    %c1_224 = arith.constant 1 : index
    %c3_225 = arith.constant 3 : index
    %c0_226 = arith.constant 0 : index
    %263 = vector.load %arg20[%c0_223, %c1_224, %c3_225, %c0_226] : memref<1x12x12x16xf32, #tpu.memory_space<vmem>>, vector<1x8x8x16xf32>
    %264 = vector.extract_strided_slice %213 {offsets = [8, 0], sizes = [1, 16], strides = [1, 1]} : vector<25x16xf32> to vector<1x16xf32>
    %265 = vector.shape_cast %264 : vector<1x16xf32> to vector<1x1x1x16xf32>
    %266 = vector.broadcast %265 : vector<1x1x1x16xf32> to vector<1x8x8x16xf32>
    %267 = arith.mulf %263, %266 : vector<1x8x8x16xf32>
    %268 = arith.addf %262, %267 : vector<1x8x8x16xf32>
    %c0_227 = arith.constant 0 : index
    %c1_228 = arith.constant 1 : index
    %c4_229 = arith.constant 4 : index
    %c0_230 = arith.constant 0 : index
    %269 = vector.load %arg20[%c0_227, %c1_228, %c4_229, %c0_230] : memref<1x12x12x16xf32, #tpu.memory_space<vmem>>, vector<1x8x8x16xf32>
    %270 = vector.extract_strided_slice %213 {offsets = [9, 0], sizes = [1, 16], strides = [1, 1]} : vector<25x16xf32> to vector<1x16xf32>
    %271 = vector.shape_cast %270 : vector<1x16xf32> to vector<1x1x1x16xf32>
    %272 = vector.broadcast %271 : vector<1x1x1x16xf32> to vector<1x8x8x16xf32>
    %273 = arith.mulf %269, %272 : vector<1x8x8x16xf32>
    %274 = arith.addf %268, %273 : vector<1x8x8x16xf32>
    %c0_231 = arith.constant 0 : index
    %c2_232 = arith.constant 2 : index
    %c0_233 = arith.constant 0 : index
    %c0_234 = arith.constant 0 : index
    %275 = vector.load %arg20[%c0_231, %c2_232, %c0_233, %c0_234] : memref<1x12x12x16xf32, #tpu.memory_space<vmem>>, vector<1x8x8x16xf32>
    %276 = vector.extract_strided_slice %213 {offsets = [10, 0], sizes = [1, 16], strides = [1, 1]} : vector<25x16xf32> to vector<1x16xf32>
    %277 = vector.shape_cast %276 : vector<1x16xf32> to vector<1x1x1x16xf32>
    %278 = vector.broadcast %277 : vector<1x1x1x16xf32> to vector<1x8x8x16xf32>
    %279 = arith.mulf %275, %278 : vector<1x8x8x16xf32>
    %280 = arith.addf %274, %279 : vector<1x8x8x16xf32>
    %c0_235 = arith.constant 0 : index
    %c2_236 = arith.constant 2 : index
    %c1_237 = arith.constant 1 : index
    %c0_238 = arith.constant 0 : index
    %281 = vector.load %arg20[%c0_235, %c2_236, %c1_237, %c0_238] : memref<1x12x12x16xf32, #tpu.memory_space<vmem>>, vector<1x8x8x16xf32>
    %282 = vector.extract_strided_slice %213 {offsets = [11, 0], sizes = [1, 16], strides = [1, 1]} : vector<25x16xf32> to vector<1x16xf32>
    %283 = vector.shape_cast %282 : vector<1x16xf32> to vector<1x1x1x16xf32>
    %284 = vector.broadcast %283 : vector<1x1x1x16xf32> to vector<1x8x8x16xf32>
    %285 = arith.mulf %281, %284 : vector<1x8x8x16xf32>
    %286 = arith.addf %280, %285 : vector<1x8x8x16xf32>
    %c0_239 = arith.constant 0 : index
    %c2_240 = arith.constant 2 : index
    %c2_241 = arith.constant 2 : index
    %c0_242 = arith.constant 0 : index
    %287 = vector.load %arg20[%c0_239, %c2_240, %c2_241, %c0_242] : memref<1x12x12x16xf32, #tpu.memory_space<vmem>>, vector<1x8x8x16xf32>
    %288 = vector.extract_strided_slice %213 {offsets = [12, 0], sizes = [1, 16], strides = [1, 1]} : vector<25x16xf32> to vector<1x16xf32>
    %289 = vector.shape_cast %288 : vector<1x16xf32> to vector<1x1x1x16xf32>
    %290 = vector.broadcast %289 : vector<1x1x1x16xf32> to vector<1x8x8x16xf32>
    %291 = arith.mulf %287, %290 : vector<1x8x8x16xf32>
    %292 = arith.addf %286, %291 : vector<1x8x8x16xf32>
    %c0_243 = arith.constant 0 : index
    %c2_244 = arith.constant 2 : index
    %c3_245 = arith.constant 3 : index
    %c0_246 = arith.constant 0 : index
    %293 = vector.load %arg20[%c0_243, %c2_244, %c3_245, %c0_246] : memref<1x12x12x16xf32, #tpu.memory_space<vmem>>, vector<1x8x8x16xf32>
    %294 = vector.extract_strided_slice %213 {offsets = [13, 0], sizes = [1, 16], strides = [1, 1]} : vector<25x16xf32> to vector<1x16xf32>
    %295 = vector.shape_cast %294 : vector<1x16xf32> to vector<1x1x1x16xf32>
    %296 = vector.broadcast %295 : vector<1x1x1x16xf32> to vector<1x8x8x16xf32>
    %297 = arith.mulf %293, %296 : vector<1x8x8x16xf32>
    %298 = arith.addf %292, %297 : vector<1x8x8x16xf32>
    %c0_247 = arith.constant 0 : index
    %c2_248 = arith.constant 2 : index
    %c4_249 = arith.constant 4 : index
    %c0_250 = arith.constant 0 : index
    %299 = vector.load %arg20[%c0_247, %c2_248, %c4_249, %c0_250] : memref<1x12x12x16xf32, #tpu.memory_space<vmem>>, vector<1x8x8x16xf32>
    %300 = vector.extract_strided_slice %213 {offsets = [14, 0], sizes = [1, 16], strides = [1, 1]} : vector<25x16xf32> to vector<1x16xf32>
    %301 = vector.shape_cast %300 : vector<1x16xf32> to vector<1x1x1x16xf32>
    %302 = vector.broadcast %301 : vector<1x1x1x16xf32> to vector<1x8x8x16xf32>
    %303 = arith.mulf %299, %302 : vector<1x8x8x16xf32>
    %304 = arith.addf %298, %303 : vector<1x8x8x16xf32>
    %c0_251 = arith.constant 0 : index
    %c3_252 = arith.constant 3 : index
    %c0_253 = arith.constant 0 : index
    %c0_254 = arith.constant 0 : index
    %305 = vector.load %arg20[%c0_251, %c3_252, %c0_253, %c0_254] : memref<1x12x12x16xf32, #tpu.memory_space<vmem>>, vector<1x8x8x16xf32>
    %306 = vector.extract_strided_slice %213 {offsets = [15, 0], sizes = [1, 16], strides = [1, 1]} : vector<25x16xf32> to vector<1x16xf32>
    %307 = vector.shape_cast %306 : vector<1x16xf32> to vector<1x1x1x16xf32>
    %308 = vector.broadcast %307 : vector<1x1x1x16xf32> to vector<1x8x8x16xf32>
    %309 = arith.mulf %305, %308 : vector<1x8x8x16xf32>
    %310 = arith.addf %304, %309 : vector<1x8x8x16xf32>
    %c0_255 = arith.constant 0 : index
    %c3_256 = arith.constant 3 : index
    %c1_257 = arith.constant 1 : index
    %c0_258 = arith.constant 0 : index
    %311 = vector.load %arg20[%c0_255, %c3_256, %c1_257, %c0_258] : memref<1x12x12x16xf32, #tpu.memory_space<vmem>>, vector<1x8x8x16xf32>
    %312 = vector.extract_strided_slice %213 {offsets = [16, 0], sizes = [1, 16], strides = [1, 1]} : vector<25x16xf32> to vector<1x16xf32>
    %313 = vector.shape_cast %312 : vector<1x16xf32> to vector<1x1x1x16xf32>
    %314 = vector.broadcast %313 : vector<1x1x1x16xf32> to vector<1x8x8x16xf32>
    %315 = arith.mulf %311, %314 : vector<1x8x8x16xf32>
    %316 = arith.addf %310, %315 : vector<1x8x8x16xf32>
    %c0_259 = arith.constant 0 : index
    %c3_260 = arith.constant 3 : index
    %c2_261 = arith.constant 2 : index
    %c0_262 = arith.constant 0 : index
    %317 = vector.load %arg20[%c0_259, %c3_260, %c2_261, %c0_262] : memref<1x12x12x16xf32, #tpu.memory_space<vmem>>, vector<1x8x8x16xf32>
    %318 = vector.extract_strided_slice %213 {offsets = [17, 0], sizes = [1, 16], strides = [1, 1]} : vector<25x16xf32> to vector<1x16xf32>
    %319 = vector.shape_cast %318 : vector<1x16xf32> to vector<1x1x1x16xf32>
    %320 = vector.broadcast %319 : vector<1x1x1x16xf32> to vector<1x8x8x16xf32>
    %321 = arith.mulf %317, %320 : vector<1x8x8x16xf32>
    %322 = arith.addf %316, %321 : vector<1x8x8x16xf32>
    %c0_263 = arith.constant 0 : index
    %c3_264 = arith.constant 3 : index
    %c3_265 = arith.constant 3 : index
    %c0_266 = arith.constant 0 : index
    %323 = vector.load %arg20[%c0_263, %c3_264, %c3_265, %c0_266] : memref<1x12x12x16xf32, #tpu.memory_space<vmem>>, vector<1x8x8x16xf32>
    %324 = vector.extract_strided_slice %213 {offsets = [18, 0], sizes = [1, 16], strides = [1, 1]} : vector<25x16xf32> to vector<1x16xf32>
    %325 = vector.shape_cast %324 : vector<1x16xf32> to vector<1x1x1x16xf32>
    %326 = vector.broadcast %325 : vector<1x1x1x16xf32> to vector<1x8x8x16xf32>
    %327 = arith.mulf %323, %326 : vector<1x8x8x16xf32>
    %328 = arith.addf %322, %327 : vector<1x8x8x16xf32>
    %c0_267 = arith.constant 0 : index
    %c3_268 = arith.constant 3 : index
    %c4_269 = arith.constant 4 : index
    %c0_270 = arith.constant 0 : index
    %329 = vector.load %arg20[%c0_267, %c3_268, %c4_269, %c0_270] : memref<1x12x12x16xf32, #tpu.memory_space<vmem>>, vector<1x8x8x16xf32>
    %330 = vector.extract_strided_slice %213 {offsets = [19, 0], sizes = [1, 16], strides = [1, 1]} : vector<25x16xf32> to vector<1x16xf32>
    %331 = vector.shape_cast %330 : vector<1x16xf32> to vector<1x1x1x16xf32>
    %332 = vector.broadcast %331 : vector<1x1x1x16xf32> to vector<1x8x8x16xf32>
    %333 = arith.mulf %329, %332 : vector<1x8x8x16xf32>
    %334 = arith.addf %328, %333 : vector<1x8x8x16xf32>
    %c0_271 = arith.constant 0 : index
    %c4_272 = arith.constant 4 : index
    %c0_273 = arith.constant 0 : index
    %c0_274 = arith.constant 0 : index
    %335 = vector.load %arg20[%c0_271, %c4_272, %c0_273, %c0_274] : memref<1x12x12x16xf32, #tpu.memory_space<vmem>>, vector<1x8x8x16xf32>
    %336 = vector.extract_strided_slice %213 {offsets = [20, 0], sizes = [1, 16], strides = [1, 1]} : vector<25x16xf32> to vector<1x16xf32>
    %337 = vector.shape_cast %336 : vector<1x16xf32> to vector<1x1x1x16xf32>
    %338 = vector.broadcast %337 : vector<1x1x1x16xf32> to vector<1x8x8x16xf32>
    %339 = arith.mulf %335, %338 : vector<1x8x8x16xf32>
    %340 = arith.addf %334, %339 : vector<1x8x8x16xf32>
    %c0_275 = arith.constant 0 : index
    %c4_276 = arith.constant 4 : index
    %c1_277 = arith.constant 1 : index
    %c0_278 = arith.constant 0 : index
    %341 = vector.load %arg20[%c0_275, %c4_276, %c1_277, %c0_278] : memref<1x12x12x16xf32, #tpu.memory_space<vmem>>, vector<1x8x8x16xf32>
    %342 = vector.extract_strided_slice %213 {offsets = [21, 0], sizes = [1, 16], strides = [1, 1]} : vector<25x16xf32> to vector<1x16xf32>
    %343 = vector.shape_cast %342 : vector<1x16xf32> to vector<1x1x1x16xf32>
    %344 = vector.broadcast %343 : vector<1x1x1x16xf32> to vector<1x8x8x16xf32>
    %345 = arith.mulf %341, %344 : vector<1x8x8x16xf32>
    %346 = arith.addf %340, %345 : vector<1x8x8x16xf32>
    %c0_279 = arith.constant 0 : index
    %c4_280 = arith.constant 4 : index
    %c2_281 = arith.constant 2 : index
    %c0_282 = arith.constant 0 : index
    %347 = vector.load %arg20[%c0_279, %c4_280, %c2_281, %c0_282] : memref<1x12x12x16xf32, #tpu.memory_space<vmem>>, vector<1x8x8x16xf32>
    %348 = vector.extract_strided_slice %213 {offsets = [22, 0], sizes = [1, 16], strides = [1, 1]} : vector<25x16xf32> to vector<1x16xf32>
    %349 = vector.shape_cast %348 : vector<1x16xf32> to vector<1x1x1x16xf32>
    %350 = vector.broadcast %349 : vector<1x1x1x16xf32> to vector<1x8x8x16xf32>
    %351 = arith.mulf %347, %350 : vector<1x8x8x16xf32>
    %352 = arith.addf %346, %351 : vector<1x8x8x16xf32>
    %c0_283 = arith.constant 0 : index
    %c4_284 = arith.constant 4 : index
    %c3_285 = arith.constant 3 : index
    %c0_286 = arith.constant 0 : index
    %353 = vector.load %arg20[%c0_283, %c4_284, %c3_285, %c0_286] : memref<1x12x12x16xf32, #tpu.memory_space<vmem>>, vector<1x8x8x16xf32>
    %354 = vector.extract_strided_slice %213 {offsets = [23, 0], sizes = [1, 16], strides = [1, 1]} : vector<25x16xf32> to vector<1x16xf32>
    %355 = vector.shape_cast %354 : vector<1x16xf32> to vector<1x1x1x16xf32>
    %356 = vector.broadcast %355 : vector<1x1x1x16xf32> to vector<1x8x8x16xf32>
    %357 = arith.mulf %353, %356 : vector<1x8x8x16xf32>
    %358 = arith.addf %352, %357 : vector<1x8x8x16xf32>
    %c0_287 = arith.constant 0 : index
    %c4_288 = arith.constant 4 : index
    %c4_289 = arith.constant 4 : index
    %c0_290 = arith.constant 0 : index
    %359 = vector.load %arg20[%c0_287, %c4_288, %c4_289, %c0_290] : memref<1x12x12x16xf32, #tpu.memory_space<vmem>>, vector<1x8x8x16xf32>
    %360 = vector.extract_strided_slice %213 {offsets = [24, 0], sizes = [1, 16], strides = [1, 1]} : vector<25x16xf32> to vector<1x16xf32>
    %361 = vector.shape_cast %360 : vector<1x16xf32> to vector<1x1x1x16xf32>
    %362 = vector.broadcast %361 : vector<1x1x1x16xf32> to vector<1x8x8x16xf32>
    %363 = arith.mulf %359, %362 : vector<1x8x8x16xf32>
    %364 = arith.addf %358, %363 : vector<1x8x8x16xf32>
    %365 = vector.shape_cast %364 : vector<1x8x8x16xf32> to vector<64x16xf32>
    %366 = arith.truncf %365 : vector<64x16xf32> to vector<64x16xbf16>
    %c0_291 = arith.constant 0 : index
    %c0_292 = arith.constant 0 : index
    %367 = vector.load %arg14[%c0_291, %c0_292] : memref<16x16xbf16, #tpu.memory_space<vmem>>, vector<16x16xbf16>
    %cst_293 = arith.constant dense<0.000000e+00> : vector<64x16xf32>
    %368 = tpu.matmul %366, %367, %cst_293 {dimension_numbers = #tpu.dot_dimension_numbers<[1], [0], [0], [1], [0, 0, 1, 1], [], []>} : vector<64x16xbf16>, vector<16x16xbf16>, vector<64x16xf32> -> vector<64x16xf32>
    %c0_294 = arith.constant 0 : index
    %c0_295 = arith.constant 0 : index
    %369 = vector.load %arg15[%c0_294, %c0_295] : memref<1x16xf32, #tpu.memory_space<vmem>>, vector<1x16xf32>
    %370 = vector.broadcast %369 : vector<1x16xf32> to vector<64x16xf32>
    %371 = arith.addf %368, %370 : vector<64x16xf32>
    %372 = vector.shape_cast %371 : vector<64x16xf32> to vector<1x8x8x16xf32>
    %cst_296 = arith.constant 0.000000e+00 : f32
    %373 = vector.broadcast %cst_296 : f32 to vector<1x8x8x24xf32>
    %374 = arith.maximumf %46, %373 : vector<1x8x8x24xf32>
    %c0_297 = arith.constant 0 : index
    %c1_298 = arith.constant 1 : index
    %c1_299 = arith.constant 1 : index
    %c0_300 = arith.constant 0 : index
    %375 = vector.load %arg21[%c0_297, %c1_298, %c1_299, %c0_300] : memref<1x10x10x24xf32, #tpu.memory_space<vmem>>, vector<1x8x8x24xf32>
    tpu.vector_store %arg21[%c0_297, %c1_298, %c1_299, %c0_300], %374 {strides = array<i32>} : memref<1x10x10x24xf32, #tpu.memory_space<vmem>>, vector<1x8x8x24xf32>,
    %c0_301 = arith.constant 0 : index
    %c0_302 = arith.constant 0 : index
    %376 = vector.load %arg10[%c0_301, %c0_302] : memref<9x24xf32, #tpu.memory_space<vmem>>, vector<9x24xf32>
    %cst_303 = arith.constant 0.000000e+00 : f32
    %377 = vector.broadcast %cst_303 : f32 to vector<1x8x8x24xf32>
    %c0_304 = arith.constant 0 : index
    %c0_305 = arith.constant 0 : index
    %c0_306 = arith.constant 0 : index
    %c0_307 = arith.constant 0 : index
    %378 = vector.load %arg21[%c0_304, %c0_305, %c0_306, %c0_307] : memref<1x10x10x24xf32, #tpu.memory_space<vmem>>, vector<1x8x8x24xf32>
    %379 = vector.extract_strided_slice %376 {offsets = [0, 0], sizes = [1, 24], strides = [1, 1]} : vector<9x24xf32> to vector<1x24xf32>
    %380 = vector.shape_cast %379 : vector<1x24xf32> to vector<1x1x1x24xf32>
    %381 = vector.broadcast %380 : vector<1x1x1x24xf32> to vector<1x8x8x24xf32>
    %382 = arith.mulf %378, %381 : vector<1x8x8x24xf32>
    %383 = arith.addf %377, %382 : vector<1x8x8x24xf32>
    %c0_308 = arith.constant 0 : index
    %c0_309 = arith.constant 0 : index
    %c1_310 = arith.constant 1 : index
    %c0_311 = arith.constant 0 : index
    %384 = vector.load %arg21[%c0_308, %c0_309, %c1_310, %c0_311] : memref<1x10x10x24xf32, #tpu.memory_space<vmem>>, vector<1x8x8x24xf32>
    %385 = vector.extract_strided_slice %376 {offsets = [1, 0], sizes = [1, 24], strides = [1, 1]} : vector<9x24xf32> to vector<1x24xf32>
    %386 = vector.shape_cast %385 : vector<1x24xf32> to vector<1x1x1x24xf32>
    %387 = vector.broadcast %386 : vector<1x1x1x24xf32> to vector<1x8x8x24xf32>
    %388 = arith.mulf %384, %387 : vector<1x8x8x24xf32>
    %389 = arith.addf %383, %388 : vector<1x8x8x24xf32>
    %c0_312 = arith.constant 0 : index
    %c0_313 = arith.constant 0 : index
    %c2_314 = arith.constant 2 : index
    %c0_315 = arith.constant 0 : index
    %390 = vector.load %arg21[%c0_312, %c0_313, %c2_314, %c0_315] : memref<1x10x10x24xf32, #tpu.memory_space<vmem>>, vector<1x8x8x24xf32>
    %391 = vector.extract_strided_slice %376 {offsets = [2, 0], sizes = [1, 24], strides = [1, 1]} : vector<9x24xf32> to vector<1x24xf32>
    %392 = vector.shape_cast %391 : vector<1x24xf32> to vector<1x1x1x24xf32>
    %393 = vector.broadcast %392 : vector<1x1x1x24xf32> to vector<1x8x8x24xf32>
    %394 = arith.mulf %390, %393 : vector<1x8x8x24xf32>
    %395 = arith.addf %389, %394 : vector<1x8x8x24xf32>
    %c0_316 = arith.constant 0 : index
    %c1_317 = arith.constant 1 : index
    %c0_318 = arith.constant 0 : index
    %c0_319 = arith.constant 0 : index
    %396 = vector.load %arg21[%c0_316, %c1_317, %c0_318, %c0_319] : memref<1x10x10x24xf32, #tpu.memory_space<vmem>>, vector<1x8x8x24xf32>
    %397 = vector.extract_strided_slice %376 {offsets = [3, 0], sizes = [1, 24], strides = [1, 1]} : vector<9x24xf32> to vector<1x24xf32>
    %398 = vector.shape_cast %397 : vector<1x24xf32> to vector<1x1x1x24xf32>
    %399 = vector.broadcast %398 : vector<1x1x1x24xf32> to vector<1x8x8x24xf32>
    %400 = arith.mulf %396, %399 : vector<1x8x8x24xf32>
    %401 = arith.addf %395, %400 : vector<1x8x8x24xf32>
    %c0_320 = arith.constant 0 : index
    %c1_321 = arith.constant 1 : index
    %c1_322 = arith.constant 1 : index
    %c0_323 = arith.constant 0 : index
    %402 = vector.load %arg21[%c0_320, %c1_321, %c1_322, %c0_323] : memref<1x10x10x24xf32, #tpu.memory_space<vmem>>, vector<1x8x8x24xf32>
    %403 = vector.extract_strided_slice %376 {offsets = [4, 0], sizes = [1, 24], strides = [1, 1]} : vector<9x24xf32> to vector<1x24xf32>
    %404 = vector.shape_cast %403 : vector<1x24xf32> to vector<1x1x1x24xf32>
    %405 = vector.broadcast %404 : vector<1x1x1x24xf32> to vector<1x8x8x24xf32>
    %406 = arith.mulf %402, %405 : vector<1x8x8x24xf32>
    %407 = arith.addf %401, %406 : vector<1x8x8x24xf32>
    %c0_324 = arith.constant 0 : index
    %c1_325 = arith.constant 1 : index
    %c2_326 = arith.constant 2 : index
    %c0_327 = arith.constant 0 : index
    %408 = vector.load %arg21[%c0_324, %c1_325, %c2_326, %c0_327] : memref<1x10x10x24xf32, #tpu.memory_space<vmem>>, vector<1x8x8x24xf32>
    %409 = vector.extract_strided_slice %376 {offsets = [5, 0], sizes = [1, 24], strides = [1, 1]} : vector<9x24xf32> to vector<1x24xf32>
    %410 = vector.shape_cast %409 : vector<1x24xf32> to vector<1x1x1x24xf32>
    %411 = vector.broadcast %410 : vector<1x1x1x24xf32> to vector<1x8x8x24xf32>
    %412 = arith.mulf %408, %411 : vector<1x8x8x24xf32>
    %413 = arith.addf %407, %412 : vector<1x8x8x24xf32>
    %c0_328 = arith.constant 0 : index
    %c2_329 = arith.constant 2 : index
    %c0_330 = arith.constant 0 : index
    %c0_331 = arith.constant 0 : index
    %414 = vector.load %arg21[%c0_328, %c2_329, %c0_330, %c0_331] : memref<1x10x10x24xf32, #tpu.memory_space<vmem>>, vector<1x8x8x24xf32>
    %415 = vector.extract_strided_slice %376 {offsets = [6, 0], sizes = [1, 24], strides = [1, 1]} : vector<9x24xf32> to vector<1x24xf32>
    %416 = vector.shape_cast %415 : vector<1x24xf32> to vector<1x1x1x24xf32>
    %417 = vector.broadcast %416 : vector<1x1x1x24xf32> to vector<1x8x8x24xf32>
    %418 = arith.mulf %414, %417 : vector<1x8x8x24xf32>
    %419 = arith.addf %413, %418 : vector<1x8x8x24xf32>
    %c0_332 = arith.constant 0 : index
    %c2_333 = arith.constant 2 : index
    %c1_334 = arith.constant 1 : index
    %c0_335 = arith.constant 0 : index
    %420 = vector.load %arg21[%c0_332, %c2_333, %c1_334, %c0_335] : memref<1x10x10x24xf32, #tpu.memory_space<vmem>>, vector<1x8x8x24xf32>
    %421 = vector.extract_strided_slice %376 {offsets = [7, 0], sizes = [1, 24], strides = [1, 1]} : vector<9x24xf32> to vector<1x24xf32>
    %422 = vector.shape_cast %421 : vector<1x24xf32> to vector<1x1x1x24xf32>
    %423 = vector.broadcast %422 : vector<1x1x1x24xf32> to vector<1x8x8x24xf32>
    %424 = arith.mulf %420, %423 : vector<1x8x8x24xf32>
    %425 = arith.addf %419, %424 : vector<1x8x8x24xf32>
    %c0_336 = arith.constant 0 : index
    %c2_337 = arith.constant 2 : index
    %c2_338 = arith.constant 2 : index
    %c0_339 = arith.constant 0 : index
    %426 = vector.load %arg21[%c0_336, %c2_337, %c2_338, %c0_339] : memref<1x10x10x24xf32, #tpu.memory_space<vmem>>, vector<1x8x8x24xf32>
    %427 = vector.extract_strided_slice %376 {offsets = [8, 0], sizes = [1, 24], strides = [1, 1]} : vector<9x24xf32> to vector<1x24xf32>
    %428 = vector.shape_cast %427 : vector<1x24xf32> to vector<1x1x1x24xf32>
    %429 = vector.broadcast %428 : vector<1x1x1x24xf32> to vector<1x8x8x24xf32>
    %430 = arith.mulf %426, %429 : vector<1x8x8x24xf32>
    %431 = arith.addf %425, %430 : vector<1x8x8x24xf32>
    %432 = vector.shape_cast %431 : vector<1x8x8x24xf32> to vector<64x24xf32>
    %433 = arith.truncf %432 : vector<64x24xf32> to vector<64x24xbf16>
    %c0_340 = arith.constant 0 : index
    %c0_341 = arith.constant 0 : index
    %434 = vector.load %arg11[%c0_340, %c0_341] : memref<24x24xbf16, #tpu.memory_space<vmem>>, vector<24x24xbf16>
    %cst_342 = arith.constant dense<0.000000e+00> : vector<64x24xf32>
    %435 = tpu.matmul %433, %434, %cst_342 {dimension_numbers = #tpu.dot_dimension_numbers<[1], [0], [0], [1], [0, 0, 1, 1], [], []>} : vector<64x24xbf16>, vector<24x24xbf16>, vector<64x24xf32> -> vector<64x24xf32>
    %c0_343 = arith.constant 0 : index
    %c0_344 = arith.constant 0 : index
    %436 = vector.load %arg12[%c0_343, %c0_344] : memref<1x24xf32, #tpu.memory_space<vmem>>, vector<1x24xf32>
    %437 = vector.broadcast %436 : vector<1x24xf32> to vector<64x24xf32>
    %438 = arith.addf %435, %437 : vector<64x24xf32>
    %439 = vector.shape_cast %438 : vector<64x24xf32> to vector<1x8x8x24xf32>
    %cst_345 = arith.constant 0.000000e+00 : f32
    %440 = vector.broadcast %cst_345 : f32 to vector<1x8x8x24xf32>
    %441 = arith.maximumf %439, %440 : vector<1x8x8x24xf32>
    %c0_346 = arith.constant 0 : index
    %c1_347 = arith.constant 1 : index
    %c1_348 = arith.constant 1 : index
    %c0_349 = arith.constant 0 : index
    %442 = vector.load %arg21[%c0_346, %c1_347, %c1_348, %c0_349] : memref<1x10x10x24xf32, #tpu.memory_space<vmem>>, vector<1x8x8x24xf32>
    tpu.vector_store %arg21[%c0_346, %c1_347, %c1_348, %c0_349], %441 {strides = array<i32>} : memref<1x10x10x24xf32, #tpu.memory_space<vmem>>, vector<1x8x8x24xf32>,
    %c0_350 = arith.constant 0 : index
    %c0_351 = arith.constant 0 : index
    %443 = vector.load %arg16[%c0_350, %c0_351] : memref<9x24xf32, #tpu.memory_space<vmem>>, vector<9x24xf32>
    %cst_352 = arith.constant 0.000000e+00 : f32
    %444 = vector.broadcast %cst_352 : f32 to vector<1x8x8x24xf32>
    %c0_353 = arith.constant 0 : index
    %c0_354 = arith.constant 0 : index
    %c0_355 = arith.constant 0 : index
    %c0_356 = arith.constant 0 : index
    %445 = vector.load %arg21[%c0_353, %c0_354, %c0_355, %c0_356] : memref<1x10x10x24xf32, #tpu.memory_space<vmem>>, vector<1x8x8x24xf32>
    %446 = vector.extract_strided_slice %443 {offsets = [0, 0], sizes = [1, 24], strides = [1, 1]} : vector<9x24xf32> to vector<1x24xf32>
    %447 = vector.shape_cast %446 : vector<1x24xf32> to vector<1x1x1x24xf32>
    %448 = vector.broadcast %447 : vector<1x1x1x24xf32> to vector<1x8x8x24xf32>
    %449 = arith.mulf %445, %448 : vector<1x8x8x24xf32>
    %450 = arith.addf %444, %449 : vector<1x8x8x24xf32>
    %c0_357 = arith.constant 0 : index
    %c0_358 = arith.constant 0 : index
    %c1_359 = arith.constant 1 : index
    %c0_360 = arith.constant 0 : index
    %451 = vector.load %arg21[%c0_357, %c0_358, %c1_359, %c0_360] : memref<1x10x10x24xf32, #tpu.memory_space<vmem>>, vector<1x8x8x24xf32>
    %452 = vector.extract_strided_slice %443 {offsets = [1, 0], sizes = [1, 24], strides = [1, 1]} : vector<9x24xf32> to vector<1x24xf32>
    %453 = vector.shape_cast %452 : vector<1x24xf32> to vector<1x1x1x24xf32>
    %454 = vector.broadcast %453 : vector<1x1x1x24xf32> to vector<1x8x8x24xf32>
    %455 = arith.mulf %451, %454 : vector<1x8x8x24xf32>
    %456 = arith.addf %450, %455 : vector<1x8x8x24xf32>
    %c0_361 = arith.constant 0 : index
    %c0_362 = arith.constant 0 : index
    %c2_363 = arith.constant 2 : index
    %c0_364 = arith.constant 0 : index
    %457 = vector.load %arg21[%c0_361, %c0_362, %c2_363, %c0_364] : memref<1x10x10x24xf32, #tpu.memory_space<vmem>>, vector<1x8x8x24xf32>
    %458 = vector.extract_strided_slice %443 {offsets = [2, 0], sizes = [1, 24], strides = [1, 1]} : vector<9x24xf32> to vector<1x24xf32>
    %459 = vector.shape_cast %458 : vector<1x24xf32> to vector<1x1x1x24xf32>
    %460 = vector.broadcast %459 : vector<1x1x1x24xf32> to vector<1x8x8x24xf32>
    %461 = arith.mulf %457, %460 : vector<1x8x8x24xf32>
    %462 = arith.addf %456, %461 : vector<1x8x8x24xf32>
    %c0_365 = arith.constant 0 : index
    %c1_366 = arith.constant 1 : index
    %c0_367 = arith.constant 0 : index
    %c0_368 = arith.constant 0 : index
    %463 = vector.load %arg21[%c0_365, %c1_366, %c0_367, %c0_368] : memref<1x10x10x24xf32, #tpu.memory_space<vmem>>, vector<1x8x8x24xf32>
    %464 = vector.extract_strided_slice %443 {offsets = [3, 0], sizes = [1, 24], strides = [1, 1]} : vector<9x24xf32> to vector<1x24xf32>
    %465 = vector.shape_cast %464 : vector<1x24xf32> to vector<1x1x1x24xf32>
    %466 = vector.broadcast %465 : vector<1x1x1x24xf32> to vector<1x8x8x24xf32>
    %467 = arith.mulf %463, %466 : vector<1x8x8x24xf32>
    %468 = arith.addf %462, %467 : vector<1x8x8x24xf32>
    %c0_369 = arith.constant 0 : index
    %c1_370 = arith.constant 1 : index
    %c1_371 = arith.constant 1 : index
    %c0_372 = arith.constant 0 : index
    %469 = vector.load %arg21[%c0_369, %c1_370, %c1_371, %c0_372] : memref<1x10x10x24xf32, #tpu.memory_space<vmem>>, vector<1x8x8x24xf32>
    %470 = vector.extract_strided_slice %443 {offsets = [4, 0], sizes = [1, 24], strides = [1, 1]} : vector<9x24xf32> to vector<1x24xf32>
    %471 = vector.shape_cast %470 : vector<1x24xf32> to vector<1x1x1x24xf32>
    %472 = vector.broadcast %471 : vector<1x1x1x24xf32> to vector<1x8x8x24xf32>
    %473 = arith.mulf %469, %472 : vector<1x8x8x24xf32>
    %474 = arith.addf %468, %473 : vector<1x8x8x24xf32>
    %c0_373 = arith.constant 0 : index
    %c1_374 = arith.constant 1 : index
    %c2_375 = arith.constant 2 : index
    %c0_376 = arith.constant 0 : index
    %475 = vector.load %arg21[%c0_373, %c1_374, %c2_375, %c0_376] : memref<1x10x10x24xf32, #tpu.memory_space<vmem>>, vector<1x8x8x24xf32>
    %476 = vector.extract_strided_slice %443 {offsets = [5, 0], sizes = [1, 24], strides = [1, 1]} : vector<9x24xf32> to vector<1x24xf32>
    %477 = vector.shape_cast %476 : vector<1x24xf32> to vector<1x1x1x24xf32>
    %478 = vector.broadcast %477 : vector<1x1x1x24xf32> to vector<1x8x8x24xf32>
    %479 = arith.mulf %475, %478 : vector<1x8x8x24xf32>
    %480 = arith.addf %474, %479 : vector<1x8x8x24xf32>
    %c0_377 = arith.constant 0 : index
    %c2_378 = arith.constant 2 : index
    %c0_379 = arith.constant 0 : index
    %c0_380 = arith.constant 0 : index
    %481 = vector.load %arg21[%c0_377, %c2_378, %c0_379, %c0_380] : memref<1x10x10x24xf32, #tpu.memory_space<vmem>>, vector<1x8x8x24xf32>
    %482 = vector.extract_strided_slice %443 {offsets = [6, 0], sizes = [1, 24], strides = [1, 1]} : vector<9x24xf32> to vector<1x24xf32>
    %483 = vector.shape_cast %482 : vector<1x24xf32> to vector<1x1x1x24xf32>
    %484 = vector.broadcast %483 : vector<1x1x1x24xf32> to vector<1x8x8x24xf32>
    %485 = arith.mulf %481, %484 : vector<1x8x8x24xf32>
    %486 = arith.addf %480, %485 : vector<1x8x8x24xf32>
    %c0_381 = arith.constant 0 : index
    %c2_382 = arith.constant 2 : index
    %c1_383 = arith.constant 1 : index
    %c0_384 = arith.constant 0 : index
    %487 = vector.load %arg21[%c0_381, %c2_382, %c1_383, %c0_384] : memref<1x10x10x24xf32, #tpu.memory_space<vmem>>, vector<1x8x8x24xf32>
    %488 = vector.extract_strided_slice %443 {offsets = [7, 0], sizes = [1, 24], strides = [1, 1]} : vector<9x24xf32> to vector<1x24xf32>
    %489 = vector.shape_cast %488 : vector<1x24xf32> to vector<1x1x1x24xf32>
    %490 = vector.broadcast %489 : vector<1x1x1x24xf32> to vector<1x8x8x24xf32>
    %491 = arith.mulf %487, %490 : vector<1x8x8x24xf32>
    %492 = arith.addf %486, %491 : vector<1x8x8x24xf32>
    %c0_385 = arith.constant 0 : index
    %c2_386 = arith.constant 2 : index
    %c2_387 = arith.constant 2 : index
    %c0_388 = arith.constant 0 : index
    %493 = vector.load %arg21[%c0_385, %c2_386, %c2_387, %c0_388] : memref<1x10x10x24xf32, #tpu.memory_space<vmem>>, vector<1x8x8x24xf32>
    %494 = vector.extract_strided_slice %443 {offsets = [8, 0], sizes = [1, 24], strides = [1, 1]} : vector<9x24xf32> to vector<1x24xf32>
    %495 = vector.shape_cast %494 : vector<1x24xf32> to vector<1x1x1x24xf32>
    %496 = vector.broadcast %495 : vector<1x1x1x24xf32> to vector<1x8x8x24xf32>
    %497 = arith.mulf %493, %496 : vector<1x8x8x24xf32>
    %498 = arith.addf %492, %497 : vector<1x8x8x24xf32>
    %499 = vector.shape_cast %498 : vector<1x8x8x24xf32> to vector<64x24xf32>
    %500 = arith.truncf %499 : vector<64x24xf32> to vector<64x24xbf16>
    %c0_389 = arith.constant 0 : index
    %c0_390 = arith.constant 0 : index
    %501 = vector.load %arg17[%c0_389, %c0_390] : memref<24x24xbf16, #tpu.memory_space<vmem>>, vector<24x24xbf16>
    %cst_391 = arith.constant dense<0.000000e+00> : vector<64x24xf32>
    %502 = tpu.matmul %500, %501, %cst_391 {dimension_numbers = #tpu.dot_dimension_numbers<[1], [0], [0], [1], [0, 0, 1, 1], [], []>} : vector<64x24xbf16>, vector<24x24xbf16>, vector<64x24xf32> -> vector<64x24xf32>
    %c0_392 = arith.constant 0 : index
    %c0_393 = arith.constant 0 : index
    %503 = vector.load %arg18[%c0_392, %c0_393] : memref<1x24xf32, #tpu.memory_space<vmem>>, vector<1x24xf32>
    %504 = vector.broadcast %503 : vector<1x24xf32> to vector<64x24xf32>
    %505 = arith.addf %502, %504 : vector<64x24xf32>
    %506 = vector.shape_cast %505 : vector<64x24xf32> to vector<1x8x8x24xf32>
    %c0_394 = arith.constant 0 : index
    %c1_395 = arith.constant 1 : index
    %c1_396 = arith.constant 1 : index
    %c0_397 = arith.constant 0 : index
    %507 = vector.load %arg22[%c0_394, %c1_395, %c1_396, %c0_397] : memref<1x10x10x16xf32, #tpu.memory_space<vmem>>, vector<1x8x8x16xf32>
    tpu.vector_store %arg22[%c0_394, %c1_395, %c1_396, %c0_397], %45 {strides = array<i32>} : memref<1x10x10x16xf32, #tpu.memory_space<vmem>>, vector<1x8x8x16xf32>,
    %cst_398 = arith.constant 0.000000e+00 : f32
    %508 = vector.broadcast %cst_398 : f32 to vector<1x8x8x16xf32>
    %c0_399 = arith.constant 0 : index
    %c0_400 = arith.constant 0 : index
    %c0_401 = arith.constant 0 : index
    %c0_402 = arith.constant 0 : index
    %509 = vector.load %arg22[%c0_399, %c0_400, %c0_401, %c0_402] : memref<1x10x10x16xf32, #tpu.memory_space<vmem>>, vector<1x8x8x16xf32>
    %510 = arith.addf %508, %509 : vector<1x8x8x16xf32>
    %c0_403 = arith.constant 0 : index
    %c0_404 = arith.constant 0 : index
    %c1_405 = arith.constant 1 : index
    %c0_406 = arith.constant 0 : index
    %511 = vector.load %arg22[%c0_403, %c0_404, %c1_405, %c0_406] : memref<1x10x10x16xf32, #tpu.memory_space<vmem>>, vector<1x8x8x16xf32>
    %512 = arith.addf %510, %511 : vector<1x8x8x16xf32>
    %c0_407 = arith.constant 0 : index
    %c0_408 = arith.constant 0 : index
    %c2_409 = arith.constant 2 : index
    %c0_410 = arith.constant 0 : index
    %513 = vector.load %arg22[%c0_407, %c0_408, %c2_409, %c0_410] : memref<1x10x10x16xf32, #tpu.memory_space<vmem>>, vector<1x8x8x16xf32>
    %514 = arith.addf %512, %513 : vector<1x8x8x16xf32>
    %c0_411 = arith.constant 0 : index
    %c1_412 = arith.constant 1 : index
    %c0_413 = arith.constant 0 : index
    %c0_414 = arith.constant 0 : index
    %515 = vector.load %arg22[%c0_411, %c1_412, %c0_413, %c0_414] : memref<1x10x10x16xf32, #tpu.memory_space<vmem>>, vector<1x8x8x16xf32>
    %516 = arith.addf %514, %515 : vector<1x8x8x16xf32>
    %c0_415 = arith.constant 0 : index
    %c1_416 = arith.constant 1 : index
    %c1_417 = arith.constant 1 : index
    %c0_418 = arith.constant 0 : index
    %517 = vector.load %arg22[%c0_415, %c1_416, %c1_417, %c0_418] : memref<1x10x10x16xf32, #tpu.memory_space<vmem>>, vector<1x8x8x16xf32>
    %518 = arith.addf %516, %517 : vector<1x8x8x16xf32>
    %c0_419 = arith.constant 0 : index
    %c1_420 = arith.constant 1 : index
    %c2_421 = arith.constant 2 : index
    %c0_422 = arith.constant 0 : index
    %519 = vector.load %arg22[%c0_419, %c1_420, %c2_421, %c0_422] : memref<1x10x10x16xf32, #tpu.memory_space<vmem>>, vector<1x8x8x16xf32>
    %520 = arith.addf %518, %519 : vector<1x8x8x16xf32>
    %c0_423 = arith.constant 0 : index
    %c2_424 = arith.constant 2 : index
    %c0_425 = arith.constant 0 : index
    %c0_426 = arith.constant 0 : index
    %521 = vector.load %arg22[%c0_423, %c2_424, %c0_425, %c0_426] : memref<1x10x10x16xf32, #tpu.memory_space<vmem>>, vector<1x8x8x16xf32>
    %522 = arith.addf %520, %521 : vector<1x8x8x16xf32>
    %c0_427 = arith.constant 0 : index
    %c2_428 = arith.constant 2 : index
    %c1_429 = arith.constant 1 : index
    %c0_430 = arith.constant 0 : index
    %523 = vector.load %arg22[%c0_427, %c2_428, %c1_429, %c0_430] : memref<1x10x10x16xf32, #tpu.memory_space<vmem>>, vector<1x8x8x16xf32>
    %524 = arith.addf %522, %523 : vector<1x8x8x16xf32>
    %c0_431 = arith.constant 0 : index
    %c2_432 = arith.constant 2 : index
    %c2_433 = arith.constant 2 : index
    %c0_434 = arith.constant 0 : index
    %525 = vector.load %arg22[%c0_431, %c2_432, %c2_433, %c0_434] : memref<1x10x10x16xf32, #tpu.memory_space<vmem>>, vector<1x8x8x16xf32>
    %526 = arith.addf %524, %525 : vector<1x8x8x16xf32>
    %c0_435 = arith.constant 0 : index
    %c0_436 = arith.constant 0 : index
    %c0_437 = arith.constant 0 : index
    %c0_438 = arith.constant 0 : index
    %527 = vector.load %arg3[%c0_435, %c0_436, %c0_437, %c0_438] : memref<1x8x8x1xf32, #tpu.memory_space<vmem>>, vector<1x8x8x1xf32>
    %528 = vector.broadcast %527 : vector<1x8x8x1xf32> to vector<1x8x8x16xf32>
    %529 = arith.mulf %526, %528 : vector<1x8x8x16xf32>
    %530 = vector.extract_strided_slice %529 {offsets = [0, 0, 0, 0], sizes = [1, 8, 8, 8], strides = [1, 1, 1, 1]} : vector<1x8x8x16xf32> to vector<1x8x8x8xf32>
    %531 = vector.extract_strided_slice %529 {offsets = [0, 0, 0, 8], sizes = [1, 8, 8, 8], strides = [1, 1, 1, 1]} : vector<1x8x8x16xf32> to vector<1x8x8x8xf32>
    %c0_439 = arith.constant 0 : index
    %c0_440 = arith.constant 0 : index
    %c0_441 = arith.constant 0 : index
    %c0_442 = arith.constant 0 : index
    %532 = vector.load %arg19[%c0_439, %c0_440, %c0_441, %c0_442] : memref<1x8x8x48xf32, #tpu.memory_space<vmem>>, vector<1x8x8x8xf32>
    tpu.vector_store %arg19[%c0_439, %c0_440, %c0_441, %c0_442], %44 {strides = array<i32>} : memref<1x8x8x48xf32, #tpu.memory_space<vmem>>, vector<1x8x8x8xf32>,
    %533 = vector.extract_strided_slice %372 {offsets = [0, 0, 0, 0], sizes = [1, 8, 8, 8], strides = [1, 1, 1, 1]} : vector<1x8x8x16xf32> to vector<1x8x8x8xf32>
    %534 = vector.extract_strided_slice %506 {offsets = [0, 0, 0, 0], sizes = [1, 8, 8, 8], strides = [1, 1, 1, 1]} : vector<1x8x8x24xf32> to vector<1x8x8x8xf32>
    %535 = arith.addf %533, %534 : vector<1x8x8x8xf32>
    %c0_443 = arith.constant 0 : index
    %c0_444 = arith.constant 0 : index
    %c0_445 = arith.constant 0 : index
    %c8 = arith.constant 8 : index
    %536 = vector.load %arg19[%c0_443, %c0_444, %c0_445, %c8] : memref<1x8x8x48xf32, #tpu.memory_space<vmem>>, vector<1x8x8x8xf32>
    tpu.vector_store %arg19[%c0_443, %c0_444, %c0_445, %c8], %535 {strides = array<i32>} : memref<1x8x8x48xf32, #tpu.memory_space<vmem>>, vector<1x8x8x8xf32>,
    %537 = vector.extract_strided_slice %372 {offsets = [0, 0, 0, 8], sizes = [1, 8, 8, 8], strides = [1, 1, 1, 1]} : vector<1x8x8x16xf32> to vector<1x8x8x8xf32>
    %538 = vector.extract_strided_slice %506 {offsets = [0, 0, 0, 8], sizes = [1, 8, 8, 8], strides = [1, 1, 1, 1]} : vector<1x8x8x24xf32> to vector<1x8x8x8xf32>
    %539 = arith.addf %537, %538 : vector<1x8x8x8xf32>
    %c0_446 = arith.constant 0 : index
    %c0_447 = arith.constant 0 : index
    %c0_448 = arith.constant 0 : index
    %c16 = arith.constant 16 : index
    %540 = vector.load %arg19[%c0_446, %c0_447, %c0_448, %c16] : memref<1x8x8x48xf32, #tpu.memory_space<vmem>>, vector<1x8x8x8xf32>
    tpu.vector_store %arg19[%c0_446, %c0_447, %c0_448, %c16], %539 {strides = array<i32>} : memref<1x8x8x48xf32, #tpu.memory_space<vmem>>, vector<1x8x8x8xf32>,
    %541 = arith.addf %530, %44 : vector<1x8x8x8xf32>
    %c0_449 = arith.constant 0 : index
    %c0_450 = arith.constant 0 : index
    %c0_451 = arith.constant 0 : index
    %c24 = arith.constant 24 : index
    %542 = vector.load %arg19[%c0_449, %c0_450, %c0_451, %c24] : memref<1x8x8x48xf32, #tpu.memory_space<vmem>>, vector<1x8x8x8xf32>
    tpu.vector_store %arg19[%c0_449, %c0_450, %c0_451, %c24], %541 {strides = array<i32>} : memref<1x8x8x48xf32, #tpu.memory_space<vmem>>, vector<1x8x8x8xf32>,
    %543 = arith.addf %531, %531 : vector<1x8x8x8xf32>
    %c0_452 = arith.constant 0 : index
    %c0_453 = arith.constant 0 : index
    %c0_454 = arith.constant 0 : index
    %c32 = arith.constant 32 : index
    %544 = vector.load %arg19[%c0_452, %c0_453, %c0_454, %c32] : memref<1x8x8x48xf32, #tpu.memory_space<vmem>>, vector<1x8x8x8xf32>
    tpu.vector_store %arg19[%c0_452, %c0_453, %c0_454, %c32], %543 {strides = array<i32>} : memref<1x8x8x48xf32, #tpu.memory_space<vmem>>, vector<1x8x8x8xf32>,
    %545 = vector.extract_strided_slice %506 {offsets = [0, 0, 0, 16], sizes = [1, 8, 8, 8], strides = [1, 1, 1, 1]} : vector<1x8x8x24xf32> to vector<1x8x8x8xf32>
    %546 = arith.addf %545, %43 : vector<1x8x8x8xf32>
    %c0_455 = arith.constant 0 : index
    %c0_456 = arith.constant 0 : index
    %c0_457 = arith.constant 0 : index
    %c40 = arith.constant 40 : index
    %547 = vector.load %arg19[%c0_455, %c0_456, %c0_457, %c40] : memref<1x8x8x48xf32, #tpu.memory_space<vmem>>, vector<1x8x8x8xf32>
    tpu.vector_store %arg19[%c0_455, %c0_456, %c0_457, %c40], %546 {strides = array<i32>} : memref<1x8x8x48xf32, #tpu.memory_space<vmem>>, vector<1x8x8x8xf32>,
    return
  }
  func.func @transform_0(%arg0: i32) -> (i32, i32, i32, i32) {
    %c0_i32 = arith.constant 0 : i32
    %c0_i32_0 = arith.constant 0 : i32
    %c0_i32_1 = arith.constant 0 : i32
    %c0_i32_2 = arith.constant 0 : i32
    return %arg0, %c0_i32, %c0_i32_0, %c0_i32_1 : i32, i32, i32, i32
  }
  func.func @transform_1(%arg0: i32) -> (i32, i32, i32, i32) {
    %c0_i32 = arith.constant 0 : i32
    %c0_i32_0 = arith.constant 0 : i32
    %c0_i32_1 = arith.constant 0 : i32
    %c0_i32_2 = arith.constant 0 : i32
    return %arg0, %c0_i32, %c0_i32_0, %c0_i32_1 : i32, i32, i32, i32
  }
  func.func @transform_2(%arg0: i32) -> (i32, i32, i32, i32) {
    %c0_i32 = arith.constant 0 : i32
    %c0_i32_0 = arith.constant 0 : i32
    %c0_i32_1 = arith.constant 0 : i32
    %c0_i32_2 = arith.constant 0 : i32
    %c0_i32_3 = arith.constant 0 : i32
    return %c0_i32, %c0_i32_0, %c0_i32_1, %c0_i32_2 : i32, i32, i32, i32
  }
  func.func @transform_3(%arg0: i32) -> (i32, i32) {
    %c0_i32 = arith.constant 0 : i32
    %c0_i32_0 = arith.constant 0 : i32
    %c0_i32_1 = arith.constant 0 : i32
    return %c0_i32, %c0_i32_0 : i32, i32
  }
  func.func @transform_4(%arg0: i32) -> (i32, i32) {
    %c0_i32 = arith.constant 0 : i32
    %c0_i32_0 = arith.constant 0 : i32
    %c0_i32_1 = arith.constant 0 : i32
    return %c0_i32, %c0_i32_0 : i32, i32
  }
  func.func @transform_5(%arg0: i32) -> (i32, i32) {
    %c0_i32 = arith.constant 0 : i32
    %c0_i32_0 = arith.constant 0 : i32
    %c0_i32_1 = arith.constant 0 : i32
    return %c0_i32, %c0_i32_0 : i32, i32
  }
  func.func @transform_6(%arg0: i32) -> (i32, i32) {
    %c0_i32 = arith.constant 0 : i32
    %c0_i32_0 = arith.constant 0 : i32
    %c0_i32_1 = arith.constant 0 : i32
    return %c0_i32, %c0_i32_0 : i32, i32
  }
  func.func @transform_7(%arg0: i32) -> (i32, i32) {
    %c0_i32 = arith.constant 0 : i32
    %c0_i32_0 = arith.constant 0 : i32
    %c0_i32_1 = arith.constant 0 : i32
    return %c0_i32, %c0_i32_0 : i32, i32
  }
  func.func @transform_8(%arg0: i32) -> (i32, i32) {
    %c0_i32 = arith.constant 0 : i32
    %c0_i32_0 = arith.constant 0 : i32
    %c0_i32_1 = arith.constant 0 : i32
    return %c0_i32, %c0_i32_0 : i32, i32
  }
  func.func @transform_9(%arg0: i32) -> (i32, i32) {
    %c0_i32 = arith.constant 0 : i32
    %c0_i32_0 = arith.constant 0 : i32
    %c0_i32_1 = arith.constant 0 : i32
    return %c0_i32, %c0_i32_0 : i32, i32
  }
  func.func @transform_10(%arg0: i32) -> (i32, i32) {
    %c0_i32 = arith.constant 0 : i32
    %c0_i32_0 = arith.constant 0 : i32
    %c0_i32_1 = arith.constant 0 : i32
    return %c0_i32, %c0_i32_0 : i32, i32
  }
  func.func @transform_11(%arg0: i32) -> (i32, i32) {
    %c0_i32 = arith.constant 0 : i32
    %c0_i32_0 = arith.constant 0 : i32
    %c0_i32_1 = arith.constant 0 : i32
    return %c0_i32, %c0_i32_0 : i32, i32
  }
  func.func @transform_12(%arg0: i32) -> (i32, i32) {
    %c0_i32 = arith.constant 0 : i32
    %c0_i32_0 = arith.constant 0 : i32
    %c0_i32_1 = arith.constant 0 : i32
    return %c0_i32, %c0_i32_0 : i32, i32
  }
  func.func @transform_13(%arg0: i32) -> (i32, i32) {
    %c0_i32 = arith.constant 0 : i32
    %c0_i32_0 = arith.constant 0 : i32
    %c0_i32_1 = arith.constant 0 : i32
    return %c0_i32, %c0_i32_0 : i32, i32
  }
  func.func @transform_14(%arg0: i32) -> (i32, i32) {
    %c0_i32 = arith.constant 0 : i32
    %c0_i32_0 = arith.constant 0 : i32
    %c0_i32_1 = arith.constant 0 : i32
    return %c0_i32, %c0_i32_0 : i32, i32
  }
  func.func @transform_15(%arg0: i32) -> (i32, i32) {
    %c0_i32 = arith.constant 0 : i32
    %c0_i32_0 = arith.constant 0 : i32
    %c0_i32_1 = arith.constant 0 : i32
    return %c0_i32, %c0_i32_0 : i32, i32
  }
  func.func @transform_16(%arg0: i32) -> (i32, i32) {
    %c0_i32 = arith.constant 0 : i32
    %c0_i32_0 = arith.constant 0 : i32
    %c0_i32_1 = arith.constant 0 : i32
    return %c0_i32, %c0_i32_0 : i32, i32
  }
  func.func @transform_17(%arg0: i32) -> (i32, i32) {
    %c0_i32 = arith.constant 0 : i32
    %c0_i32_0 = arith.constant 0 : i32
    %c0_i32_1 = arith.constant 0 : i32
    return %c0_i32, %c0_i32_0 : i32, i32
  }
  func.func @transform_18(%arg0: i32) -> (i32, i32, i32, i32) {
    %c0_i32 = arith.constant 0 : i32
    %c0_i32_0 = arith.constant 0 : i32
    %c0_i32_1 = arith.constant 0 : i32
    %c0_i32_2 = arith.constant 0 : i32
    return %arg0, %c0_i32, %c0_i32_0, %c0_i32_1 : i32, i32, i32, i32
  }
}

</mosaic_0001>

<llo_original>
// kernel: first_cell_forward.1
$region0: #{first_cell_forward.1}
  #allocation0 [shape = 'u32[]', space=smem, size = 0x4, offset = 0x4, fixed_abs, tag = 'smem constant byte address 0x4 - core index']
  #allocation1 [shape = 'u32[144,128]{1,0:T(1,128)}', space=vmem, size = 0x12000, scoped, tag = 'internal scratch']
  #allocation2 [shape = 'f32[1,12,12,16]{3,2,1,0:T(8,128)}', space=vmem, size = 0x18000, scoped, tag = 'scratch operand']
  #allocation3 [shape = 'f32[1,10,10,24]{3,2,1,0:T(8,128)}', space=vmem, size = 0x14000, scoped, tag = 'scratch operand']
  #allocation4 [shape = 'f32[1,10,10,16]{3,2,1,0:T(8,128)}', space=vmem, size = 0x14000, scoped, tag = 'scratch operand']
  %s0 = inlined_call_operand.vmem [shape: f32[2,8,8,12], index: 0, kind: input, shape index: {}]
  %s1 = inlined_call_operand.vmem [shape: f32[2,8,8,12], index: 1, kind: input, shape index: {}]
  %s2 = inlined_call_operand.vmem [shape: f32[1,8,8,1], index: 2, kind: input, shape index: {}]
  %s3 = inlined_call_operand.vmem [shape: bf16[12,40], index: 3, kind: input, shape index: {}]
  %s4 = inlined_call_operand.vmem [shape: bf16[12,40], index: 4, kind: input, shape index: {}]
  %s5 = inlined_call_operand.vmem [shape: f32[1,40], index: 5, kind: input, shape index: {}]
  %s6 = inlined_call_operand.vmem [shape: f32[25,16], index: 6, kind: input, shape index: {}]
  %s7 = inlined_call_operand.vmem [shape: bf16[16,16], index: 7, kind: input, shape index: {}]
  %s8 = inlined_call_operand.vmem [shape: f32[1,16], index: 8, kind: input, shape index: {}]
  %s9 = inlined_call_operand.vmem [shape: f32[9,24], index: 9, kind: input, shape index: {}]
  %s10 = inlined_call_operand.vmem [shape: bf16[24,24], index: 10, kind: input, shape index: {}]
  %s11 = inlined_call_operand.vmem [shape: f32[1,24], index: 11, kind: input, shape index: {}]
  %s12 = inlined_call_operand.vmem [shape: f32[25,16], index: 12, kind: input, shape index: {}]
  %s13 = inlined_call_operand.vmem [shape: bf16[16,16], index: 13, kind: input, shape index: {}]
  %s14 = inlined_call_operand.vmem [shape: f32[1,16], index: 14, kind: input, shape index: {}]
  %s15 = inlined_call_operand.vmem [shape: f32[9,24], index: 15, kind: input, shape index: {}]
  %s16 = inlined_call_operand.vmem [shape: bf16[24,24], index: 16, kind: input, shape index: {}]
  %s17 = inlined_call_operand.vmem [shape: f32[1,24], index: 17, kind: input, shape index: {}]
  %s18 = inlined_call_operand.hbm [shape: f32[2,8,8,48], index: 18, kind: output, shape index: {}]
  %s19 = sld [smem:[#allocation0]]
  $region105: #{first_cell_forward.1} parent=0
    _
  %s21 = ssub.s32 1, %s19
  %s22 = scalar_select 0, %s21, %s19
  $region1: #{first_cell_forward.1} parent=0
    #allocation5 [shape = 'u8[65536]{0}', space=vmem, size = 0x10000, scoped, tag = 'output window, operand 0']
    #allocation6 [shape = 's32[2]{0}', space=sflag, size = 0x8, scoped, tag = 'scoped memory for first_cell_forward.1']
    %23 = vsyncpa [#allocation6], 0
    %s24 = scalar_lea.sflag [#allocation6], 1
    %25 = vsyncpa %s24, 0
    loop: start=0, step=1, limit=4
    $region2: #{first_cell_forward.1} parent=1 // loop_pre_header
      _
    $region3: #{first_cell_forward.1} parent=1 // loop_header
      %s27 = sphi 0, %s31
      %p28 = scmp.ge.s32.totalorder %s27, 4
      %s37 = sphi 0, %s39
      %s40 = sphi 0, %s37
      %s41 = sphi 0, %s40
      %s57 = sphi 0, %s41
      %s63 = sphi 0, %s65
      %s66 = sphi 0, %s63
      %s67 = sphi 0, %s66
      %s83 = sphi 0, %s67
      %s87 = sphi 0, %s87
      %s89 = sphi 0, %s87
      %s90 = sphi 0, %s89
      %s104 = sphi 0, %s90
      %s108 = sphi 0, %s108
      %s110 = sphi 0, %s108
      %s111 = sphi 0, %s110
      %s125 = sphi 0, %s111
      %s129 = sphi 0, %s129
      %s131 = sphi 0, %s129
      %s132 = sphi 0, %s131
      %s146 = sphi 0, %s132
      %s150 = sphi 0, %s150
      %s152 = sphi 0, %s150
      %s153 = sphi 0, %s152
      %s167 = sphi 0, %s153
      %s171 = sphi 0, %s171
      %s173 = sphi 0, %s171
      %s174 = sphi 0, %s173
      %s188 = sphi 0, %s174
      %s192 = sphi 0, %s192
      %s194 = sphi 0, %s192
      %s195 = sphi 0, %s194
      %s209 = sphi 0, %s195
      %s213 = sphi 0, %s213
      %s215 = sphi 0, %s213
      %s216 = sphi 0, %s215
      %s230 = sphi 0, %s216
      %s234 = sphi 0, %s234
      %s236 = sphi 0, %s234
      %s237 = sphi 0, %s236
      %s251 = sphi 0, %s237
      %s255 = sphi 0, %s255
      %s257 = sphi 0, %s255
      %s258 = sphi 0, %s257
      %s272 = sphi 0, %s258
      %s276 = sphi 0, %s276
      %s278 = sphi 0, %s276
      %s279 = sphi 0, %s278
      %s293 = sphi 0, %s279
      %s297 = sphi 0, %s297
      %s299 = sphi 0, %s297
      %s300 = sphi 0, %s299
      %s314 = sphi 0, %s300
      %s318 = sphi 0, %s318
      %s320 = sphi 0, %s318
      %s321 = sphi 0, %s320
      %s335 = sphi 0, %s321
      %s339 = sphi 0, %s339
      %s341 = sphi 0, %s339
      %s342 = sphi 0, %s341
      %s356 = sphi 0, %s342
      %s360 = sphi 0, %s360
      %s362 = sphi 0, %s360
      %s363 = sphi 0, %s362
      %s377 = sphi 0, %s363
      %s381 = sphi 0, %s381
      %s383 = sphi 0, %s381
      %s384 = sphi 0, %s383
      %s398 = sphi 0, %s384
      %s402 = sphi 0, %s402
      %s404 = sphi 0, %s402
      %s405 = sphi 0, %s404
      %s419 = sphi 0, %s405
      %s425 = sphi 0, %s427
      %s428 = sphi 0, %s425
      %s429 = sphi 0, %s428
      %s445 = sphi 0, %s429
    $region4: #{first_cell_forward.1} parent=1 // loop_header_branch
      %30 = sbr.rel (%p28) target = $region8
    $region5: #{first_cell_forward.1} parent=1 // loop_body
      %s32 = ssub.s32 %s27, 1
      %s33 = ssub.s32 %s27, 2
      %s34 = sadd.s32 %s27, 1
      %s35 = ssub.s32 %s27, %s34
      %p36 = scmp.eq.s32.totalorder %s35, 0
      %s38 = sadd.s32 %s37, 1
      %s39 = scalar_select %p36, %s37, %s38
      %p42 = pneg %p36
      %p43 = scmp.eq.s32.totalorder %s27, 1
      %p44 = por %p42, %p43
      %p45 = scmp.ne.s32.totalorder %s37, %s40
      %p46 = scmp.eq.s32.totalorder %s27, 0
      %p47 = por %p45, %p46
      %p48 = scmp.ne.s32.totalorder %s37, %s40
      %p49 = scmp.eq.s32.totalorder %s32, 1
      %p50 = por %p48, %p49
      %p51 = scmp.ne.s32.totalorder %s40, %s41
      %p52 = scmp.eq.s32.totalorder %s32, 0
      %p53 = por %p51, %p52
      %p54 = scmp.ne.s32.totalorder %s40, %s41
      %p55 = scmp.eq.s32.totalorder %s33, 1
      %p56 = por %p54, %p55
      %p58 = scmp.ne.s32.totalorder %s41, %s57
      %p59 = scmp.eq.s32.totalorder %s33, 0
      %p60 = por %p58, %p59
      %s61 = ssub.s32 %s27, %s34
      %p62 = scmp.eq.s32.totalorder %s61, 0
      %s64 = sadd.s32 %s63, 1
      %s65 = scalar_select %p62, %s63, %s64
      %p68 = pneg %p62
      %p69 = scmp.eq.s32.totalorder %s27, 1
      %p70 = por %p68, %p69
      %p71 = scmp.ne.s32.totalorder %s63, %s66
      %p72 = scmp.eq.s32.totalorder %s27, 0
      %p73 = por %p71, %p72
      %p74 = scmp.ne.s32.totalorder %s63, %s66
      %p75 = scmp.eq.s32.totalorder %s32, 1
      %p76 = por %p74, %p75
      %p77 = scmp.ne.s32.totalorder %s66, %s67
      %p78 = scmp.eq.s32.totalorder %s32, 0
      %p79 = por %p77, %p78
      %p80 = scmp.ne.s32.totalorder %s66, %s67
      %p81 = scmp.eq.s32.totalorder %s33, 1
      %p82 = por %p80, %p81
      %p84 = scmp.ne.s32.totalorder %s67, %s83
      %p85 = scmp.eq.s32.totalorder %s33, 0
      %p86 = por %p84, %p85
      %s88 = sadd.s32 %s87, 1
      %p91 = scmp.eq.s32.totalorder %s27, 1
      %p92 = scmp.ne.s32.totalorder %s87, %s89
      %p93 = scmp.eq.s32.totalorder %s27, 0
      %p94 = por %p92, %p93
      %p95 = scmp.ne.s32.totalorder %s87, %s89
      %p96 = scmp.eq.s32.totalorder %s32, 1
      %p97 = por %p95, %p96
      %p98 = scmp.ne.s32.totalorder %s89, %s90
      %p99 = scmp.eq.s32.totalorder %s32, 0
      %p100 = por %p98, %p99
      %p101 = scmp.ne.s32.totalorder %s89, %s90
      %p102 = scmp.eq.s32.totalorder %s33, 1
      %p103 = por %p101, %p102
      %p105 = scmp.ne.s32.totalorder %s90, %s104
      %p106 = scmp.eq.s32.totalorder %s33, 0
      %p107 = por %p105, %p106
      %s109 = sadd.s32 %s108, 1
      %p112 = scmp.eq.s32.totalorder %s27, 1
      %p113 = scmp.ne.s32.totalorder %s108, %s110
      %p114 = scmp.eq.s32.totalorder %s27, 0
      %p115 = por %p113, %p114
      %p116 = scmp.ne.s32.totalorder %s108, %s110
      %p117 = scmp.eq.s32.totalorder %s32, 1
      %p118 = por %p116, %p117
      %p119 = scmp.ne.s32.totalorder %s110, %s111
      %p120 = scmp.eq.s32.totalorder %s32, 0
      %p121 = por %p119, %p120
      %p122 = scmp.ne.s32.totalorder %s110, %s111
      %p123 = scmp.eq.s32.totalorder %s33, 1
      %p124 = por %p122, %p123
      %p126 = scmp.ne.s32.totalorder %s111, %s125
      %p127 = scmp.eq.s32.totalorder %s33, 0
      %p128 = por %p126, %p127
      %s130 = sadd.s32 %s129, 1
      %p133 = scmp.eq.s32.totalorder %s27, 1
      %p134 = scmp.ne.s32.totalorder %s129, %s131
      %p135 = scmp.eq.s32.totalorder %s27, 0
      %p136 = por %p134, %p135
      %p137 = scmp.ne.s32.totalorder %s129, %s131
      %p138 = scmp.eq.s32.totalorder %s32, 1
      %p139 = por %p137, %p138
      %p140 = scmp.ne.s32.totalorder %s131, %s132
      %p141 = scmp.eq.s32.totalorder %s32, 0
      %p142 = por %p140, %p141
      %p143 = scmp.ne.s32.totalorder %s131, %s132
      %p144 = scmp.eq.s32.totalorder %s33, 1
      %p145 = por %p143, %p144
      %p147 = scmp.ne.s32.totalorder %s132, %s146
      %p148 = scmp.eq.s32.totalorder %s33, 0
      %p149 = por %p147, %p148
      %s151 = sadd.s32 %s150, 1
      %p154 = scmp.eq.s32.totalorder %s27, 1
      %p155 = scmp.ne.s32.totalorder %s150, %s152
      %p156 = scmp.eq.s32.totalorder %s27, 0
      %p157 = por %p155, %p156
      %p158 = scmp.ne.s32.totalorder %s150, %s152
      %p159 = scmp.eq.s32.totalorder %s32, 1
      %p160 = por %p158, %p159
      %p161 = scmp.ne.s32.totalorder %s152, %s153
      %p162 = scmp.eq.s32.totalorder %s32, 0
      %p163 = por %p161, %p162
      %p164 = scmp.ne.s32.totalorder %s152, %s153
      %p165 = scmp.eq.s32.totalorder %s33, 1
      %p166 = por %p164, %p165
      %p168 = scmp.ne.s32.totalorder %s153, %s167
      %p169 = scmp.eq.s32.totalorder %s33, 0
      %p170 = por %p168, %p169
      %s172 = sadd.s32 %s171, 1
      %p175 = scmp.eq.s32.totalorder %s27, 1
      %p176 = scmp.ne.s32.totalorder %s171, %s173
      %p177 = scmp.eq.s32.totalorder %s27, 0
      %p178 = por %p176, %p177
      %p179 = scmp.ne.s32.totalorder %s171, %s173
      %p180 = scmp.eq.s32.totalorder %s32, 1
      %p181 = por %p179, %p180
      %p182 = scmp.ne.s32.totalorder %s173, %s174
      %p183 = scmp.eq.s32.totalorder %s32, 0
      %p184 = por %p182, %p183
      %p185 = scmp.ne.s32.totalorder %s173, %s174
      %p186 = scmp.eq.s32.totalorder %s33, 1
      %p187 = por %p185, %p186
      %p189 = scmp.ne.s32.totalorder %s174, %s188
      %p190 = scmp.eq.s32.totalorder %s33, 0
      %p191 = por %p189, %p190
      %s193 = sadd.s32 %s192, 1
      %p196 = scmp.eq.s32.totalorder %s27, 1
      %p197 = scmp.ne.s32.totalorder %s192, %s194
      %p198 = scmp.eq.s32.totalorder %s27, 0
      %p199 = por %p197, %p198
      %p200 = scmp.ne.s32.totalorder %s192, %s194
      %p201 = scmp.eq.s32.totalorder %s32, 1
      %p202 = por %p200, %p201
      %p203 = scmp.ne.s32.totalorder %s194, %s195
      %p204 = scmp.eq.s32.totalorder %s32, 0
      %p205 = por %p203, %p204
      %p206 = scmp.ne.s32.totalorder %s194, %s195
      %p207 = scmp.eq.s32.totalorder %s33, 1
      %p208 = por %p206, %p207
      %p210 = scmp.ne.s32.totalorder %s195, %s209
      %p211 = scmp.eq.s32.totalorder %s33, 0
      %p212 = por %p210, %p211
      %s214 = sadd.s32 %s213, 1
      %p217 = scmp.eq.s32.totalorder %s27, 1
      %p218 = scmp.ne.s32.totalorder %s213, %s215
      %p219 = scmp.eq.s32.totalorder %s27, 0
      %p220 = por %p218, %p219
      %p221 = scmp.ne.s32.totalorder %s213, %s215
      %p222 = scmp.eq.s32.totalorder %s32, 1
      %p223 = por %p221, %p222
      %p224 = scmp.ne.s32.totalorder %s215, %s216
      %p225 = scmp.eq.s32.totalorder %s32, 0
      %p226 = por %p224, %p225
      %p227 = scmp.ne.s32.totalorder %s215, %s216
      %p228 = scmp.eq.s32.totalorder %s33, 1
      %p229 = por %p227, %p228
      %p231 = scmp.ne.s32.totalorder %s216, %s230
      %p232 = scmp.eq.s32.totalorder %s33, 0
      %p233 = por %p231, %p232
      %s235 = sadd.s32 %s234, 1
      %p238 = scmp.eq.s32.totalorder %s27, 1
      %p239 = scmp.ne.s32.totalorder %s234, %s236
      %p240 = scmp.eq.s32.totalorder %s27, 0
      %p241 = por %p239, %p240
      %p242 = scmp.ne.s32.totalorder %s234, %s236
      %p243 = scmp.eq.s32.totalorder %s32, 1
      %p244 = por %p242, %p243
      %p245 = scmp.ne.s32.totalorder %s236, %s237
      %p246 = scmp.eq.s32.totalorder %s32, 0
      %p247 = por %p245, %p246
      %p248 = scmp.ne.s32.totalorder %s236, %s237
      %p249 = scmp.eq.s32.totalorder %s33, 1
      %p250 = por %p248, %p249
      %p252 = scmp.ne.s32.totalorder %s237, %s251
      %p253 = scmp.eq.s32.totalorder %s33, 0
      %p254 = por %p252, %p253
      %s256 = sadd.s32 %s255, 1
      %p259 = scmp.eq.s32.totalorder %s27, 1
      %p260 = scmp.ne.s32.totalorder %s255, %s257
      %p261 = scmp.eq.s32.totalorder %s27, 0
      %p262 = por %p260, %p261
      %p263 = scmp.ne.s32.totalorder %s255, %s257
      %p264 = scmp.eq.s32.totalorder %s32, 1
      %p265 = por %p263, %p264
      %p266 = scmp.ne.s32.totalorder %s257, %s258
      %p267 = scmp.eq.s32.totalorder %s32, 0
      %p268 = por %p266, %p267
      %p269 = scmp.ne.s32.totalorder %s257, %s258
      %p270 = scmp.eq.s32.totalorder %s33, 1
      %p271 = por %p269, %p270
      %p273 = scmp.ne.s32.totalorder %s258, %s272
      %p274 = scmp.eq.s32.totalorder %s33, 0
      %p275 = por %p273, %p274
      %s277 = sadd.s32 %s276, 1
      %p280 = scmp.eq.s32.totalorder %s27, 1
      %p281 = scmp.ne.s32.totalorder %s276, %s278
      %p282 = scmp.eq.s32.totalorder %s27, 0
      %p283 = por %p281, %p282
      %p284 = scmp.ne.s32.totalorder %s276, %s278
      %p285 = scmp.eq.s32.totalorder %s32, 1
      %p286 = por %p284, %p285
      %p287 = scmp.ne.s32.totalorder %s278, %s279
      %p288 = scmp.eq.s32.totalorder %s32, 0
      %p289 = por %p287, %p288
      %p290 = scmp.ne.s32.totalorder %s278, %s279
      %p291 = scmp.eq.s32.totalorder %s33, 1
      %p292 = por %p290, %p291
      %p294 = scmp.ne.s32.totalorder %s279, %s293
      %p295 = scmp.eq.s32.totalorder %s33, 0
      %p296 = por %p294, %p295
      %s298 = sadd.s32 %s297, 1
      %p301 = scmp.eq.s32.totalorder %s27, 1
      %p302 = scmp.ne.s32.totalorder %s297, %s299
      %p303 = scmp.eq.s32.totalorder %s27, 0
      %p304 = por %p302, %p303
      %p305 = scmp.ne.s32.totalorder %s297, %s299
      %p306 = scmp.eq.s32.totalorder %s32, 1
      %p307 = por %p305, %p306
      %p308 = scmp.ne.s32.totalorder %s299, %s300
      %p309 = scmp.eq.s32.totalorder %s32, 0
      %p310 = por %p308, %p309
      %p311 = scmp.ne.s32.totalorder %s299, %s300
      %p312 = scmp.eq.s32.totalorder %s33, 1
      %p313 = por %p311, %p312
      %p315 = scmp.ne.s32.totalorder %s300, %s314
      %p316 = scmp.eq.s32.totalorder %s33, 0
      %p317 = por %p315, %p316
      %s319 = sadd.s32 %s318, 1
      %p322 = scmp.eq.s32.totalorder %s27, 1
      %p323 = scmp.ne.s32.totalorder %s318, %s320
      %p324 = scmp.eq.s32.totalorder %s27, 0
      %p325 = por %p323, %p324
      %p326 = scmp.ne.s32.totalorder %s318, %s320
      %p327 = scmp.eq.s32.totalorder %s32, 1
      %p328 = por %p326, %p327
      %p329 = scmp.ne.s32.totalorder %s320, %s321
      %p330 = scmp.eq.s32.totalorder %s32, 0
      %p331 = por %p329, %p330
      %p332 = scmp.ne.s32.totalorder %s320, %s321
      %p333 = scmp.eq.s32.totalorder %s33, 1
      %p334 = por %p332, %p333
      %p336 = scmp.ne.s32.totalorder %s321, %s335
      %p337 = scmp.eq.s32.totalorder %s33, 0
      %p338 = por %p336, %p337
      %s340 = sadd.s32 %s339, 1
      %p343 = scmp.eq.s32.totalorder %s27, 1
      %p344 = scmp.ne.s32.totalorder %s339, %s341
      %p345 = scmp.eq.s32.totalorder %s27, 0
      %p346 = por %p344, %p345
      %p347 = scmp.ne.s32.totalorder %s339, %s341
      %p348 = scmp.eq.s32.totalorder %s32, 1
      %p349 = por %p347, %p348
      %p350 = scmp.ne.s32.totalorder %s341, %s342
      %p351 = scmp.eq.s32.totalorder %s32, 0
      %p352 = por %p350, %p351
      %p353 = scmp.ne.s32.totalorder %s341, %s342
      %p354 = scmp.eq.s32.totalorder %s33, 1
      %p355 = por %p353, %p354
      %p357 = scmp.ne.s32.totalorder %s342, %s356
      %p358 = scmp.eq.s32.totalorder %s33, 0
      %p359 = por %p357, %p358
      %s361 = sadd.s32 %s360, 1
      %p364 = scmp.eq.s32.totalorder %s27, 1
      %p365 = scmp.ne.s32.totalorder %s360, %s362
      %p366 = scmp.eq.s32.totalorder %s27, 0
      %p367 = por %p365, %p366
      %p368 = scmp.ne.s32.totalorder %s360, %s362
      %p369 = scmp.eq.s32.totalorder %s32, 1
      %p370 = por %p368, %p369
      %p371 = scmp.ne.s32.totalorder %s362, %s363
      %p372 = scmp.eq.s32.totalorder %s32, 0
      %p373 = por %p371, %p372
      %p374 = scmp.ne.s32.totalorder %s362, %s363
      %p375 = scmp.eq.s32.totalorder %s33, 1
      %p376 = por %p374, %p375
      %p378 = scmp.ne.s32.totalorder %s363, %s377
      %p379 = scmp.eq.s32.totalorder %s33, 0
      %p380 = por %p378, %p379
      %s382 = sadd.s32 %s381, 1
      %p385 = scmp.eq.s32.totalorder %s27, 1
      %p386 = scmp.ne.s32.totalorder %s381, %s383
      %p387 = scmp.eq.s32.totalorder %s27, 0
      %p388 = por %p386, %p387
      %p389 = scmp.ne.s32.totalorder %s381, %s383
      %p390 = scmp.eq.s32.totalorder %s32, 1
      %p391 = por %p389, %p390
      %p392 = scmp.ne.s32.totalorder %s383, %s384
      %p393 = scmp.eq.s32.totalorder %s32, 0
      %p394 = por %p392, %p393
      %p395 = scmp.ne.s32.totalorder %s383, %s384
      %p396 = scmp.eq.s32.totalorder %s33, 1
      %p397 = por %p395, %p396
      %p399 = scmp.ne.s32.totalorder %s384, %s398
      %p400 = scmp.eq.s32.totalorder %s33, 0
      %p401 = por %p399, %p400
      %s403 = sadd.s32 %s402, 1
      %p406 = scmp.eq.s32.totalorder %s27, 1
      %p407 = scmp.ne.s32.totalorder %s402, %s404
      %p408 = scmp.eq.s32.totalorder %s27, 0
      %p409 = por %p407, %p408
      %p410 = scmp.ne.s32.totalorder %s402, %s404
      %p411 = scmp.eq.s32.totalorder %s32, 1
      %p412 = por %p410, %p411
      %p413 = scmp.ne.s32.totalorder %s404, %s405
      %p414 = scmp.eq.s32.totalorder %s32, 0
      %p415 = por %p413, %p414
      %p416 = scmp.ne.s32.totalorder %s404, %s405
      %p417 = scmp.eq.s32.totalorder %s33, 1
      %p418 = por %p416, %p417
      %p420 = scmp.ne.s32.totalorder %s405, %s419
      %p421 = scmp.eq.s32.totalorder %s33, 0
      %p422 = por %p420, %p421
      %s423 = ssub.s32 %s27, %s34
      %p424 = scmp.eq.s32.totalorder %s423, 0
      %s426 = sadd.s32 %s425, 1
      %s427 = scalar_select %p424, %s425, %s426
      %p430 = pneg %p424
      %p431 = scmp.eq.s32.totalorder %s27, 1
      %p432 = por %p430, %p431
      %p433 = scmp.ne.s32.totalorder %s425, %s428
      %p434 = scmp.eq.s32.totalorder %s27, 0
      %p435 = por %p433, %p434
      %p436 = scmp.ne.s32.totalorder %s425, %s428
      %p437 = scmp.eq.s32.totalorder %s32, 1
      %p438 = por %p436, %p437
      %p439 = scmp.ne.s32.totalorder %s428, %s429
      %p440 = scmp.eq.s32.totalorder %s32, 0
      %p441 = por %p439, %p440
      %p442 = scmp.ne.s32.totalorder %s428, %s429
      %p443 = scmp.eq.s32.totalorder %s33, 1
      %p444 = por %p442, %p443
      %p446 = scmp.ne.s32.totalorder %s429, %s445
      %p447 = scmp.eq.s32.totalorder %s33, 0
      %p448 = por %p446, %p447
      %p449 = scmp.le.s32.totalorder 1, %s27
      %p450 = scmp.lt.s32.totalorder %s27, 3
      %p451 = pnand %p449, %p450
      %p452 = pneg %p451
      // Predicated region
      $region9: #{first_cell_forward.1} parent=5 // pred_check
        _
      $region10: #{first_cell_forward.1} parent=5 // pred_check_branch
        %454 = sbr.rel (%p451) target = $region12
      $region11: #{first_cell_forward.1} parent=5 // pred_region
        %s455 = ssub.s32 %s27, 1
        // Predicated region
        $region13: #{first_cell_forward.1} parent=11 // pred_check
          %p456 = pneg %p100
        $region14: #{first_cell_forward.1} parent=11 // pred_check_branch
          %458 = sbr.rel (%p456) target = $region16
        $region15: #{first_cell_forward.1} parent=11 // pred_region
          _
        $region16: #{first_cell_forward.1} parent=11 // pred_fallthru
          _
        // Predicated region
        $region17: #{first_cell_forward.1} parent=11 // pred_check
          %p459 = pneg %p121
        $region18: #{first_cell_forward.1} parent=11 // pred_check_branch
          %461 = sbr.rel (%p459) target = $region20
        $region19: #{first_cell_forward.1} parent=11 // pred_region
          _
        $region20: #{first_cell_forward.1} parent=11 // pred_fallthru
          _
        // Predicated region
        $region21: #{first_cell_forward.1} parent=11 // pred_check
          %p462 = pneg %p142
        $region22: #{first_cell_forward.1} parent=11 // pred_check_branch
          %464 = sbr.rel (%p462) target = $region24
        $region23: #{first_cell_forward.1} parent=11 // pred_region
          _
        $region24: #{first_cell_forward.1} parent=11 // pred_fallthru
          _
        // Predicated region
        $region25: #{first_cell_forward.1} parent=11 // pred_check
          %p465 = pneg %p163
        $region26: #{first_cell_forward.1} parent=11 // pred_check_branch
          %467 = sbr.rel (%p465) target = $region28
        $region27: #{first_cell_forward.1} parent=11 // pred_region
          _
        $region28: #{first_cell_forward.1} parent=11 // pred_fallthru
          _
        // Predicated region
        $region29: #{first_cell_forward.1} parent=11 // pred_check
          %p468 = pneg %p184
        $region30: #{first_cell_forward.1} parent=11 // pred_check_branch
          %470 = sbr.rel (%p468) target = $region32
        $region31: #{first_cell_forward.1} parent=11 // pred_region
          _
        $region32: #{first_cell_forward.1} parent=11 // pred_fallthru
          _
        // Predicated region
        $region33: #{first_cell_forward.1} parent=11 // pred_check
          %p471 = pneg %p205
        $region34: #{first_cell_forward.1} parent=11 // pred_check_branch
          %473 = sbr.rel (%p471) target = $region36
        $region35: #{first_cell_forward.1} parent=11 // pred_region
          _
        $region36: #{first_cell_forward.1} parent=11 // pred_fallthru
          _
        // Predicated region
        $region37: #{first_cell_forward.1} parent=11 // pred_check
          %p474 = pneg %p226
        $region38: #{first_cell_forward.1} parent=11 // pred_check_branch
          %476 = sbr.rel (%p474) target = $region40
        $region39: #{first_cell_forward.1} parent=11 // pred_region
          _
        $region40: #{first_cell_forward.1} parent=11 // pred_fallthru
          _
        // Predicated region
        $region41: #{first_cell_forward.1} parent=11 // pred_check
          %p477 = pneg %p247
        $region42: #{first_cell_forward.1} parent=11 // pred_check_branch
          %479 = sbr.rel (%p477) target = $region44
        $region43: #{first_cell_forward.1} parent=11 // pred_region
          _
        $region44: #{first_cell_forward.1} parent=11 // pred_fallthru
          _
        // Predicated region
        $region45: #{first_cell_forward.1} parent=11 // pred_check
          %p480 = pneg %p268
        $region46: #{first_cell_forward.1} parent=11 // pred_check_branch
          %482 = sbr.rel (%p480) target = $region48
        $region47: #{first_cell_forward.1} parent=11 // pred_region
          _
        $region48: #{first_cell_forward.1} parent=11 // pred_fallthru
          _
        // Predicated region
        $region49: #{first_cell_forward.1} parent=11 // pred_check
          %p483 = pneg %p289
        $region50: #{first_cell_forward.1} parent=11 // pred_check_branch
          %485 = sbr.rel (%p483) target = $region52
        $region51: #{first_cell_forward.1} parent=11 // pred_region
          _
        $region52: #{first_cell_forward.1} parent=11 // pred_fallthru
          _
        // Predicated region
        $region53: #{first_cell_forward.1} parent=11 // pred_check
          %p486 = pneg %p310
        $region54: #{first_cell_forward.1} parent=11 // pred_check_branch
          %488 = sbr.rel (%p486) target = $region56
        $region55: #{first_cell_forward.1} parent=11 // pred_region
          _
        $region56: #{first_cell_forward.1} parent=11 // pred_fallthru
          _
        // Predicated region
        $region57: #{first_cell_forward.1} parent=11 // pred_check
          %p489 = pneg %p331
        $region58: #{first_cell_forward.1} parent=11 // pred_check_branch
          %491 = sbr.rel (%p489) target = $region60
        $region59: #{first_cell_forward.1} parent=11 // pred_region
          _
        $region60: #{first_cell_forward.1} parent=11 // pred_fallthru
          _
        // Predicated region
        $region61: #{first_cell_forward.1} parent=11 // pred_check
          %p492 = pneg %p352
        $region62: #{first_cell_forward.1} parent=11 // pred_check_branch
          %494 = sbr.rel (%p492) target = $region64
        $region63: #{first_cell_forward.1} parent=11 // pred_region
          _
        $region64: #{first_cell_forward.1} parent=11 // pred_fallthru
          _
        // Predicated region
        $region65: #{first_cell_forward.1} parent=11 // pred_check
          %p495 = pneg %p373
        $region66: #{first_cell_forward.1} parent=11 // pred_check_branch
          %497 = sbr.rel (%p495) target = $region68
        $region67: #{first_cell_forward.1} parent=11 // pred_region
          _
        $region68: #{first_cell_forward.1} parent=11 // pred_fallthru
          _
        // Predicated region
        $region69: #{first_cell_forward.1} parent=11 // pred_check
          %p498 = pneg %p394
        $region70: #{first_cell_forward.1} parent=11 // pred_check_branch
          %500 = sbr.rel (%p498) target = $region72
        $region71: #{first_cell_forward.1} parent=11 // pred_region
          _
        $region72: #{first_cell_forward.1} parent=11 // pred_fallthru
          _
        // Predicated region
        $region73: #{first_cell_forward.1} parent=11 // pred_check
          %p501 = pneg %p415
        $region74: #{first_cell_forward.1} parent=11 // pred_check_branch
          %503 = sbr.rel (%p501) target = $region76
        $region75: #{first_cell_forward.1} parent=11 // pred_region
          _
        $region76: #{first_cell_forward.1} parent=11 // pred_fallthru
          _
      $region12: #{first_cell_forward.1} parent=5 // pred_fallthru
        _
      %p504 = scmp.lt.s32.totalorder %s27, 2
      // Predicated region
      $region77: #{first_cell_forward.1} parent=5 // pred_check
        %p505 = pneg %p504
      $region78: #{first_cell_forward.1} parent=5 // pred_check_branch
        %507 = sbr.rel (%p505) target = $region80
      $region79: #{first_cell_forward.1} parent=5 // pred_region
        // Predicated region
        $region81: #{first_cell_forward.1} parent=79 // pred_check
          %p508 = pneg %p47
        $region82: #{first_cell_forward.1} parent=79 // pred_check_branch
          %510 = sbr.rel (%p508) target = $region84
        $region83: #{first_cell_forward.1} parent=79 // pred_region
          %p511 = scmp.lt.s32.totalorder %s27, 1
          %s512 = scalar_select %p511, %s27, 1
          %s513 = smul.addr %s512, 8
          %s514 = smul.addr %s513, 8
          %s515 = scalar_lea.vmem %s0, %s514
        $region84: #{first_cell_forward.1} parent=79 // pred_fallthru
          _
        // Predicated region
        $region85: #{first_cell_forward.1} parent=79 // pred_check
          %p516 = pneg %p73
        $region86: #{first_cell_forward.1} parent=79 // pred_check_branch
          %518 = sbr.rel (%p516) target = $region88
        $region87: #{first_cell_forward.1} parent=79 // pred_region
          %p519 = scmp.lt.s32.totalorder %s27, 1
          %s520 = scalar_select %p519, %s27, 1
          %s521 = smul.addr %s520, 8
          %s522 = smul.addr %s521, 8
          %s523 = scalar_lea.vmem %s1, %s522
        $region88: #{first_cell_forward.1} parent=79 // pred_fallthru
          _
      $region80: #{first_cell_forward.1} parent=5 // pred_fallthru
        _
      %p524 = scmp.le.s32.totalorder 1, %s27
      %p525 = scmp.lt.s32.totalorder %s27, 3
      %p526 = pnand %p524, %p525
      %p527 = pneg %p526
      // Predicated region
      $region89: #{first_cell_forward.1} parent=5 // pred_check
        _
      $region90: #{first_cell_forward.1} parent=5 // pred_check_branch
        %529 = sbr.rel (%p526) target = $region92
      $region91: #{first_cell_forward.1} parent=5 // pred_region
        %s530 = ssub.s32 %s27, 1
        %p531 = scmp.lt.s32.totalorder %s32, 1
        %s532 = scalar_select %p531, %s32, 1
        %s533 = smul.addr %s532, 8
        %s534 = smul.addr %s533, 8
        %s535 = scalar_lea.vmem %s0, %s534
        %p536 = pneg %p53
        %p537 = pneg %p50
        %p538 = scmp.lt.s32.totalorder %s32, 1
        %s539 = scalar_select %p538, %s32, 1
        %s540 = smul.addr %s539, 8
        %s541 = smul.addr %s540, 8
        %s542 = scalar_lea.vmem %s1, %s541
        %p543 = pneg %p79
        %p544 = pneg %p76
        %p545 = pneg %p100
        %p546 = pneg %p97
        %p547 = pneg %p121
        %p548 = pneg %p118
        %p549 = pneg %p142
        %p550 = pneg %p139
        %p551 = pneg %p163
        %p552 = pneg %p160
        %p553 = pneg %p184
        %p554 = pneg %p181
        %p555 = pneg %p205
        %p556 = pneg %p202
        %p557 = pneg %p226
        %p558 = pneg %p223
        %p559 = pneg %p247
        %p560 = pneg %p244
        %p561 = pneg %p268
        %p562 = pneg %p265
        %p563 = pneg %p289
        %p564 = pneg %p286
        %p565 = pneg %p310
        %p566 = pneg %p307
        %p567 = pneg %p331
        %p568 = pneg %p328
        %p569 = pneg %p352
        %p570 = pneg %p349
        %p571 = pneg %p373
        %p572 = pneg %p370
        %p573 = pneg %p394
        %p574 = pneg %p391
        %p575 = pneg %p415
        %p576 = pneg %p412
        %p577 = pneg %p441
        %p578 = pneg %p438
        %s579 = sand.u32 %s428, 1
        %s580 = scalar_lea.sflag [#allocation6], %s579
        %s581 = sand.u32 %s428, 1
        %s582 = smul.addr %s581, 64
        %s583 = scalar_lea.vmem [#allocation5], %s582
        %p584 = scmp.lt.s32.totalorder %s32, 1
        %s585 = scalar_select %p584, %s32, 1
        %s586 = smul.addr %s585, 8
        %s587 = smul.addr %s586, 8
        %s588 = scalar_lea.vmem %s0, %s587
        %p589 = scmp.lt.s32.totalorder %s32, 1
        %s590 = scalar_select %p589, %s32, 1
        %s591 = smul.addr %s590, 8
        %s592 = smul.addr %s591, 8
        %s593 = scalar_lea.vmem %s1, %s592
        %vm595 = vcmask 130048
        %596 = vst.msk [vmem:[#allocation2] sm:$0xff] %vm595, 0.0
        %vm597 = vcmask 125952
        %598 = vst.msk [vmem:[#allocation2 + $0x8] sm:$0xf] %vm597, 0.0
        %599 = vst.msk [vmem:[#allocation2 + $0x10] sm:$0xff] %vm595, 0.0
        %600 = vst.msk [vmem:[#allocation2 + $0x18] sm:$0xf] %vm597, 0.0
        %s601 = scalar_lea.vmem [#allocation2], 160
        %602 = vst.msk [vmem:[%s601] sm:$0xff] %vm595, 0.0
        %603 = vst.msk [vmem:[%s601 + $0x8] sm:$0xf] %vm597, 0.0
        %604 = vst.msk [vmem:[%s601 + $0x10] sm:$0xff] %vm595, 0.0
        %605 = vst.msk [vmem:[%s601 + $0x18] sm:$0xf] %vm597, 0.0
        %s606 = scalar_lea.vmem [#allocation2], 32
        %vm607 = vcmask 123904
        %608 = vst.msk [vmem:[%s606] sm:$0x3] %vm607, 0.0
        %609 = vst.msk [vmem:[%s606 + $0x10] sm:$0x3] %vm607, 0.0
        %610 = vst.msk [vmem:[%s606 + $0x20] sm:$0x3] %vm607, 0.0
        %611 = vst.msk [vmem:[%s606 + $0x30] sm:$0x3] %vm607, 0.0
        %612 = vst.msk [vmem:[%s606 + $0x40] sm:$0x3] %vm607, 0.0
        %613 = vst.msk [vmem:[%s606 + $0x50] sm:$0x3] %vm607, 0.0
        %614 = vst.msk [vmem:[%s606 + $0x60] sm:$0x3] %vm607, 0.0
        %615 = vst.msk [vmem:[%s606 + $0x70] sm:$0x3] %vm607, 0.0
        %616 = vst.msk [vmem:[%s606 + $0xa] sm:$0x3] %vm607, 0.0
        %617 = vst.msk [vmem:[%s606 + $0x1a] sm:$0x3] %vm607, 0.0
        %618 = vst.msk [vmem:[%s606 + $0x2a] sm:$0x3] %vm607, 0.0
        %619 = vst.msk [vmem:[%s606 + $0x3a] sm:$0x3] %vm607, 0.0
        %620 = vst.msk [vmem:[%s606 + $0x4a] sm:$0x3] %vm607, 0.0
        %621 = vst.msk [vmem:[%s606 + $0x5a] sm:$0x3] %vm607, 0.0
        %622 = vst.msk [vmem:[%s606 + $0x6a] sm:$0x3] %vm607, 0.0
        %623 = vst.msk [vmem:[%s606 + $0x7a] sm:$0x3] %vm607, 0.0
        %vm624 = vcmask 195584
        %625 = vst.msk [vmem:[#allocation3] sm:$0xff] %vm624, 0.0
        %vm626 = vcmask 189440
        %627 = vst.msk [vmem:[#allocation3 + $0x8] sm:$0x3] %vm626, 0.0
        %s628 = scalar_lea.vmem [#allocation3], 144
        %629 = vst.msk [vmem:[%s628] sm:$0xff] %vm624, 0.0
        %630 = vst.msk [vmem:[%s628 + $0x8] sm:$0x3] %vm626, 0.0
        %s631 = scalar_lea.vmem [#allocation3], 16
        %vm632 = vcmask 188416
        %633 = vst.msk [vmem:[%s631] sm:$0x1] %vm632, 0.0
        %634 = vst.msk [vmem:[%s631 + $0x10] sm:$0x1] %vm632, 0.0
        %635 = vst.msk [vmem:[%s631 + $0x20] sm:$0x1] %vm632, 0.0
        %636 = vst.msk [vmem:[%s631 + $0x30] sm:$0x1] %vm632, 0.0
        %637 = vst.msk [vmem:[%s631 + $0x40] sm:$0x1] %vm632, 0.0
        %638 = vst.msk [vmem:[%s631 + $0x50] sm:$0x1] %vm632, 0.0
        %639 = vst.msk [vmem:[%s631 + $0x60] sm:$0x1] %vm632, 0.0
        %640 = vst.msk [vmem:[%s631 + $0x70] sm:$0x1] %vm632, 0.0
        %641 = vst.msk [vmem:[%s631 + $0x9] sm:$0x1] %vm632, 0.0
        %642 = vst.msk [vmem:[%s631 + $0x19] sm:$0x1] %vm632, 0.0
        %643 = vst.msk [vmem:[%s631 + $0x29] sm:$0x1] %vm632, 0.0
        %644 = vst.msk [vmem:[%s631 + $0x39] sm:$0x1] %vm632, 0.0
        %645 = vst.msk [vmem:[%s631 + $0x49] sm:$0x1] %vm632, 0.0
        %646 = vst.msk [vmem:[%s631 + $0x59] sm:$0x1] %vm632, 0.0
        %647 = vst.msk [vmem:[%s631 + $0x69] sm:$0x1] %vm632, 0.0
        %648 = vst.msk [vmem:[%s631 + $0x79] sm:$0x1] %vm632, 0.0
        %649 = vst.msk [vmem:[#allocation4] sm:$0xff] %vm595, 0.0
        %650 = vst.msk [vmem:[#allocation4 + $0x8] sm:$0x3] %vm607, 0.0
        %s651 = scalar_lea.vmem [#allocation4], 144
        %652 = vst.msk [vmem:[%s651] sm:$0xff] %vm595, 0.0
        %653 = vst.msk [vmem:[%s651 + $0x8] sm:$0x3] %vm607, 0.0
        %s654 = scalar_lea.vmem [#allocation4], 16
        %vm655 = vcmask 122880
        %656 = vst.msk [vmem:[%s654] sm:$0x1] %vm655, 0.0
        %657 = vst.msk [vmem:[%s654 + $0x10] sm:$0x1] %vm655, 0.0
        %658 = vst.msk [vmem:[%s654 + $0x20] sm:$0x1] %vm655, 0.0
        %659 = vst.msk [vmem:[%s654 + $0x30] sm:$0x1] %vm655, 0.0
        %660 = vst.msk [vmem:[%s654 + $0x40] sm:$0x1] %vm655, 0.0
        %661 = vst.msk [vmem:[%s654 + $0x50] sm:$0x1] %vm655, 0.0
        %662 = vst.msk [vmem:[%s654 + $0x60] sm:$0x1] %vm655, 0.0
        %663 = vst.msk [vmem:[%s654 + $0x70] sm:$0x1] %vm655, 0.0
        %664 = vst.msk [vmem:[%s654 + $0x9] sm:$0x1] %vm655, 0.0
        %665 = vst.msk [vmem:[%s654 + $0x19] sm:$0x1] %vm655, 0.0
        %666 = vst.msk [vmem:[%s654 + $0x29] sm:$0x1] %vm655, 0.0
        %667 = vst.msk [vmem:[%s654 + $0x39] sm:$0x1] %vm655, 0.0
        %668 = vst.msk [vmem:[%s654 + $0x49] sm:$0x1] %vm655, 0.0
        %669 = vst.msk [vmem:[%s654 + $0x59] sm:$0x1] %vm655, 0.0
        %670 = vst.msk [vmem:[%s654 + $0x69] sm:$0x1] %vm655, 0.0
        %671 = vst.msk [vmem:[%s654 + $0x79] sm:$0x1] %vm655, 0.0
        %v672 = vld [vmem:[%s588] sm:$0xff]
        %v673 = vld [vmem:[%s588 + $0x8] sm:$0xff]
        %v674 = vld [vmem:[%s588 + $0x10] sm:$0xff]
        %v675 = vld [vmem:[%s588 + $0x18] sm:$0xff]
        %v676 = vld [vmem:[%s588 + $0x20] sm:$0xff]
        %v677 = vld [vmem:[%s588 + $0x28] sm:$0xff]
        %v678 = vld [vmem:[%s588 + $0x30] sm:$0xff]
        %v679 = vld [vmem:[%s588 + $0x38] sm:$0xff]
        %v680 = vmax.f32 %v672, 0.0
        %v681 = vmax.f32 %v673, 0.0
        %v682 = vmax.f32 %v674, 0.0
        %v683 = vmax.f32 %v675, 0.0
        %v684 = vmax.f32 %v676, 0.0
        %v685 = vmax.f32 %v677, 0.0
        %v686 = vmax.f32 %v678, 0.0
        %v687 = vmax.f32 %v679, 0.0
        %v688 = vpack.c.bf16 %v681, %v680
        %v689 = vpack.c.bf16 %v683, %v682
        %v690 = vpack.c.bf16 %v685, %v684
        %v691 = vpack.c.bf16 %v687, %v686
        %v692 = vld [vmem:[%s593] sm:$0xff]
        %v693 = vld [vmem:[%s593 + $0x8] sm:$0xff]
        %v694 = vld [vmem:[%s593 + $0x10] sm:$0xff]
        %v695 = vld [vmem:[%s593 + $0x18] sm:$0xff]
        %v696 = vld [vmem:[%s593 + $0x20] sm:$0xff]
        %v697 = vld [vmem:[%s593 + $0x28] sm:$0xff]
        %v698 = vld [vmem:[%s593 + $0x30] sm:$0xff]
        %v699 = vld [vmem:[%s593 + $0x38] sm:$0xff]
        %v700 = vmax.f32 %v692, 0.0
        %v701 = vmax.f32 %v693, 0.0
        %v702 = vmax.f32 %v694, 0.0
        %v703 = vmax.f32 %v695, 0.0
        %v704 = vmax.f32 %v696, 0.0
        %v705 = vmax.f32 %v697, 0.0
        %v706 = vmax.f32 %v698, 0.0
        %v707 = vmax.f32 %v699, 0.0
        %v708 = vpack.c.bf16 %v701, %v700
        %v709 = vpack.c.bf16 %v703, %v702
        %v710 = vpack.c.bf16 %v705, %v704
        %v711 = vpack.c.bf16 %v707, %v706
        %v712 = vld [vmem:[%s3] sm:$0xf]
        %v713 = vld [vmem:[%s3 + $0x4] sm:$0x3]
        %v714 = vld [vmem:[%s4] sm:$0xf]
        %v715 = vld [vmem:[%s4 + $0x4] sm:$0x3]
        %v718 = vunpack.c.l.b16 %v714
        %v719 = vunpack.c.l.b16 %v715
        %v720 = vpack.c.b16 %v719, %v718
        %vm721 = vcmask 97280
        %v723 = vsel %vm721, %v708, 0
        %v726 = vsel %vm721, %v709, 0
        %v729 = vsel %vm721, %v710, 0
        %v732 = vsel %vm721, %v711, 0
        %vm734 = vcmask 1045504
        %v736 = vsel %vm734, %v720, 0
        %738 = vmatprep.subr.bf16.mxu0 0
        %739 = vmatpush1.bf16.msra.mxu0 %v736
        %740 = vmatprep.subr.bf16.mxu0 0
        %741 = vmatpush1.bf16.msra.mxu0 0
        %742 = vmatprep.subr.bf16.mxu0 0
        %743 = vmatpush1.bf16.msra.mxu0 0
        %744 = vmatprep.subr.bf16.mxu0 0
        %745 = vmatpush1.bf16.msra.mxu0 0
        %746 = vmatprep.subr.bf16.mxu0 0
        %747 = vmatpush1.bf16.msra.mxu0 0
        %748 = vmatprep.subr.bf16.mxu0 0
        %749 = vmatpush1.bf16.msra.mxu0 0
        %750 = vmatprep.subr.bf16.mxu0 0
        %751 = vmatpush1.bf16.msra.mxu0 0
        %752 = vmatprep.subr.bf16.mxu0 0
        %753 = vmatpush1.bf16.msra.mxu0 0
        %754 = vmatprep.subr.bf16.mxu0 0
        %755 = vmatpush1.bf16.msra.mxu0 0
        %756 = vmatprep.subr.bf16.mxu0 0
        %757 = vmatpush1.bf16.msra.mxu0 0
        %758 = vmatprep.subr.bf16.mxu0 0
        %759 = vmatpush1.bf16.msra.mxu0 0
        %760 = vmatprep.subr.bf16.mxu0 0
        %761 = vmatpush1.bf16.msra.mxu0 0
        %762 = vmatprep.subr.bf16.mxu0 0
        %763 = vmatpush1.bf16.msra.mxu0 0
        %764 = vmatprep.subr.bf16.mxu0 0
        %765 = vmatpush1.bf16.msra.mxu0 0
        %766 = vmatprep.subr.bf16.mxu0 0
        %767 = vmatpush1.bf16.msra.mxu0 0
        %768 = vmatprep.subr.bf16.mxu0 0
        %769 = vmatpush1.bf16.msra.mxu0 0
        %770 = vmatprep.mubr.bf16.mxu0 0
        %771 = vmatmul.mubr.bf16.gmra.mrb[0].mxu0 %v723
        %v772 = vpop.f32.mrb[0].mxu0
        %v773 = vadd.f32 0.0, %v772
        %v774 = vpop.f32.mrb[0].mxu0
        %v775 = vpop.f32.mrb[0].mxu0
        %v776 = vadd.f32 0.0, %v775
        %v777 = vpop.f32.mrb[0].mxu0
        %778 = vmatprep.mubr.bf16.mxu0 0
        %779 = vmatmul.mubr.bf16.gmra.mrb[0].mxu0 %v726
        %v780 = vpop.f32.mrb[0].mxu0
        %v781 = vadd.f32 0.0, %v780
        %v782 = vpop.f32.mrb[0].mxu0
        %v783 = vpop.f32.mrb[0].mxu0
        %v784 = vadd.f32 0.0, %v783
        %v785 = vpop.f32.mrb[0].mxu0
        %786 = vmatprep.mubr.bf16.mxu0 0
        %787 = vmatmul.mubr.bf16.gmra.mrb[0].mxu0 %v729
        %v788 = vpop.f32.mrb[0].mxu0
        %v789 = vadd.f32 0.0, %v788
        %v790 = vpop.f32.mrb[0].mxu0
        %v791 = vpop.f32.mrb[0].mxu0
        %v792 = vadd.f32 0.0, %v791
        %v793 = vpop.f32.mrb[0].mxu0
        %794 = vmatprep.mubr.bf16.mxu0 0
        %795 = vmatmul.mubr.bf16.gmra.mrb[0].mxu0 %v732
        %v796 = vpop.f32.mrb[0].mxu0
        %v797 = vadd.f32 0.0, %v796
        %v798 = vpop.f32.mrb[0].mxu0
        %v799 = vpop.f32.mrb[0].mxu0
        %v800 = vadd.f32 0.0, %v799
        %v801 = vpop.f32.mrb[0].mxu0
        %802 = vdwg.mxu0
        %v805 = vunpack.c.l.b16 %v712
        %v806 = vunpack.c.l.b16 %v713
        %v807 = vpack.c.b16 %v806, %v805
        %v809 = vsel %vm721, %v688, 0
        %v812 = vsel %vm721, %v689, 0
        %v815 = vsel %vm721, %v690, 0
        %v818 = vsel %vm721, %v691, 0
        %v821 = vsel %vm734, %v807, 0
        %823 = vmatprep.subr.bf16.mxu0 0
        %824 = vmatpush1.bf16.msra.mxu0 %v821
        %825 = vmatprep.subr.bf16.mxu0 0
        %826 = vmatpush1.bf16.msra.mxu0 0
        %827 = vmatprep.subr.bf16.mxu0 0
        %828 = vmatpush1.bf16.msra.mxu0 0
        %829 = vmatprep.subr.bf16.mxu0 0
        %830 = vmatpush1.bf16.msra.mxu0 0
        %831 = vmatprep.subr.bf16.mxu0 0
        %832 = vmatpush1.bf16.msra.mxu0 0
        %833 = vmatprep.subr.bf16.mxu0 0
        %834 = vmatpush1.bf16.msra.mxu0 0
        %835 = vmatprep.subr.bf16.mxu0 0
        %836 = vmatpush1.bf16.msra.mxu0 0
        %837 = vmatprep.subr.bf16.mxu0 0
        %838 = vmatpush1.bf16.msra.mxu0 0
        %839 = vmatprep.subr.bf16.mxu0 0
        %840 = vmatpush1.bf16.msra.mxu0 0
        %841 = vmatprep.subr.bf16.mxu0 0
        %842 = vmatpush1.bf16.msra.mxu0 0
        %843 = vmatprep.subr.bf16.mxu0 0
        %844 = vmatpush1.bf16.msra.mxu0 0
        %845 = vmatprep.subr.bf16.mxu0 0
        %846 = vmatpush1.bf16.msra.mxu0 0
        %847 = vmatprep.subr.bf16.mxu0 0
        %848 = vmatpush1.bf16.msra.mxu0 0
        %849 = vmatprep.subr.bf16.mxu0 0
        %850 = vmatpush1.bf16.msra.mxu0 0
        %851 = vmatprep.subr.bf16.mxu0 0
        %852 = vmatpush1.bf16.msra.mxu0 0
        %853 = vmatprep.subr.bf16.mxu0 0
        %854 = vmatpush1.bf16.msra.mxu0 0
        %855 = vmatprep.mubr.bf16.mxu0 0
        %856 = vmatmul.mubr.bf16.gmra.mrb[0].mxu0 %v809
        %v857 = vpop.f32.mrb[0].mxu0
        %v858 = vadd.f32 %v773, %v857
        %v859 = vpop.f32.mrb[0].mxu0
        %v860 = vpop.f32.mrb[0].mxu0
        %v861 = vadd.f32 %v776, %v860
        %v862 = vpop.f32.mrb[0].mxu0
        %863 = vmatprep.mubr.bf16.mxu0 0
        %864 = vmatmul.mubr.bf16.gmra.mrb[0].mxu0 %v812
        %v865 = vpop.f32.mrb[0].mxu0
        %v866 = vadd.f32 %v781, %v865
        %v867 = vpop.f32.mrb[0].mxu0
        %v868 = vpop.f32.mrb[0].mxu0
        %v869 = vadd.f32 %v784, %v868
        %v870 = vpop.f32.mrb[0].mxu0
        %871 = vmatprep.mubr.bf16.mxu0 0
        %872 = vmatmul.mubr.bf16.gmra.mrb[0].mxu0 %v815
        %v873 = vpop.f32.mrb[0].mxu0
        %v874 = vadd.f32 %v789, %v873
        %v875 = vpop.f32.mrb[0].mxu0
        %v876 = vpop.f32.mrb[0].mxu0
        %v877 = vadd.f32 %v792, %v876
        %v878 = vpop.f32.mrb[0].mxu0
        %879 = vmatprep.mubr.bf16.mxu0 0
        %880 = vmatmul.mubr.bf16.gmra.mrb[0].mxu0 %v818
        %v881 = vpop.f32.mrb[0].mxu0
        %v882 = vadd.f32 %v797, %v881
        %v883 = vpop.f32.mrb[0].mxu0
        %v884 = vpop.f32.mrb[0].mxu0
        %v885 = vadd.f32 %v800, %v884
        %v886 = vpop.f32.mrb[0].mxu0
        %887 = vdwg.mxu0
        %v888 = vld [vmem:[%s5] sm:$0x1]
        %v890 = vlaneseq
        %v891 = vshrl.u32 %v890, 7
        %v892 = vsub.s32 0, %v891
        %v893 = vrot.slane %v888, %v892
        %v895 = vadd.f32 %v858, %v893
        %v896 = vadd.f32 %v861, %v893
        %v897 = vadd.f32 %v866, %v893
        %v898 = vadd.f32 %v869, %v893
        %v899 = vadd.f32 %v874, %v893
        %v900 = vadd.f32 %v877, %v893
        %v901 = vadd.f32 %v882, %v893
        %v902 = vadd.f32 %v885, %v893
        %v903 = vmax.f32 %v895, 0.0
        %v904 = vmax.f32 %v896, 0.0
        %v905 = vmax.f32 %v897, 0.0
        %v906 = vmax.f32 %v898, 0.0
        %v907 = vmax.f32 %v899, 0.0
        %v908 = vmax.f32 %v900, 0.0
        %v909 = vmax.f32 %v901, 0.0
        %v910 = vmax.f32 %v902, 0.0
        %911 = vst.msk [vmem:[%s606 + $0x2] sm:$0xff] %vm595, %v903
        %912 = vst.msk [vmem:[%s606 + $0x12] sm:$0xff] %vm595, %v904
        %913 = vst.msk [vmem:[%s606 + $0x22] sm:$0xff] %vm595, %v905
        %914 = vst.msk [vmem:[%s606 + $0x32] sm:$0xff] %vm595, %v906
        %915 = vst.msk [vmem:[%s606 + $0x42] sm:$0xff] %vm595, %v907
        %916 = vst.msk [vmem:[%s606 + $0x52] sm:$0xff] %vm595, %v908
        %917 = vst.msk [vmem:[%s606 + $0x62] sm:$0xff] %vm595, %v909
        %918 = vst.msk [vmem:[%s606 + $0x72] sm:$0xff] %vm595, %v910
        %v919 = vld [vmem:[%s6] sm:$0xff]
        %v920 = vld [vmem:[%s6 + $0x8] sm:$0xff]
        %v921 = vld [vmem:[%s6 + $0x10] sm:$0xff]
        %v922 = vld [vmem:[%s6 + $0x18] sm:$0x1]
        %v923 = vld [vmem:[#allocation2] sm:$0xff]
        %v924 = vld [vmem:[#allocation2 + $0x10] sm:$0xff]
        %v925 = vld [vmem:[#allocation2 + $0x20] sm:$0xff]
        %v926 = vld [vmem:[#allocation2 + $0x30] sm:$0xff]
        %v927 = vld [vmem:[#allocation2 + $0x40] sm:$0xff]
        %v928 = vld [vmem:[#allocation2 + $0x50] sm:$0xff]
        %v929 = vld [vmem:[#allocation2 + $0x60] sm:$0xff]
        %v930 = vld [vmem:[#allocation2 + $0x70] sm:$0xff]
        %v931 = vlaneseq
        %v932 = vshrl.u32 %v931, 7
        %v933 = vsub.s32 0, %v932
        %v934 = vrot.slane %v919, %v933
        %v935 = vmul.f32 %v923, %v934
        %v936 = vmul.f32 %v924, %v934
        %v937 = vmul.f32 %v925, %v934
        %v938 = vmul.f32 %v926, %v934
        %v939 = vmul.f32 %v927, %v934
        %v940 = vmul.f32 %v928, %v934
        %v941 = vmul.f32 %v929, %v934
        %v942 = vmul.f32 %v930, %v934
        %v943 = vadd.f32 %v935, 0.0
        %v944 = vadd.f32 %v936, 0.0
        %v945 = vadd.f32 %v937, 0.0
        %v946 = vadd.f32 %v938, 0.0
        %v947 = vadd.f32 %v939, 0.0
        %v948 = vadd.f32 %v940, 0.0
        %v949 = vadd.f32 %v941, 0.0
        %v950 = vadd.f32 %v942, 0.0
        %v951 = vld [vmem:[#allocation2 + $0x1] sm:$0xff]
        %v952 = vld [vmem:[#allocation2 + $0x11] sm:$0xff]
        %v953 = vld [vmem:[#allocation2 + $0x21] sm:$0xff]
        %v954 = vld [vmem:[#allocation2 + $0x31] sm:$0xff]
        %v955 = vld [vmem:[#allocation2 + $0x41] sm:$0xff]
        %v956 = vld [vmem:[#allocation2 + $0x51] sm:$0xff]
        %v957 = vld [vmem:[#allocation2 + $0x61] sm:$0xff]
        %v958 = vld [vmem:[#allocation2 + $0x71] sm:$0xff]
        %v959 = vlaneseq
        %v960 = vshrl.u32 %v959, 7
        %v961 = vsub.s32 1, %v960
        %v962 = vrot.slane %v919, %v961
        %v963 = vmul.f32 %v951, %v962
        %v964 = vmul.f32 %v952, %v962
        %v965 = vmul.f32 %v953, %v962
        %v966 = vmul.f32 %v954, %v962
        %v967 = vmul.f32 %v955, %v962
        %v968 = vmul.f32 %v956, %v962
        %v969 = vmul.f32 %v957, %v962
        %v970 = vmul.f32 %v958, %v962
        %v971 = vadd.f32 %v943, %v963
        %v972 = vadd.f32 %v944, %v964
        %v973 = vadd.f32 %v945, %v965
        %v974 = vadd.f32 %v946, %v966
        %v975 = vadd.f32 %v947, %v967
        %v976 = vadd.f32 %v948, %v968
        %v977 = vadd.f32 %v949, %v969
        %v978 = vadd.f32 %v950, %v970
        %v979 = vld [vmem:[#allocation2 + $0x2] sm:$0xff]
        %v980 = vld [vmem:[#allocation2 + $0x12] sm:$0xff]
        %v981 = vld [vmem:[#allocation2 + $0x22] sm:$0xff]
        %v982 = vld [vmem:[#allocation2 + $0x32] sm:$0xff]
        %v983 = vld [vmem:[#allocation2 + $0x42] sm:$0xff]
        %v984 = vld [vmem:[#allocation2 + $0x52] sm:$0xff]
        %v985 = vld [vmem:[#allocation2 + $0x62] sm:$0xff]
        %v986 = vld [vmem:[#allocation2 + $0x72] sm:$0xff]
        %v987 = vlaneseq
        %v988 = vshrl.u32 %v987, 7
        %v989 = vsub.s32 2, %v988
        %v990 = vrot.slane %v919, %v989
        %v991 = vmul.f32 %v979, %v990
        %v992 = vmul.f32 %v980, %v990
        %v993 = vmul.f32 %v981, %v990
        %v994 = vmul.f32 %v982, %v990
        %v995 = vmul.f32 %v983, %v990
        %v996 = vmul.f32 %v984, %v990
        %v997 = vmul.f32 %v985, %v990
        %v998 = vmul.f32 %v986, %v990
        %v999 = vadd.f32 %v971, %v991
        %v1000 = vadd.f32 %v972, %v992
        %v1001 = vadd.f32 %v973, %v993
        %v1002 = vadd.f32 %v974, %v994
        %v1003 = vadd.f32 %v975, %v995
        %v1004 = vadd.f32 %v976, %v996
        %v1005 = vadd.f32 %v977, %v997
        %v1006 = vadd.f32 %v978, %v998
        %v1007 = vld [vmem:[#allocation2 + $0x3] sm:$0xff]
        %v1008 = vld [vmem:[#allocation2 + $0x13] sm:$0xff]
        %v1009 = vld [vmem:[#allocation2 + $0x23] sm:$0xff]
        %v1010 = vld [vmem:[#allocation2 + $0x33] sm:$0xff]
        %v1011 = vld [vmem:[#allocation2 + $0x43] sm:$0xff]
        %v1012 = vld [vmem:[#allocation2 + $0x53] sm:$0xff]
        %v1013 = vld [vmem:[#allocation2 + $0x63] sm:$0xff]
        %v1014 = vld [vmem:[#allocation2 + $0x73] sm:$0xff]
        %v1015 = vlaneseq
        %v1016 = vshrl.u32 %v1015, 7
        %v1017 = vsub.s32 3, %v1016
        %v1018 = vrot.slane %v919, %v1017
        %v1019 = vmul.f32 %v1007, %v1018
        %v1020 = vmul.f32 %v1008, %v1018
        %v1021 = vmul.f32 %v1009, %v1018
        %v1022 = vmul.f32 %v1010, %v1018
        %v1023 = vmul.f32 %v1011, %v1018
        %v1024 = vmul.f32 %v1012, %v1018
        %v1025 = vmul.f32 %v1013, %v1018
        %v1026 = vmul.f32 %v1014, %v1018
        %v1027 = vadd.f32 %v999, %v1019
        %v1028 = vadd.f32 %v1000, %v1020
        %v1029 = vadd.f32 %v1001, %v1021
        %v1030 = vadd.f32 %v1002, %v1022
        %v1031 = vadd.f32 %v1003, %v1023
        %v1032 = vadd.f32 %v1004, %v1024
        %v1033 = vadd.f32 %v1005, %v1025
        %v1034 = vadd.f32 %v1006, %v1026
        %v1035 = vld [vmem:[#allocation2 + $0x4] sm:$0xff]
        %v1036 = vld [vmem:[#allocation2 + $0x14] sm:$0xff]
        %v1037 = vld [vmem:[#allocation2 + $0x24] sm:$0xff]
        %v1038 = vld [vmem:[#allocation2 + $0x34] sm:$0xff]
        %v1039 = vld [vmem:[#allocation2 + $0x44] sm:$0xff]
        %v1040 = vld [vmem:[#allocation2 + $0x54] sm:$0xff]
        %v1041 = vld [vmem:[#allocation2 + $0x64] sm:$0xff]
        %v1042 = vld [vmem:[#allocation2 + $0x74] sm:$0xff]
        %v1043 = vlaneseq
        %v1044 = vshrl.u32 %v1043, 7
        %v1045 = vsub.s32 4, %v1044
        %v1046 = vrot.slane %v919, %v1045
        %v1047 = vmul.f32 %v1035, %v1046
        %v1048 = vmul.f32 %v1036, %v1046
        %v1049 = vmul.f32 %v1037, %v1046
        %v1050 = vmul.f32 %v1038, %v1046
        %v1051 = vmul.f32 %v1039, %v1046
        %v1052 = vmul.f32 %v1040, %v1046
        %v1053 = vmul.f32 %v1041, %v1046
        %v1054 = vmul.f32 %v1042, %v1046
        %v1055 = vadd.f32 %v1027, %v1047
        %v1056 = vadd.f32 %v1028, %v1048
        %v1057 = vadd.f32 %v1029, %v1049
        %v1058 = vadd.f32 %v1030, %v1050
        %v1059 = vadd.f32 %v1031, %v1051
        %v1060 = vadd.f32 %v1032, %v1052
        %v1061 = vadd.f32 %v1033, %v1053
        %v1062 = vadd.f32 %v1034, %v1054
        %s1063 = scalar_lea.vmem [#allocation2], 16
        %v1064 = vld [vmem:[%s1063] sm:$0xff]
        %v1065 = vld [vmem:[%s1063 + $0x10] sm:$0xff]
        %v1066 = vld [vmem:[%s1063 + $0x20] sm:$0xff]
        %v1067 = vld [vmem:[%s1063 + $0x30] sm:$0xff]
        %v1068 = vld [vmem:[%s1063 + $0x40] sm:$0xff]
        %v1069 = vld [vmem:[%s1063 + $0x50] sm:$0xff]
        %v1070 = vld [vmem:[%s1063 + $0x60] sm:$0xff]
        %v1071 = vld [vmem:[%s1063 + $0x70] sm:$0xff]
        %v1072 = vlaneseq
        %v1073 = vshrl.u32 %v1072, 7
        %v1074 = vsub.s32 5, %v1073
        %v1075 = vrot.slane %v919, %v1074
        %v1076 = vmul.f32 %v1064, %v1075
        %v1077 = vmul.f32 %v1065, %v1075
        %v1078 = vmul.f32 %v1066, %v1075
        %v1079 = vmul.f32 %v1067, %v1075
        %v1080 = vmul.f32 %v1068, %v1075
        %v1081 = vmul.f32 %v1069, %v1075
        %v1082 = vmul.f32 %v1070, %v1075
        %v1083 = vmul.f32 %v1071, %v1075
        %v1084 = vadd.f32 %v1055, %v1076
        %v1085 = vadd.f32 %v1056, %v1077
        %v1086 = vadd.f32 %v1057, %v1078
        %v1087 = vadd.f32 %v1058, %v1079
        %v1088 = vadd.f32 %v1059, %v1080
        %v1089 = vadd.f32 %v1060, %v1081
        %v1090 = vadd.f32 %v1061, %v1082
        %v1091 = vadd.f32 %v1062, %v1083
        %v1092 = vld [vmem:[%s1063 + $0x1] sm:$0xff]
        %v1093 = vld [vmem:[%s1063 + $0x11] sm:$0xff]
        %v1094 = vld [vmem:[%s1063 + $0x21] sm:$0xff]
        %v1095 = vld [vmem:[%s1063 + $0x31] sm:$0xff]
        %v1096 = vld [vmem:[%s1063 + $0x41] sm:$0xff]
        %v1097 = vld [vmem:[%s1063 + $0x51] sm:$0xff]
        %v1098 = vld [vmem:[%s1063 + $0x61] sm:$0xff]
        %v1099 = vld [vmem:[%s1063 + $0x71] sm:$0xff]
        %v1100 = vlaneseq
        %v1101 = vshrl.u32 %v1100, 7
        %v1102 = vsub.s32 6, %v1101
        %v1103 = vrot.slane %v919, %v1102
        %v1104 = vmul.f32 %v1092, %v1103
        %v1105 = vmul.f32 %v1093, %v1103
        %v1106 = vmul.f32 %v1094, %v1103
        %v1107 = vmul.f32 %v1095, %v1103
        %v1108 = vmul.f32 %v1096, %v1103
        %v1109 = vmul.f32 %v1097, %v1103
        %v1110 = vmul.f32 %v1098, %v1103
        %v1111 = vmul.f32 %v1099, %v1103
        %v1112 = vadd.f32 %v1084, %v1104
        %v1113 = vadd.f32 %v1085, %v1105
        %v1114 = vadd.f32 %v1086, %v1106
        %v1115 = vadd.f32 %v1087, %v1107
        %v1116 = vadd.f32 %v1088, %v1108
        %v1117 = vadd.f32 %v1089, %v1109
        %v1118 = vadd.f32 %v1090, %v1110
        %v1119 = vadd.f32 %v1091, %v1111
        %v1120 = vld [vmem:[%s1063 + $0x2] sm:$0xff]
        %v1121 = vld [vmem:[%s1063 + $0x12] sm:$0xff]
        %v1122 = vld [vmem:[%s1063 + $0x22] sm:$0xff]
        %v1123 = vld [vmem:[%s1063 + $0x32] sm:$0xff]
        %v1124 = vld [vmem:[%s1063 + $0x42] sm:$0xff]
        %v1125 = vld [vmem:[%s1063 + $0x52] sm:$0xff]
        %v1126 = vld [vmem:[%s1063 + $0x62] sm:$0xff]
        %v1127 = vld [vmem:[%s1063 + $0x72] sm:$0xff]
        %v1128 = vlaneseq
        %v1129 = vshrl.u32 %v1128, 7
        %v1130 = vsub.s32 7, %v1129
        %v1131 = vrot.slane %v919, %v1130
        %v1132 = vmul.f32 %v1120, %v1131
        %v1133 = vmul.f32 %v1121, %v1131
        %v1134 = vmul.f32 %v1122, %v1131
        %v1135 = vmul.f32 %v1123, %v1131
        %v1136 = vmul.f32 %v1124, %v1131
        %v1137 = vmul.f32 %v1125, %v1131
        %v1138 = vmul.f32 %v1126, %v1131
        %v1139 = vmul.f32 %v1127, %v1131
        %v1140 = vadd.f32 %v1112, %v1132
        %v1141 = vadd.f32 %v1113, %v1133
        %v1142 = vadd.f32 %v1114, %v1134
        %v1143 = vadd.f32 %v1115, %v1135
        %v1144 = vadd.f32 %v1116, %v1136
        %v1145 = vadd.f32 %v1117, %v1137
        %v1146 = vadd.f32 %v1118, %v1138
        %v1147 = vadd.f32 %v1119, %v1139
        %v1148 = vld [vmem:[%s1063 + $0x3] sm:$0xff]
        %v1149 = vld [vmem:[%s1063 + $0x13] sm:$0xff]
        %v1150 = vld [vmem:[%s1063 + $0x23] sm:$0xff]
        %v1151 = vld [vmem:[%s1063 + $0x33] sm:$0xff]
        %v1152 = vld [vmem:[%s1063 + $0x43] sm:$0xff]
        %v1153 = vld [vmem:[%s1063 + $0x53] sm:$0xff]
        %v1154 = vld [vmem:[%s1063 + $0x63] sm:$0xff]
        %v1155 = vld [vmem:[%s1063 + $0x73] sm:$0xff]
        %v1156 = vlaneseq
        %v1157 = vshrl.u32 %v1156, 7
        %v1158 = vsub.s32 0, %v1157
        %v1159 = vrot.slane %v920, %v1158
        %v1160 = vmul.f32 %v1148, %v1159
        %v1161 = vmul.f32 %v1149, %v1159
        %v1162 = vmul.f32 %v1150, %v1159
        %v1163 = vmul.f32 %v1151, %v1159
        %v1164 = vmul.f32 %v1152, %v1159
        %v1165 = vmul.f32 %v1153, %v1159
        %v1166 = vmul.f32 %v1154, %v1159
        %v1167 = vmul.f32 %v1155, %v1159
        %v1168 = vadd.f32 %v1140, %v1160
        %v1169 = vadd.f32 %v1141, %v1161
        %v1170 = vadd.f32 %v1142, %v1162
        %v1171 = vadd.f32 %v1143, %v1163
        %v1172 = vadd.f32 %v1144, %v1164
        %v1173 = vadd.f32 %v1145, %v1165
        %v1174 = vadd.f32 %v1146, %v1166
        %v1175 = vadd.f32 %v1147, %v1167
        %v1176 = vld [vmem:[%s1063 + $0x4] sm:$0xff]
        %v1177 = vld [vmem:[%s1063 + $0x14] sm:$0xff]
        %v1178 = vld [vmem:[%s1063 + $0x24] sm:$0xff]
        %v1179 = vld [vmem:[%s1063 + $0x34] sm:$0xff]
        %v1180 = vld [vmem:[%s1063 + $0x44] sm:$0xff]
        %v1181 = vld [vmem:[%s1063 + $0x54] sm:$0xff]
        %v1182 = vld [vmem:[%s1063 + $0x64] sm:$0xff]
        %v1183 = vld [vmem:[%s1063 + $0x74] sm:$0xff]
        %v1184 = vlaneseq
        %v1185 = vshrl.u32 %v1184, 7
        %v1186 = vsub.s32 1, %v1185
        %v1187 = vrot.slane %v920, %v1186
        %v1188 = vmul.f32 %v1176, %v1187
        %v1189 = vmul.f32 %v1177, %v1187
        %v1190 = vmul.f32 %v1178, %v1187
        %v1191 = vmul.f32 %v1179, %v1187
        %v1192 = vmul.f32 %v1180, %v1187
        %v1193 = vmul.f32 %v1181, %v1187
        %v1194 = vmul.f32 %v1182, %v1187
        %v1195 = vmul.f32 %v1183, %v1187
        %v1196 = vadd.f32 %v1168, %v1188
        %v1197 = vadd.f32 %v1169, %v1189
        %v1198 = vadd.f32 %v1170, %v1190
        %v1199 = vadd.f32 %v1171, %v1191
        %v1200 = vadd.f32 %v1172, %v1192
        %v1201 = vadd.f32 %v1173, %v1193
        %v1202 = vadd.f32 %v1174, %v1194
        %v1203 = vadd.f32 %v1175, %v1195
        %v1204 = vld [vmem:[%s606] sm:$0xff]
        %v1205 = vld [vmem:[%s606 + $0x10] sm:$0xff]
        %v1206 = vld [vmem:[%s606 + $0x20] sm:$0xff]
        %v1207 = vld [vmem:[%s606 + $0x30] sm:$0xff]
        %v1208 = vld [vmem:[%s606 + $0x40] sm:$0xff]
        %v1209 = vld [vmem:[%s606 + $0x50] sm:$0xff]
        %v1210 = vld [vmem:[%s606 + $0x60] sm:$0xff]
        %v1211 = vld [vmem:[%s606 + $0x70] sm:$0xff]
        %v1212 = vlaneseq
        %v1213 = vshrl.u32 %v1212, 7
        %v1214 = vsub.s32 2, %v1213
        %v1215 = vrot.slane %v920, %v1214
        %v1216 = vmul.f32 %v1204, %v1215
        %v1217 = vmul.f32 %v1205, %v1215
        %v1218 = vmul.f32 %v1206, %v1215
        %v1219 = vmul.f32 %v1207, %v1215
        %v1220 = vmul.f32 %v1208, %v1215
        %v1221 = vmul.f32 %v1209, %v1215
        %v1222 = vmul.f32 %v1210, %v1215
        %v1223 = vmul.f32 %v1211, %v1215
        %v1224 = vadd.f32 %v1196, %v1216
        %v1225 = vadd.f32 %v1197, %v1217
        %v1226 = vadd.f32 %v1198, %v1218
        %v1227 = vadd.f32 %v1199, %v1219
        %v1228 = vadd.f32 %v1200, %v1220
        %v1229 = vadd.f32 %v1201, %v1221
        %v1230 = vadd.f32 %v1202, %v1222
        %v1231 = vadd.f32 %v1203, %v1223
        %v1232 = vld [vmem:[%s606 + $0x1] sm:$0xff]
        %v1233 = vld [vmem:[%s606 + $0x11] sm:$0xff]
        %v1234 = vld [vmem:[%s606 + $0x21] sm:$0xff]
        %v1235 = vld [vmem:[%s606 + $0x31] sm:$0xff]
        %v1236 = vld [vmem:[%s606 + $0x41] sm:$0xff]
        %v1237 = vld [vmem:[%s606 + $0x51] sm:$0xff]
        %v1238 = vld [vmem:[%s606 + $0x61] sm:$0xff]
        %v1239 = vld [vmem:[%s606 + $0x71] sm:$0xff]
        %v1240 = vlaneseq
        %v1241 = vshrl.u32 %v1240, 7
        %v1242 = vsub.s32 3, %v1241
        %v1243 = vrot.slane %v920, %v1242
        %v1244 = vmul.f32 %v1232, %v1243
        %v1245 = vmul.f32 %v1233, %v1243
        %v1246 = vmul.f32 %v1234, %v1243
        %v1247 = vmul.f32 %v1235, %v1243
        %v1248 = vmul.f32 %v1236, %v1243
        %v1249 = vmul.f32 %v1237, %v1243
        %v1250 = vmul.f32 %v1238, %v1243
        %v1251 = vmul.f32 %v1239, %v1243
        %v1252 = vadd.f32 %v1224, %v1244
        %v1253 = vadd.f32 %v1225, %v1245
        %v1254 = vadd.f32 %v1226, %v1246
        %v1255 = vadd.f32 %v1227, %v1247
        %v1256 = vadd.f32 %v1228, %v1248
        %v1257 = vadd.f32 %v1229, %v1249
        %v1258 = vadd.f32 %v1230, %v1250
        %v1259 = vadd.f32 %v1231, %v1251
        %v1260 = vld [vmem:[%s606 + $0x2] sm:$0xff]
        %v1261 = vld [vmem:[%s606 + $0x12] sm:$0xff]
        %v1262 = vld [vmem:[%s606 + $0x22] sm:$0xff]
        %v1263 = vld [vmem:[%s606 + $0x32] sm:$0xff]
        %v1264 = vld [vmem:[%s606 + $0x42] sm:$0xff]
        %v1265 = vld [vmem:[%s606 + $0x52] sm:$0xff]
        %v1266 = vld [vmem:[%s606 + $0x62] sm:$0xff]
        %v1267 = vld [vmem:[%s606 + $0x72] sm:$0xff]
        %v1268 = vlaneseq
        %v1269 = vshrl.u32 %v1268, 7
        %v1270 = vsub.s32 4, %v1269
        %v1271 = vrot.slane %v920, %v1270
        %v1272 = vmul.f32 %v1260, %v1271
        %v1273 = vmul.f32 %v1261, %v1271
        %v1274 = vmul.f32 %v1262, %v1271
        %v1275 = vmul.f32 %v1263, %v1271
        %v1276 = vmul.f32 %v1264, %v1271
        %v1277 = vmul.f32 %v1265, %v1271
        %v1278 = vmul.f32 %v1266, %v1271
        %v1279 = vmul.f32 %v1267, %v1271
        %v1280 = vadd.f32 %v1252, %v1272
        %v1281 = vadd.f32 %v1253, %v1273
        %v1282 = vadd.f32 %v1254, %v1274
        %v1283 = vadd.f32 %v1255, %v1275
        %v1284 = vadd.f32 %v1256, %v1276
        %v1285 = vadd.f32 %v1257, %v1277
        %v1286 = vadd.f32 %v1258, %v1278
        %v1287 = vadd.f32 %v1259, %v1279
        %v1288 = vld [vmem:[%s606 + $0x3] sm:$0xff]
        %v1289 = vld [vmem:[%s606 + $0x13] sm:$0xff]
        %v1290 = vld [vmem:[%s606 + $0x23] sm:$0xff]
        %v1291 = vld [vmem:[%s606 + $0x33] sm:$0xff]
        %v1292 = vld [vmem:[%s606 + $0x43] sm:$0xff]
        %v1293 = vld [vmem:[%s606 + $0x53] sm:$0xff]
        %v1294 = vld [vmem:[%s606 + $0x63] sm:$0xff]
        %v1295 = vld [vmem:[%s606 + $0x73] sm:$0xff]
        %v1296 = vlaneseq
        %v1297 = vshrl.u32 %v1296, 7
        %v1298 = vsub.s32 5, %v1297
        %v1299 = vrot.slane %v920, %v1298
        %v1300 = vmul.f32 %v1288, %v1299
        %v1301 = vmul.f32 %v1289, %v1299
        %v1302 = vmul.f32 %v1290, %v1299
        %v1303 = vmul.f32 %v1291, %v1299
        %v1304 = vmul.f32 %v1292, %v1299
        %v1305 = vmul.f32 %v1293, %v1299
        %v1306 = vmul.f32 %v1294, %v1299
        %v1307 = vmul.f32 %v1295, %v1299
        %v1308 = vadd.f32 %v1280, %v1300
        %v1309 = vadd.f32 %v1281, %v1301
        %v1310 = vadd.f32 %v1282, %v1302
        %v1311 = vadd.f32 %v1283, %v1303
        %v1312 = vadd.f32 %v1284, %v1304
        %v1313 = vadd.f32 %v1285, %v1305
        %v1314 = vadd.f32 %v1286, %v1306
        %v1315 = vadd.f32 %v1287, %v1307
        %v1316 = vld [vmem:[%s606 + $0x4] sm:$0xff]
        %v1317 = vld [vmem:[%s606 + $0x14] sm:$0xff]
        %v1318 = vld [vmem:[%s606 + $0x24] sm:$0xff]
        %v1319 = vld [vmem:[%s606 + $0x34] sm:$0xff]
        %v1320 = vld [vmem:[%s606 + $0x44] sm:$0xff]
        %v1321 = vld [vmem:[%s606 + $0x54] sm:$0xff]
        %v1322 = vld [vmem:[%s606 + $0x64] sm:$0xff]
        %v1323 = vld [vmem:[%s606 + $0x74] sm:$0xff]
        %v1324 = vlaneseq
        %v1325 = vshrl.u32 %v1324, 7
        %v1326 = vsub.s32 6, %v1325
        %v1327 = vrot.slane %v920, %v1326
        %v1328 = vmul.f32 %v1316, %v1327
        %v1329 = vmul.f32 %v1317, %v1327
        %v1330 = vmul.f32 %v1318, %v1327
        %v1331 = vmul.f32 %v1319, %v1327
        %v1332 = vmul.f32 %v1320, %v1327
        %v1333 = vmul.f32 %v1321, %v1327
        %v1334 = vmul.f32 %v1322, %v1327
        %v1335 = vmul.f32 %v1323, %v1327
        %v1336 = vadd.f32 %v1308, %v1328
        %v1337 = vadd.f32 %v1309, %v1329
        %v1338 = vadd.f32 %v1310, %v1330
        %v1339 = vadd.f32 %v1311, %v1331
        %v1340 = vadd.f32 %v1312, %v1332
        %v1341 = vadd.f32 %v1313, %v1333
        %v1342 = vadd.f32 %v1314, %v1334
        %v1343 = vadd.f32 %v1315, %v1335
        %s1344 = scalar_lea.vmem [#allocation2], 48
        %v1345 = vld [vmem:[%s1344] sm:$0xff]
        %v1346 = vld [vmem:[%s1344 + $0x10] sm:$0xff]
        %v1347 = vld [vmem:[%s1344 + $0x20] sm:$0xff]
        %v1348 = vld [vmem:[%s1344 + $0x30] sm:$0xff]
        %v1349 = vld [vmem:[%s1344 + $0x40] sm:$0xff]
        %v1350 = vld [vmem:[%s1344 + $0x50] sm:$0xff]
        %v1351 = vld [vmem:[%s1344 + $0x60] sm:$0xff]
        %v1352 = vld [vmem:[%s1344 + $0x70] sm:$0xff]
        %v1353 = vlaneseq
        %v1354 = vshrl.u32 %v1353, 7
        %v1355 = vsub.s32 7, %v1354
        %v1356 = vrot.slane %v920, %v1355
        %v1357 = vmul.f32 %v1345, %v1356
        %v1358 = vmul.f32 %v1346, %v1356
        %v1359 = vmul.f32 %v1347, %v1356
        %v1360 = vmul.f32 %v1348, %v1356
        %v1361 = vmul.f32 %v1349, %v1356
        %v1362 = vmul.f32 %v1350, %v1356
        %v1363 = vmul.f32 %v1351, %v1356
        %v1364 = vmul.f32 %v1352, %v1356
        %v1365 = vadd.f32 %v1336, %v1357
        %v1366 = vadd.f32 %v1337, %v1358
        %v1367 = vadd.f32 %v1338, %v1359
        %v1368 = vadd.f32 %v1339, %v1360
        %v1369 = vadd.f32 %v1340, %v1361
        %v1370 = vadd.f32 %v1341, %v1362
        %v1371 = vadd.f32 %v1342, %v1363
        %v1372 = vadd.f32 %v1343, %v1364
        %v1373 = vld [vmem:[%s1344 + $0x1] sm:$0xff]
        %v1374 = vld [vmem:[%s1344 + $0x11] sm:$0xff]
        %v1375 = vld [vmem:[%s1344 + $0x21] sm:$0xff]
        %v1376 = vld [vmem:[%s1344 + $0x31] sm:$0xff]
        %v1377 = vld [vmem:[%s1344 + $0x41] sm:$0xff]
        %v1378 = vld [vmem:[%s1344 + $0x51] sm:$0xff]
        %v1379 = vld [vmem:[%s1344 + $0x61] sm:$0xff]
        %v1380 = vld [vmem:[%s1344 + $0x71] sm:$0xff]
        %v1381 = vlaneseq
        %v1382 = vshrl.u32 %v1381, 7
        %v1383 = vsub.s32 0, %v1382
        %v1384 = vrot.slane %v921, %v1383
        %v1385 = vmul.f32 %v1373, %v1384
        %v1386 = vmul.f32 %v1374, %v1384
        %v1387 = vmul.f32 %v1375, %v1384
        %v1388 = vmul.f32 %v1376, %v1384
        %v1389 = vmul.f32 %v1377, %v1384
        %v1390 = vmul.f32 %v1378, %v1384
        %v1391 = vmul.f32 %v1379, %v1384
        %v1392 = vmul.f32 %v1380, %v1384
        %v1393 = vadd.f32 %v1365, %v1385
        %v1394 = vadd.f32 %v1366, %v1386
        %v1395 = vadd.f32 %v1367, %v1387
        %v1396 = vadd.f32 %v1368, %v1388
        %v1397 = vadd.f32 %v1369, %v1389
        %v1398 = vadd.f32 %v1370, %v1390
        %v1399 = vadd.f32 %v1371, %v1391
        %v1400 = vadd.f32 %v1372, %v1392
        %v1401 = vld [vmem:[%s1344 + $0x2] sm:$0xff]
        %v1402 = vld [vmem:[%s1344 + $0x12] sm:$0xff]
        %v1403 = vld [vmem:[%s1344 + $0x22] sm:$0xff]
        %v1404 = vld [vmem:[%s1344 + $0x32] sm:$0xff]
        %v1405 = vld [vmem:[%s1344 + $0x42] sm:$0xff]
        %v1406 = vld [vmem:[%s1344 + $0x52] sm:$0xff]
        %v1407 = vld [vmem:[%s1344 + $0x62] sm:$0xff]
        %v1408 = vld [vmem:[%s1344 + $0x72] sm:$0xff]
        %v1409 = vlaneseq
        %v1410 = vshrl.u32 %v1409, 7
        %v1411 = vsub.s32 1, %v1410
        %v1412 = vrot.slane %v921, %v1411
        %v1413 = vmul.f32 %v1401, %v1412
        %v1414 = vmul.f32 %v1402, %v1412
        %v1415 = vmul.f32 %v1403, %v1412
        %v1416 = vmul.f32 %v1404, %v1412
        %v1417 = vmul.f32 %v1405, %v1412
        %v1418 = vmul.f32 %v1406, %v1412
        %v1419 = vmul.f32 %v1407, %v1412
        %v1420 = vmul.f32 %v1408, %v1412
        %v1421 = vadd.f32 %v1393, %v1413
        %v1422 = vadd.f32 %v1394, %v1414
        %v1423 = vadd.f32 %v1395, %v1415
        %v1424 = vadd.f32 %v1396, %v1416
        %v1425 = vadd.f32 %v1397, %v1417
        %v1426 = vadd.f32 %v1398, %v1418
        %v1427 = vadd.f32 %v1399, %v1419
        %v1428 = vadd.f32 %v1400, %v1420
        %v1429 = vld [vmem:[%s1344 + $0x3] sm:$0xff]
        %v1430 = vld [vmem:[%s1344 + $0x13] sm:$0xff]
        %v1431 = vld [vmem:[%s1344 + $0x23] sm:$0xff]
        %v1432 = vld [vmem:[%s1344 + $0x33] sm:$0xff]
        %v1433 = vld [vmem:[%s1344 + $0x43] sm:$0xff]
        %v1434 = vld [vmem:[%s1344 + $0x53] sm:$0xff]
        %v1435 = vld [vmem:[%s1344 + $0x63] sm:$0xff]
        %v1436 = vld [vmem:[%s1344 + $0x73] sm:$0xff]
        %v1437 = vlaneseq
        %v1438 = vshrl.u32 %v1437, 7
        %v1439 = vsub.s32 2, %v1438
        %v1440 = vrot.slane %v921, %v1439
        %v1441 = vmul.f32 %v1429, %v1440
        %v1442 = vmul.f32 %v1430, %v1440
        %v1443 = vmul.f32 %v1431, %v1440
        %v1444 = vmul.f32 %v1432, %v1440
        %v1445 = vmul.f32 %v1433, %v1440
        %v1446 = vmul.f32 %v1434, %v1440
        %v1447 = vmul.f32 %v1435, %v1440
        %v1448 = vmul.f32 %v1436, %v1440
        %v1449 = vadd.f32 %v1421, %v1441
        %v1450 = vadd.f32 %v1422, %v1442
        %v1451 = vadd.f32 %v1423, %v1443
        %v1452 = vadd.f32 %v1424, %v1444
        %v1453 = vadd.f32 %v1425, %v1445
        %v1454 = vadd.f32 %v1426, %v1446
        %v1455 = vadd.f32 %v1427, %v1447
        %v1456 = vadd.f32 %v1428, %v1448
        %v1457 = vld [vmem:[%s1344 + $0x4] sm:$0xff]
        %v1458 = vld [vmem:[%s1344 + $0x14] sm:$0xff]
        %v1459 = vld [vmem:[%s1344 + $0x24] sm:$0xff]
        %v1460 = vld [vmem:[%s1344 + $0x34] sm:$0xff]
        %v1461 = vld [vmem:[%s1344 + $0x44] sm:$0xff]
        %v1462 = vld [vmem:[%s1344 + $0x54] sm:$0xff]
        %v1463 = vld [vmem:[%s1344 + $0x64] sm:$0xff]
        %v1464 = vld [vmem:[%s1344 + $0x74] sm:$0xff]
        %v1465 = vlaneseq
        %v1466 = vshrl.u32 %v1465, 7
        %v1467 = vsub.s32 3, %v1466
        %v1468 = vrot.slane %v921, %v1467
        %v1469 = vmul.f32 %v1457, %v1468
        %v1470 = vmul.f32 %v1458, %v1468
        %v1471 = vmul.f32 %v1459, %v1468
        %v1472 = vmul.f32 %v1460, %v1468
        %v1473 = vmul.f32 %v1461, %v1468
        %v1474 = vmul.f32 %v1462, %v1468
        %v1475 = vmul.f32 %v1463, %v1468
        %v1476 = vmul.f32 %v1464, %v1468
        %v1477 = vadd.f32 %v1449, %v1469
        %v1478 = vadd.f32 %v1450, %v1470
        %v1479 = vadd.f32 %v1451, %v1471
        %v1480 = vadd.f32 %v1452, %v1472
        %v1481 = vadd.f32 %v1453, %v1473
        %v1482 = vadd.f32 %v1454, %v1474
        %v1483 = vadd.f32 %v1455, %v1475
        %v1484 = vadd.f32 %v1456, %v1476
        %s1485 = scalar_lea.vmem [#allocation2], 64
        %v1486 = vld [vmem:[%s1485] sm:$0xff]
        %v1487 = vld [vmem:[%s1485 + $0x10] sm:$0xff]
        %v1488 = vld [vmem:[%s1485 + $0x20] sm:$0xff]
        %v1489 = vld [vmem:[%s1485 + $0x30] sm:$0xff]
        %v1490 = vld [vmem:[%s1485 + $0x40] sm:$0xff]
        %v1491 = vld [vmem:[%s1485 + $0x50] sm:$0xff]
        %v1492 = vld [vmem:[%s1485 + $0x60] sm:$0xff]
        %v1493 = vld [vmem:[%s1485 + $0x70] sm:$0xff]
        %v1494 = vlaneseq
        %v1495 = vshrl.u32 %v1494, 7
        %v1496 = vsub.s32 4, %v1495
        %v1497 = vrot.slane %v921, %v1496
        %v1498 = vmul.f32 %v1486, %v1497
        %v1499 = vmul.f32 %v1487, %v1497
        %v1500 = vmul.f32 %v1488, %v1497
        %v1501 = vmul.f32 %v1489, %v1497
        %v1502 = vmul.f32 %v1490, %v1497
        %v1503 = vmul.f32 %v1491, %v1497
        %v1504 = vmul.f32 %v1492, %v1497
        %v1505 = vmul.f32 %v1493, %v1497
        %v1506 = vadd.f32 %v1477, %v1498
        %v1507 = vadd.f32 %v1478, %v1499
        %v1508 = vadd.f32 %v1479, %v1500
        %v1509 = vadd.f32 %v1480, %v1501
        %v1510 = vadd.f32 %v1481, %v1502
        %v1511 = vadd.f32 %v1482, %v1503
        %v1512 = vadd.f32 %v1483, %v1504
        %v1513 = vadd.f32 %v1484, %v1505
        %v1514 = vld [vmem:[%s1485 + $0x1] sm:$0xff]
        %v1515 = vld [vmem:[%s1485 + $0x11] sm:$0xff]
        %v1516 = vld [vmem:[%s1485 + $0x21] sm:$0xff]
        %v1517 = vld [vmem:[%s1485 + $0x31] sm:$0xff]
        %v1518 = vld [vmem:[%s1485 + $0x41] sm:$0xff]
        %v1519 = vld [vmem:[%s1485 + $0x51] sm:$0xff]
        %v1520 = vld [vmem:[%s1485 + $0x61] sm:$0xff]
        %v1521 = vld [vmem:[%s1485 + $0x71] sm:$0xff]
        %v1522 = vlaneseq
        %v1523 = vshrl.u32 %v1522, 7
        %v1524 = vsub.s32 5, %v1523
        %v1525 = vrot.slane %v921, %v1524
        %v1526 = vmul.f32 %v1514, %v1525
        %v1527 = vmul.f32 %v1515, %v1525
        %v1528 = vmul.f32 %v1516, %v1525
        %v1529 = vmul.f32 %v1517, %v1525
        %v1530 = vmul.f32 %v1518, %v1525
        %v1531 = vmul.f32 %v1519, %v1525
        %v1532 = vmul.f32 %v1520, %v1525
        %v1533 = vmul.f32 %v1521, %v1525
        %v1534 = vadd.f32 %v1506, %v1526
        %v1535 = vadd.f32 %v1507, %v1527
        %v1536 = vadd.f32 %v1508, %v1528
        %v1537 = vadd.f32 %v1509, %v1529
        %v1538 = vadd.f32 %v1510, %v1530
        %v1539 = vadd.f32 %v1511, %v1531
        %v1540 = vadd.f32 %v1512, %v1532
        %v1541 = vadd.f32 %v1513, %v1533
        %v1542 = vld [vmem:[%s1485 + $0x2] sm:$0xff]
        %v1543 = vld [vmem:[%s1485 + $0x12] sm:$0xff]
        %v1544 = vld [vmem:[%s1485 + $0x22] sm:$0xff]
        %v1545 = vld [vmem:[%s1485 + $0x32] sm:$0xff]
        %v1546 = vld [vmem:[%s1485 + $0x42] sm:$0xff]
        %v1547 = vld [vmem:[%s1485 + $0x52] sm:$0xff]
        %v1548 = vld [vmem:[%s1485 + $0x62] sm:$0xff]
        %v1549 = vld [vmem:[%s1485 + $0x72] sm:$0xff]
        %v1550 = vlaneseq
        %v1551 = vshrl.u32 %v1550, 7
        %v1552 = vsub.s32 6, %v1551
        %v1553 = vrot.slane %v921, %v1552
        %v1554 = vmul.f32 %v1542, %v1553
        %v1555 = vmul.f32 %v1543, %v1553
        %v1556 = vmul.f32 %v1544, %v1553
        %v1557 = vmul.f32 %v1545, %v1553
        %v1558 = vmul.f32 %v1546, %v1553
        %v1559 = vmul.f32 %v1547, %v1553
        %v1560 = vmul.f32 %v1548, %v1553
        %v1561 = vmul.f32 %v1549, %v1553
        %v1562 = vadd.f32 %v1534, %v1554
        %v1563 = vadd.f32 %v1535, %v1555
        %v1564 = vadd.f32 %v1536, %v1556
        %v1565 = vadd.f32 %v1537, %v1557
        %v1566 = vadd.f32 %v1538, %v1558
        %v1567 = vadd.f32 %v1539, %v1559
        %v1568 = vadd.f32 %v1540, %v1560
        %v1569 = vadd.f32 %v1541, %v1561
        %v1570 = vld [vmem:[%s1485 + $0x3] sm:$0xff]
        %v1571 = vld [vmem:[%s1485 + $0x13] sm:$0xff]
        %v1572 = vld [vmem:[%s1485 + $0x23] sm:$0xff]
        %v1573 = vld [vmem:[%s1485 + $0x33] sm:$0xff]
        %v1574 = vld [vmem:[%s1485 + $0x43] sm:$0xff]
        %v1575 = vld [vmem:[%s1485 + $0x53] sm:$0xff]
        %v1576 = vld [vmem:[%s1485 + $0x63] sm:$0xff]
        %v1577 = vld [vmem:[%s1485 + $0x73] sm:$0xff]
        %v1578 = vlaneseq
        %v1579 = vshrl.u32 %v1578, 7
        %v1580 = vsub.s32 7, %v1579
        %v1581 = vrot.slane %v921, %v1580
        %v1582 = vmul.f32 %v1570, %v1581
        %v1583 = vmul.f32 %v1571, %v1581
        %v1584 = vmul.f32 %v1572, %v1581
        %v1585 = vmul.f32 %v1573, %v1581
        %v1586 = vmul.f32 %v1574, %v1581
        %v1587 = vmul.f32 %v1575, %v1581
        %v1588 = vmul.f32 %v1576, %v1581
        %v1589 = vmul.f32 %v1577, %v1581
        %v1590 = vadd.f32 %v1562, %v1582
        %v1591 = vadd.f32 %v1563, %v1583
        %v1592 = vadd.f32 %v1564, %v1584
        %v1593 = vadd.f32 %v1565, %v1585
        %v1594 = vadd.f32 %v1566, %v1586
        %v1595 = vadd.f32 %v1567, %v1587
        %v1596 = vadd.f32 %v1568, %v1588
        %v1597 = vadd.f32 %v1569, %v1589
        %v1598 = vld [vmem:[%s1485 + $0x4] sm:$0xff]
        %v1599 = vld [vmem:[%s1485 + $0x14] sm:$0xff]
        %v1600 = vld [vmem:[%s1485 + $0x24] sm:$0xff]
        %v1601 = vld [vmem:[%s1485 + $0x34] sm:$0xff]
        %v1602 = vld [vmem:[%s1485 + $0x44] sm:$0xff]
        %v1603 = vld [vmem:[%s1485 + $0x54] sm:$0xff]
        %v1604 = vld [vmem:[%s1485 + $0x64] sm:$0xff]
        %v1605 = vld [vmem:[%s1485 + $0x74] sm:$0xff]
        %v1606 = vlaneseq
        %v1607 = vshrl.u32 %v1606, 7
        %v1608 = vsub.s32 0, %v1607
        %v1609 = vrot.slane %v922, %v1608
        %v1610 = vmul.f32 %v1598, %v1609
        %v1611 = vmul.f32 %v1599, %v1609
        %v1612 = vmul.f32 %v1600, %v1609
        %v1613 = vmul.f32 %v1601, %v1609
        %v1614 = vmul.f32 %v1602, %v1609
        %v1615 = vmul.f32 %v1603, %v1609
        %v1616 = vmul.f32 %v1604, %v1609
        %v1617 = vmul.f32 %v1605, %v1609
        %v1618 = vadd.f32 %v1590, %v1610
        %v1619 = vadd.f32 %v1591, %v1611
        %v1620 = vadd.f32 %v1592, %v1612
        %v1621 = vadd.f32 %v1593, %v1613
        %v1622 = vadd.f32 %v1594, %v1614
        %v1623 = vadd.f32 %v1595, %v1615
        %v1624 = vadd.f32 %v1596, %v1616
        %v1625 = vadd.f32 %v1597, %v1617
        %v1626 = vpack.c.bf16 %v1619, %v1618
        %v1627 = vpack.c.bf16 %v1621, %v1620
        %v1628 = vpack.c.bf16 %v1623, %v1622
        %v1629 = vpack.c.bf16 %v1625, %v1624
        %v1630 = vld [vmem:[%s7] sm:$0xf]
        %v1631 = vld [vmem:[%s7 + $0x4] sm:$0xf]
        %v1632 = vld [vmem:[%s8] sm:$0x1]
        %v1634 = vlaneseq
        %v1635 = vshrl.u32 %v1634, 7
        %v1636 = vsub.s32 0, %v1635
        %v1637 = vrot.slane %v1632, %v1636
        %v1641 = vunpack.c.l.b16 %v1630
        %v1642 = vunpack.c.l.b16 %v1631
        %v1643 = vpack.c.b16 %v1642, %v1641
        %v1646 = vsel %vm595, %v1626, 0
        %v1649 = vsel %vm595, %v1627, 0
        %v1652 = vsel %vm595, %v1628, 0
        %v1655 = vsel %vm595, %v1629, 0
        %1657 = vmatprep.subr.bf16.mxu0 0
        %1658 = vmatpush1.bf16.msra.mxu0 %v1643
        %1659 = vmatprep.subr.bf16.mxu0 0
        %1660 = vmatpush1.bf16.msra.mxu0 0
        %1661 = vmatprep.subr.bf16.mxu0 0
        %1662 = vmatpush1.bf16.msra.mxu0 0
        %1663 = vmatprep.subr.bf16.mxu0 0
        %1664 = vmatpush1.bf16.msra.mxu0 0
        %1665 = vmatprep.subr.bf16.mxu0 0
        %1666 = vmatpush1.bf16.msra.mxu0 0
        %1667 = vmatprep.subr.bf16.mxu0 0
        %1668 = vmatpush1.bf16.msra.mxu0 0
        %1669 = vmatprep.subr.bf16.mxu0 0
        %1670 = vmatpush1.bf16.msra.mxu0 0
        %1671 = vmatprep.subr.bf16.mxu0 0
        %1672 = vmatpush1.bf16.msra.mxu0 0
        %1673 = vmatprep.subr.bf16.mxu0 0
        %1674 = vmatpush1.bf16.msra.mxu0 0
        %1675 = vmatprep.subr.bf16.mxu0 0
        %1676 = vmatpush1.bf16.msra.mxu0 0
        %1677 = vmatprep.subr.bf16.mxu0 0
        %1678 = vmatpush1.bf16.msra.mxu0 0
        %1679 = vmatprep.subr.bf16.mxu0 0
        %1680 = vmatpush1.bf16.msra.mxu0 0
        %1681 = vmatprep.subr.bf16.mxu0 0
        %1682 = vmatpush1.bf16.msra.mxu0 0
        %1683 = vmatprep.subr.bf16.mxu0 0
        %1684 = vmatpush1.bf16.msra.mxu0 0
        %1685 = vmatprep.subr.bf16.mxu0 0
        %1686 = vmatpush1.bf16.msra.mxu0 0
        %1687 = vmatprep.subr.bf16.mxu0 0
        %1688 = vmatpush1.bf16.msra.mxu0 0
        %1689 = vmatprep.mubr.bf16.mxu0 0
        %1690 = vmatmul.mubr.bf16.gmra.mrb[0].mxu0 %v1646
        %v1691 = vpop.f32.mrb[0].mxu0
        %v1692 = vadd.f32 %v1637, %v1691
        %v1693 = vpop.f32.mrb[0].mxu0
        %v1694 = vpop.f32.mrb[0].mxu0
        %v1695 = vadd.f32 %v1637, %v1694
        %v1696 = vpop.f32.mrb[0].mxu0
        %1697 = vmatprep.mubr.bf16.mxu0 0
        %1698 = vmatmul.mubr.bf16.gmra.mrb[0].mxu0 %v1649
        %v1699 = vpop.f32.mrb[0].mxu0
        %v1700 = vadd.f32 %v1637, %v1699
        %v1701 = vpop.f32.mrb[0].mxu0
        %v1702 = vpop.f32.mrb[0].mxu0
        %v1703 = vadd.f32 %v1637, %v1702
        %v1704 = vpop.f32.mrb[0].mxu0
        %1705 = vmatprep.mubr.bf16.mxu0 0
        %1706 = vmatmul.mubr.bf16.gmra.mrb[0].mxu0 %v1652
        %v1707 = vpop.f32.mrb[0].mxu0
        %v1708 = vadd.f32 %v1637, %v1707
        %v1709 = vpop.f32.mrb[0].mxu0
        %v1710 = vpop.f32.mrb[0].mxu0
        %v1711 = vadd.f32 %v1637, %v1710
        %v1712 = vpop.f32.mrb[0].mxu0
        %1713 = vmatprep.mubr.bf16.mxu0 0
        %1714 = vmatmul.mubr.bf16.gmra.mrb[0].mxu0 %v1655
        %v1715 = vpop.f32.mrb[0].mxu0
        %v1716 = vadd.f32 %v1637, %v1715
        %v1717 = vpop.f32.mrb[0].mxu0
        %v1718 = vpop.f32.mrb[0].mxu0
        %v1719 = vadd.f32 %v1637, %v1718
        %v1720 = vpop.f32.mrb[0].mxu0
        %1721 = vdwg.mxu0
        %v1722 = vmax.f32 %v1692, 0.0
        %v1723 = vmax.f32 %v1695, 0.0
        %v1724 = vmax.f32 %v1700, 0.0
        %v1725 = vmax.f32 %v1703, 0.0
        %v1726 = vmax.f32 %v1708, 0.0
        %v1727 = vmax.f32 %v1711, 0.0
        %v1728 = vmax.f32 %v1716, 0.0
        %v1729 = vmax.f32 %v1719, 0.0
        %1730 = vst.msk [vmem:[%s606 + $0x2] sm:$0xff] %vm595, %v1722
        %1731 = vst.msk [vmem:[%s606 + $0x12] sm:$0xff] %vm595, %v1723
        %1732 = vst.msk [vmem:[%s606 + $0x22] sm:$0xff] %vm595, %v1724
        %1733 = vst.msk [vmem:[%s606 + $0x32] sm:$0xff] %vm595, %v1725
        %1734 = vst.msk [vmem:[%s606 + $0x42] sm:$0xff] %vm595, %v1726
        %1735 = vst.msk [vmem:[%s606 + $0x52] sm:$0xff] %vm595, %v1727
        %1736 = vst.msk [vmem:[%s606 + $0x62] sm:$0xff] %vm595, %v1728
        %1737 = vst.msk [vmem:[%s606 + $0x72] sm:$0xff] %vm595, %v1729
        %v1738 = vld [vmem:[%s12] sm:$0xff]
        %v1739 = vld [vmem:[%s12 + $0x8] sm:$0xff]
        %v1740 = vld [vmem:[%s12 + $0x10] sm:$0xff]
        %v1741 = vld [vmem:[%s12 + $0x18] sm:$0x1]
        %v1742 = vld [vmem:[#allocation2] sm:$0xff]
        %v1743 = vld [vmem:[#allocation2 + $0x10] sm:$0xff]
        %v1744 = vld [vmem:[#allocation2 + $0x20] sm:$0xff]
        %v1745 = vld [vmem:[#allocation2 + $0x30] sm:$0xff]
        %v1746 = vld [vmem:[#allocation2 + $0x40] sm:$0xff]
        %v1747 = vld [vmem:[#allocation2 + $0x50] sm:$0xff]
        %v1748 = vld [vmem:[#allocation2 + $0x60] sm:$0xff]
        %v1749 = vld [vmem:[#allocation2 + $0x70] sm:$0xff]
        %v1750 = vlaneseq
        %v1751 = vshrl.u32 %v1750, 7
        %v1752 = vsub.s32 0, %v1751
        %v1753 = vrot.slane %v1738, %v1752
        %v1754 = vmul.f32 %v1742, %v1753
        %v1755 = vmul.f32 %v1743, %v1753
        %v1756 = vmul.f32 %v1744, %v1753
        %v1757 = vmul.f32 %v1745, %v1753
        %v1758 = vmul.f32 %v1746, %v1753
        %v1759 = vmul.f32 %v1747, %v1753
        %v1760 = vmul.f32 %v1748, %v1753
        %v1761 = vmul.f32 %v1749, %v1753
        %v1762 = vadd.f32 %v1754, 0.0
        %v1763 = vadd.f32 %v1755, 0.0
        %v1764 = vadd.f32 %v1756, 0.0
        %v1765 = vadd.f32 %v1757, 0.0
        %v1766 = vadd.f32 %v1758, 0.0
        %v1767 = vadd.f32 %v1759, 0.0
        %v1768 = vadd.f32 %v1760, 0.0
        %v1769 = vadd.f32 %v1761, 0.0
        %v1770 = vld [vmem:[#allocation2 + $0x1] sm:$0xff]
        %v1771 = vld [vmem:[#allocation2 + $0x11] sm:$0xff]
        %v1772 = vld [vmem:[#allocation2 + $0x21] sm:$0xff]
        %v1773 = vld [vmem:[#allocation2 + $0x31] sm:$0xff]
        %v1774 = vld [vmem:[#allocation2 + $0x41] sm:$0xff]
        %v1775 = vld [vmem:[#allocation2 + $0x51] sm:$0xff]
        %v1776 = vld [vmem:[#allocation2 + $0x61] sm:$0xff]
        %v1777 = vld [vmem:[#allocation2 + $0x71] sm:$0xff]
        %v1778 = vlaneseq
        %v1779 = vshrl.u32 %v1778, 7
        %v1780 = vsub.s32 1, %v1779
        %v1781 = vrot.slane %v1738, %v1780
        %v1782 = vmul.f32 %v1770, %v1781
        %v1783 = vmul.f32 %v1771, %v1781
        %v1784 = vmul.f32 %v1772, %v1781
        %v1785 = vmul.f32 %v1773, %v1781
        %v1786 = vmul.f32 %v1774, %v1781
        %v1787 = vmul.f32 %v1775, %v1781
        %v1788 = vmul.f32 %v1776, %v1781
        %v1789 = vmul.f32 %v1777, %v1781
        %v1790 = vadd.f32 %v1762, %v1782
        %v1791 = vadd.f32 %v1763, %v1783
        %v1792 = vadd.f32 %v1764, %v1784
        %v1793 = vadd.f32 %v1765, %v1785
        %v1794 = vadd.f32 %v1766, %v1786
        %v1795 = vadd.f32 %v1767, %v1787
        %v1796 = vadd.f32 %v1768, %v1788
        %v1797 = vadd.f32 %v1769, %v1789
        %v1798 = vld [vmem:[#allocation2 + $0x2] sm:$0xff]
        %v1799 = vld [vmem:[#allocation2 + $0x12] sm:$0xff]
        %v1800 = vld [vmem:[#allocation2 + $0x22] sm:$0xff]
        %v1801 = vld [vmem:[#allocation2 + $0x32] sm:$0xff]
        %v1802 = vld [vmem:[#allocation2 + $0x42] sm:$0xff]
        %v1803 = vld [vmem:[#allocation2 + $0x52] sm:$0xff]
        %v1804 = vld [vmem:[#allocation2 + $0x62] sm:$0xff]
        %v1805 = vld [vmem:[#allocation2 + $0x72] sm:$0xff]
        %v1806 = vlaneseq
        %v1807 = vshrl.u32 %v1806, 7
        %v1808 = vsub.s32 2, %v1807
        %v1809 = vrot.slane %v1738, %v1808
        %v1810 = vmul.f32 %v1798, %v1809
        %v1811 = vmul.f32 %v1799, %v1809
        %v1812 = vmul.f32 %v1800, %v1809
        %v1813 = vmul.f32 %v1801, %v1809
        %v1814 = vmul.f32 %v1802, %v1809
        %v1815 = vmul.f32 %v1803, %v1809
        %v1816 = vmul.f32 %v1804, %v1809
        %v1817 = vmul.f32 %v1805, %v1809
        %v1818 = vadd.f32 %v1790, %v1810
        %v1819 = vadd.f32 %v1791, %v1811
        %v1820 = vadd.f32 %v1792, %v1812
        %v1821 = vadd.f32 %v1793, %v1813
        %v1822 = vadd.f32 %v1794, %v1814
        %v1823 = vadd.f32 %v1795, %v1815
        %v1824 = vadd.f32 %v1796, %v1816
        %v1825 = vadd.f32 %v1797, %v1817
        %v1826 = vld [vmem:[#allocation2 + $0x3] sm:$0xff]
        %v1827 = vld [vmem:[#allocation2 + $0x13] sm:$0xff]
        %v1828 = vld [vmem:[#allocation2 + $0x23] sm:$0xff]
        %v1829 = vld [vmem:[#allocation2 + $0x33] sm:$0xff]
        %v1830 = vld [vmem:[#allocation2 + $0x43] sm:$0xff]
        %v1831 = vld [vmem:[#allocation2 + $0x53] sm:$0xff]
        %v1832 = vld [vmem:[#allocation2 + $0x63] sm:$0xff]
        %v1833 = vld [vmem:[#allocation2 + $0x73] sm:$0xff]
        %v1834 = vlaneseq
        %v1835 = vshrl.u32 %v1834, 7
        %v1836 = vsub.s32 3, %v1835
        %v1837 = vrot.slane %v1738, %v1836
        %v1838 = vmul.f32 %v1826, %v1837
        %v1839 = vmul.f32 %v1827, %v1837
        %v1840 = vmul.f32 %v1828, %v1837
        %v1841 = vmul.f32 %v1829, %v1837
        %v1842 = vmul.f32 %v1830, %v1837
        %v1843 = vmul.f32 %v1831, %v1837
        %v1844 = vmul.f32 %v1832, %v1837
        %v1845 = vmul.f32 %v1833, %v1837
        %v1846 = vadd.f32 %v1818, %v1838
        %v1847 = vadd.f32 %v1819, %v1839
        %v1848 = vadd.f32 %v1820, %v1840
        %v1849 = vadd.f32 %v1821, %v1841
        %v1850 = vadd.f32 %v1822, %v1842
        %v1851 = vadd.f32 %v1823, %v1843
        %v1852 = vadd.f32 %v1824, %v1844
        %v1853 = vadd.f32 %v1825, %v1845
        %v1854 = vld [vmem:[#allocation2 + $0x4] sm:$0xff]
        %v1855 = vld [vmem:[#allocation2 + $0x14] sm:$0xff]
        %v1856 = vld [vmem:[#allocation2 + $0x24] sm:$0xff]
        %v1857 = vld [vmem:[#allocation2 + $0x34] sm:$0xff]
        %v1858 = vld [vmem:[#allocation2 + $0x44] sm:$0xff]
        %v1859 = vld [vmem:[#allocation2 + $0x54] sm:$0xff]
        %v1860 = vld [vmem:[#allocation2 + $0x64] sm:$0xff]
        %v1861 = vld [vmem:[#allocation2 + $0x74] sm:$0xff]
        %v1862 = vlaneseq
        %v1863 = vshrl.u32 %v1862, 7
        %v1864 = vsub.s32 4, %v1863
        %v1865 = vrot.slane %v1738, %v1864
        %v1866 = vmul.f32 %v1854, %v1865
        %v1867 = vmul.f32 %v1855, %v1865
        %v1868 = vmul.f32 %v1856, %v1865
        %v1869 = vmul.f32 %v1857, %v1865
        %v1870 = vmul.f32 %v1858, %v1865
        %v1871 = vmul.f32 %v1859, %v1865
        %v1872 = vmul.f32 %v1860, %v1865
        %v1873 = vmul.f32 %v1861, %v1865
        %v1874 = vadd.f32 %v1846, %v1866
        %v1875 = vadd.f32 %v1847, %v1867
        %v1876 = vadd.f32 %v1848, %v1868
        %v1877 = vadd.f32 %v1849, %v1869
        %v1878 = vadd.f32 %v1850, %v1870
        %v1879 = vadd.f32 %v1851, %v1871
        %v1880 = vadd.f32 %v1852, %v1872
        %v1881 = vadd.f32 %v1853, %v1873
        %v1882 = vld [vmem:[%s1063] sm:$0xff]
        %v1883 = vld [vmem:[%s1063 + $0x10] sm:$0xff]
        %v1884 = vld [vmem:[%s1063 + $0x20] sm:$0xff]
        %v1885 = vld [vmem:[%s1063 + $0x30] sm:$0xff]
        %v1886 = vld [vmem:[%s1063 + $0x40] sm:$0xff]
        %v1887 = vld [vmem:[%s1063 + $0x50] sm:$0xff]
        %v1888 = vld [vmem:[%s1063 + $0x60] sm:$0xff]
        %v1889 = vld [vmem:[%s1063 + $0x70] sm:$0xff]
        %v1890 = vlaneseq
        %v1891 = vshrl.u32 %v1890, 7
        %v1892 = vsub.s32 5, %v1891
        %v1893 = vrot.slane %v1738, %v1892
        %v1894 = vmul.f32 %v1882, %v1893
        %v1895 = vmul.f32 %v1883, %v1893
        %v1896 = vmul.f32 %v1884, %v1893
        %v1897 = vmul.f32 %v1885, %v1893
        %v1898 = vmul.f32 %v1886, %v1893
        %v1899 = vmul.f32 %v1887, %v1893
        %v1900 = vmul.f32 %v1888, %v1893
        %v1901 = vmul.f32 %v1889, %v1893
        %v1902 = vadd.f32 %v1874, %v1894
        %v1903 = vadd.f32 %v1875, %v1895
        %v1904 = vadd.f32 %v1876, %v1896
        %v1905 = vadd.f32 %v1877, %v1897
        %v1906 = vadd.f32 %v1878, %v1898
        %v1907 = vadd.f32 %v1879, %v1899
        %v1908 = vadd.f32 %v1880, %v1900
        %v1909 = vadd.f32 %v1881, %v1901
        %v1910 = vld [vmem:[%s1063 + $0x1] sm:$0xff]
        %v1911 = vld [vmem:[%s1063 + $0x11] sm:$0xff]
        %v1912 = vld [vmem:[%s1063 + $0x21] sm:$0xff]
        %v1913 = vld [vmem:[%s1063 + $0x31] sm:$0xff]
        %v1914 = vld [vmem:[%s1063 + $0x41] sm:$0xff]
        %v1915 = vld [vmem:[%s1063 + $0x51] sm:$0xff]
        %v1916 = vld [vmem:[%s1063 + $0x61] sm:$0xff]
        %v1917 = vld [vmem:[%s1063 + $0x71] sm:$0xff]
        %v1918 = vlaneseq
        %v1919 = vshrl.u32 %v1918, 7
        %v1920 = vsub.s32 6, %v1919
        %v1921 = vrot.slane %v1738, %v1920
        %v1922 = vmul.f32 %v1910, %v1921
        %v1923 = vmul.f32 %v1911, %v1921
        %v1924 = vmul.f32 %v1912, %v1921
        %v1925 = vmul.f32 %v1913, %v1921
        %v1926 = vmul.f32 %v1914, %v1921
        %v1927 = vmul.f32 %v1915, %v1921
        %v1928 = vmul.f32 %v1916, %v1921
        %v1929 = vmul.f32 %v1917, %v1921
        %v1930 = vadd.f32 %v1902, %v1922
        %v1931 = vadd.f32 %v1903, %v1923
        %v1932 = vadd.f32 %v1904, %v1924
        %v1933 = vadd.f32 %v1905, %v1925
        %v1934 = vadd.f32 %v1906, %v1926
        %v1935 = vadd.f32 %v1907, %v1927
        %v1936 = vadd.f32 %v1908, %v1928
        %v1937 = vadd.f32 %v1909, %v1929
        %v1938 = vld [vmem:[%s1063 + $0x2] sm:$0xff]
        %v1939 = vld [vmem:[%s1063 + $0x12] sm:$0xff]
        %v1940 = vld [vmem:[%s1063 + $0x22] sm:$0xff]
        %v1941 = vld [vmem:[%s1063 + $0x32] sm:$0xff]
        %v1942 = vld [vmem:[%s1063 + $0x42] sm:$0xff]
        %v1943 = vld [vmem:[%s1063 + $0x52] sm:$0xff]
        %v1944 = vld [vmem:[%s1063 + $0x62] sm:$0xff]
        %v1945 = vld [vmem:[%s1063 + $0x72] sm:$0xff]
        %v1946 = vlaneseq
        %v1947 = vshrl.u32 %v1946, 7
        %v1948 = vsub.s32 7, %v1947
        %v1949 = vrot.slane %v1738, %v1948
        %v1950 = vmul.f32 %v1938, %v1949
        %v1951 = vmul.f32 %v1939, %v1949
        %v1952 = vmul.f32 %v1940, %v1949
        %v1953 = vmul.f32 %v1941, %v1949
        %v1954 = vmul.f32 %v1942, %v1949
        %v1955 = vmul.f32 %v1943, %v1949
        %v1956 = vmul.f32 %v1944, %v1949
        %v1957 = vmul.f32 %v1945, %v1949
        %v1958 = vadd.f32 %v1930, %v1950
        %v1959 = vadd.f32 %v1931, %v1951
        %v1960 = vadd.f32 %v1932, %v1952
        %v1961 = vadd.f32 %v1933, %v1953
        %v1962 = vadd.f32 %v1934, %v1954
        %v1963 = vadd.f32 %v1935, %v1955
        %v1964 = vadd.f32 %v1936, %v1956
        %v1965 = vadd.f32 %v1937, %v1957
        %v1966 = vld [vmem:[%s1063 + $0x3] sm:$0xff]
        %v1967 = vld [vmem:[%s1063 + $0x13] sm:$0xff]
        %v1968 = vld [vmem:[%s1063 + $0x23] sm:$0xff]
        %v1969 = vld [vmem:[%s1063 + $0x33] sm:$0xff]
        %v1970 = vld [vmem:[%s1063 + $0x43] sm:$0xff]
        %v1971 = vld [vmem:[%s1063 + $0x53] sm:$0xff]
        %v1972 = vld [vmem:[%s1063 + $0x63] sm:$0xff]
        %v1973 = vld [vmem:[%s1063 + $0x73] sm:$0xff]
        %v1974 = vlaneseq
        %v1975 = vshrl.u32 %v1974, 7
        %v1976 = vsub.s32 0, %v1975
        %v1977 = vrot.slane %v1739, %v1976
        %v1978 = vmul.f32 %v1966, %v1977
        %v1979 = vmul.f32 %v1967, %v1977
        %v1980 = vmul.f32 %v1968, %v1977
        %v1981 = vmul.f32 %v1969, %v1977
        %v1982 = vmul.f32 %v1970, %v1977
        %v1983 = vmul.f32 %v1971, %v1977
        %v1984 = vmul.f32 %v1972, %v1977
        %v1985 = vmul.f32 %v1973, %v1977
        %v1986 = vadd.f32 %v1958, %v1978
        %v1987 = vadd.f32 %v1959, %v1979
        %v1988 = vadd.f32 %v1960, %v1980
        %v1989 = vadd.f32 %v1961, %v1981
        %v1990 = vadd.f32 %v1962, %v1982
        %v1991 = vadd.f32 %v1963, %v1983
        %v1992 = vadd.f32 %v1964, %v1984
        %v1993 = vadd.f32 %v1965, %v1985
        %v1994 = vld [vmem:[%s1063 + $0x4] sm:$0xff]
        %v1995 = vld [vmem:[%s1063 + $0x14] sm:$0xff]
        %v1996 = vld [vmem:[%s1063 + $0x24] sm:$0xff]
        %v1997 = vld [vmem:[%s1063 + $0x34] sm:$0xff]
        %v1998 = vld [vmem:[%s1063 + $0x44] sm:$0xff]
        %v1999 = vld [vmem:[%s1063 + $0x54] sm:$0xff]
        %v2000 = vld [vmem:[%s1063 + $0x64] sm:$0xff]
        %v2001 = vld [vmem:[%s1063 + $0x74] sm:$0xff]
        %v2002 = vlaneseq
        %v2003 = vshrl.u32 %v2002, 7
        %v2004 = vsub.s32 1, %v2003
        %v2005 = vrot.slane %v1739, %v2004
        %v2006 = vmul.f32 %v1994, %v2005
        %v2007 = vmul.f32 %v1995, %v2005
        %v2008 = vmul.f32 %v1996, %v2005
        %v2009 = vmul.f32 %v1997, %v2005
        %v2010 = vmul.f32 %v1998, %v2005
        %v2011 = vmul.f32 %v1999, %v2005
        %v2012 = vmul.f32 %v2000, %v2005
        %v2013 = vmul.f32 %v2001, %v2005
        %v2014 = vadd.f32 %v1986, %v2006
        %v2015 = vadd.f32 %v1987, %v2007
        %v2016 = vadd.f32 %v1988, %v2008
        %v2017 = vadd.f32 %v1989, %v2009
        %v2018 = vadd.f32 %v1990, %v2010
        %v2019 = vadd.f32 %v1991, %v2011
        %v2020 = vadd.f32 %v1992, %v2012
        %v2021 = vadd.f32 %v1993, %v2013
        %v2022 = vld [vmem:[%s606] sm:$0xff]
        %v2023 = vld [vmem:[%s606 + $0x10] sm:$0xff]
        %v2024 = vld [vmem:[%s606 + $0x20] sm:$0xff]
        %v2025 = vld [vmem:[%s606 + $0x30] sm:$0xff]
        %v2026 = vld [vmem:[%s606 + $0x40] sm:$0xff]
        %v2027 = vld [vmem:[%s606 + $0x50] sm:$0xff]
        %v2028 = vld [vmem:[%s606 + $0x60] sm:$0xff]
        %v2029 = vld [vmem:[%s606 + $0x70] sm:$0xff]
        %v2030 = vlaneseq
        %v2031 = vshrl.u32 %v2030, 7
        %v2032 = vsub.s32 2, %v2031
        %v2033 = vrot.slane %v1739, %v2032
        %v2034 = vmul.f32 %v2022, %v2033
        %v2035 = vmul.f32 %v2023, %v2033
        %v2036 = vmul.f32 %v2024, %v2033
        %v2037 = vmul.f32 %v2025, %v2033
        %v2038 = vmul.f32 %v2026, %v2033
        %v2039 = vmul.f32 %v2027, %v2033
        %v2040 = vmul.f32 %v2028, %v2033
        %v2041 = vmul.f32 %v2029, %v2033
        %v2042 = vadd.f32 %v2014, %v2034
        %v2043 = vadd.f32 %v2015, %v2035
        %v2044 = vadd.f32 %v2016, %v2036
        %v2045 = vadd.f32 %v2017, %v2037
        %v2046 = vadd.f32 %v2018, %v2038
        %v2047 = vadd.f32 %v2019, %v2039
        %v2048 = vadd.f32 %v2020, %v2040
        %v2049 = vadd.f32 %v2021, %v2041
        %v2050 = vld [vmem:[%s606 + $0x1] sm:$0xff]
        %v2051 = vld [vmem:[%s606 + $0x11] sm:$0xff]
        %v2052 = vld [vmem:[%s606 + $0x21] sm:$0xff]
        %v2053 = vld [vmem:[%s606 + $0x31] sm:$0xff]
        %v2054 = vld [vmem:[%s606 + $0x41] sm:$0xff]
        %v2055 = vld [vmem:[%s606 + $0x51] sm:$0xff]
        %v2056 = vld [vmem:[%s606 + $0x61] sm:$0xff]
        %v2057 = vld [vmem:[%s606 + $0x71] sm:$0xff]
        %v2058 = vlaneseq
        %v2059 = vshrl.u32 %v2058, 7
        %v2060 = vsub.s32 3, %v2059
        %v2061 = vrot.slane %v1739, %v2060
        %v2062 = vmul.f32 %v2050, %v2061
        %v2063 = vmul.f32 %v2051, %v2061
        %v2064 = vmul.f32 %v2052, %v2061
        %v2065 = vmul.f32 %v2053, %v2061
        %v2066 = vmul.f32 %v2054, %v2061
        %v2067 = vmul.f32 %v2055, %v2061
        %v2068 = vmul.f32 %v2056, %v2061
        %v2069 = vmul.f32 %v2057, %v2061
        %v2070 = vadd.f32 %v2042, %v2062
        %v2071 = vadd.f32 %v2043, %v2063
        %v2072 = vadd.f32 %v2044, %v2064
        %v2073 = vadd.f32 %v2045, %v2065
        %v2074 = vadd.f32 %v2046, %v2066
        %v2075 = vadd.f32 %v2047, %v2067
        %v2076 = vadd.f32 %v2048, %v2068
        %v2077 = vadd.f32 %v2049, %v2069
        %v2078 = vld [vmem:[%s606 + $0x2] sm:$0xff]
        %v2079 = vld [vmem:[%s606 + $0x12] sm:$0xff]
        %v2080 = vld [vmem:[%s606 + $0x22] sm:$0xff]
        %v2081 = vld [vmem:[%s606 + $0x32] sm:$0xff]
        %v2082 = vld [vmem:[%s606 + $0x42] sm:$0xff]
        %v2083 = vld [vmem:[%s606 + $0x52] sm:$0xff]
        %v2084 = vld [vmem:[%s606 + $0x62] sm:$0xff]
        %v2085 = vld [vmem:[%s606 + $0x72] sm:$0xff]
        %v2086 = vlaneseq
        %v2087 = vshrl.u32 %v2086, 7
        %v2088 = vsub.s32 4, %v2087
        %v2089 = vrot.slane %v1739, %v2088
        %v2090 = vmul.f32 %v2078, %v2089
        %v2091 = vmul.f32 %v2079, %v2089
        %v2092 = vmul.f32 %v2080, %v2089
        %v2093 = vmul.f32 %v2081, %v2089
        %v2094 = vmul.f32 %v2082, %v2089
        %v2095 = vmul.f32 %v2083, %v2089
        %v2096 = vmul.f32 %v2084, %v2089
        %v2097 = vmul.f32 %v2085, %v2089
        %v2098 = vadd.f32 %v2070, %v2090
        %v2099 = vadd.f32 %v2071, %v2091
        %v2100 = vadd.f32 %v2072, %v2092
        %v2101 = vadd.f32 %v2073, %v2093
        %v2102 = vadd.f32 %v2074, %v2094
        %v2103 = vadd.f32 %v2075, %v2095
        %v2104 = vadd.f32 %v2076, %v2096
        %v2105 = vadd.f32 %v2077, %v2097
        %v2106 = vld [vmem:[%s606 + $0x3] sm:$0xff]
        %v2107 = vld [vmem:[%s606 + $0x13] sm:$0xff]
        %v2108 = vld [vmem:[%s606 + $0x23] sm:$0xff]
        %v2109 = vld [vmem:[%s606 + $0x33] sm:$0xff]
        %v2110 = vld [vmem:[%s606 + $0x43] sm:$0xff]
        %v2111 = vld [vmem:[%s606 + $0x53] sm:$0xff]
        %v2112 = vld [vmem:[%s606 + $0x63] sm:$0xff]
        %v2113 = vld [vmem:[%s606 + $0x73] sm:$0xff]
        %v2114 = vlaneseq
        %v2115 = vshrl.u32 %v2114, 7
        %v2116 = vsub.s32 5, %v2115
        %v2117 = vrot.slane %v1739, %v2116
        %v2118 = vmul.f32 %v2106, %v2117
        %v2119 = vmul.f32 %v2107, %v2117
        %v2120 = vmul.f32 %v2108, %v2117
        %v2121 = vmul.f32 %v2109, %v2117
        %v2122 = vmul.f32 %v2110, %v2117
        %v2123 = vmul.f32 %v2111, %v2117
        %v2124 = vmul.f32 %v2112, %v2117
        %v2125 = vmul.f32 %v2113, %v2117
        %v2126 = vadd.f32 %v2098, %v2118
        %v2127 = vadd.f32 %v2099, %v2119
        %v2128 = vadd.f32 %v2100, %v2120
        %v2129 = vadd.f32 %v2101, %v2121
        %v2130 = vadd.f32 %v2102, %v2122
        %v2131 = vadd.f32 %v2103, %v2123
        %v2132 = vadd.f32 %v2104, %v2124
        %v2133 = vadd.f32 %v2105, %v2125
        %v2134 = vld [vmem:[%s606 + $0x4] sm:$0xff]
        %v2135 = vld [vmem:[%s606 + $0x14] sm:$0xff]
        %v2136 = vld [vmem:[%s606 + $0x24] sm:$0xff]
        %v2137 = vld [vmem:[%s606 + $0x34] sm:$0xff]
        %v2138 = vld [vmem:[%s606 + $0x44] sm:$0xff]
        %v2139 = vld [vmem:[%s606 + $0x54] sm:$0xff]
        %v2140 = vld [vmem:[%s606 + $0x64] sm:$0xff]
        %v2141 = vld [vmem:[%s606 + $0x74] sm:$0xff]
        %v2142 = vlaneseq
        %v2143 = vshrl.u32 %v2142, 7
        %v2144 = vsub.s32 6, %v2143
        %v2145 = vrot.slane %v1739, %v2144
        %v2146 = vmul.f32 %v2134, %v2145
        %v2147 = vmul.f32 %v2135, %v2145
        %v2148 = vmul.f32 %v2136, %v2145
        %v2149 = vmul.f32 %v2137, %v2145
        %v2150 = vmul.f32 %v2138, %v2145
        %v2151 = vmul.f32 %v2139, %v2145
        %v2152 = vmul.f32 %v2140, %v2145
        %v2153 = vmul.f32 %v2141, %v2145
        %v2154 = vadd.f32 %v2126, %v2146
        %v2155 = vadd.f32 %v2127, %v2147
        %v2156 = vadd.f32 %v2128, %v2148
        %v2157 = vadd.f32 %v2129, %v2149
        %v2158 = vadd.f32 %v2130, %v2150
        %v2159 = vadd.f32 %v2131, %v2151
        %v2160 = vadd.f32 %v2132, %v2152
        %v2161 = vadd.f32 %v2133, %v2153
        %v2162 = vld [vmem:[%s1344] sm:$0xff]
        %v2163 = vld [vmem:[%s1344 + $0x10] sm:$0xff]
        %v2164 = vld [vmem:[%s1344 + $0x20] sm:$0xff]
        %v2165 = vld [vmem:[%s1344 + $0x30] sm:$0xff]
        %v2166 = vld [vmem:[%s1344 + $0x40] sm:$0xff]
        %v2167 = vld [vmem:[%s1344 + $0x50] sm:$0xff]
        %v2168 = vld [vmem:[%s1344 + $0x60] sm:$0xff]
        %v2169 = vld [vmem:[%s1344 + $0x70] sm:$0xff]
        %v2170 = vlaneseq
        %v2171 = vshrl.u32 %v2170, 7
        %v2172 = vsub.s32 7, %v2171
        %v2173 = vrot.slane %v1739, %v2172
        %v2174 = vmul.f32 %v2162, %v2173
        %v2175 = vmul.f32 %v2163, %v2173
        %v2176 = vmul.f32 %v2164, %v2173
        %v2177 = vmul.f32 %v2165, %v2173
        %v2178 = vmul.f32 %v2166, %v2173
        %v2179 = vmul.f32 %v2167, %v2173
        %v2180 = vmul.f32 %v2168, %v2173
        %v2181 = vmul.f32 %v2169, %v2173
        %v2182 = vadd.f32 %v2154, %v2174
        %v2183 = vadd.f32 %v2155, %v2175
        %v2184 = vadd.f32 %v2156, %v2176
        %v2185 = vadd.f32 %v2157, %v2177
        %v2186 = vadd.f32 %v2158, %v2178
        %v2187 = vadd.f32 %v2159, %v2179
        %v2188 = vadd.f32 %v2160, %v2180
        %v2189 = vadd.f32 %v2161, %v2181
        %v2190 = vld [vmem:[%s1344 + $0x1] sm:$0xff]
        %v2191 = vld [vmem:[%s1344 + $0x11] sm:$0xff]
        %v2192 = vld [vmem:[%s1344 + $0x21] sm:$0xff]
        %v2193 = vld [vmem:[%s1344 + $0x31] sm:$0xff]
        %v2194 = vld [vmem:[%s1344 + $0x41] sm:$0xff]
        %v2195 = vld [vmem:[%s1344 + $0x51] sm:$0xff]
        %v2196 = vld [vmem:[%s1344 + $0x61] sm:$0xff]
        %v2197 = vld [vmem:[%s1344 + $0x71] sm:$0xff]
        %v2198 = vlaneseq
        %v2199 = vshrl.u32 %v2198, 7
        %v2200 = vsub.s32 0, %v2199
        %v2201 = vrot.slane %v1740, %v2200
        %v2202 = vmul.f32 %v2190, %v2201
        %v2203 = vmul.f32 %v2191, %v2201
        %v2204 = vmul.f32 %v2192, %v2201
        %v2205 = vmul.f32 %v2193, %v2201
        %v2206 = vmul.f32 %v2194, %v2201
        %v2207 = vmul.f32 %v2195, %v2201
        %v2208 = vmul.f32 %v2196, %v2201
        %v2209 = vmul.f32 %v2197, %v2201
        %v2210 = vadd.f32 %v2182, %v2202
        %v2211 = vadd.f32 %v2183, %v2203
        %v2212 = vadd.f32 %v2184, %v2204
        %v2213 = vadd.f32 %v2185, %v2205
        %v2214 = vadd.f32 %v2186, %v2206
        %v2215 = vadd.f32 %v2187, %v2207
        %v2216 = vadd.f32 %v2188, %v2208
        %v2217 = vadd.f32 %v2189, %v2209
        %v2218 = vld [vmem:[%s1344 + $0x2] sm:$0xff]
        %v2219 = vld [vmem:[%s1344 + $0x12] sm:$0xff]
        %v2220 = vld [vmem:[%s1344 + $0x22] sm:$0xff]
        %v2221 = vld [vmem:[%s1344 + $0x32] sm:$0xff]
        %v2222 = vld [vmem:[%s1344 + $0x42] sm:$0xff]
        %v2223 = vld [vmem:[%s1344 + $0x52] sm:$0xff]
        %v2224 = vld [vmem:[%s1344 + $0x62] sm:$0xff]
        %v2225 = vld [vmem:[%s1344 + $0x72] sm:$0xff]
        %v2226 = vlaneseq
        %v2227 = vshrl.u32 %v2226, 7
        %v2228 = vsub.s32 1, %v2227
        %v2229 = vrot.slane %v1740, %v2228
        %v2230 = vmul.f32 %v2218, %v2229
        %v2231 = vmul.f32 %v2219, %v2229
        %v2232 = vmul.f32 %v2220, %v2229
        %v2233 = vmul.f32 %v2221, %v2229
        %v2234 = vmul.f32 %v2222, %v2229
        %v2235 = vmul.f32 %v2223, %v2229
        %v2236 = vmul.f32 %v2224, %v2229
        %v2237 = vmul.f32 %v2225, %v2229
        %v2238 = vadd.f32 %v2210, %v2230
        %v2239 = vadd.f32 %v2211, %v2231
        %v2240 = vadd.f32 %v2212, %v2232
        %v2241 = vadd.f32 %v2213, %v2233
        %v2242 = vadd.f32 %v2214, %v2234
        %v2243 = vadd.f32 %v2215, %v2235
        %v2244 = vadd.f32 %v2216, %v2236
        %v2245 = vadd.f32 %v2217, %v2237
        %v2246 = vld [vmem:[%s1344 + $0x3] sm:$0xff]
        %v2247 = vld [vmem:[%s1344 + $0x13] sm:$0xff]
        %v2248 = vld [vmem:[%s1344 + $0x23] sm:$0xff]
        %v2249 = vld [vmem:[%s1344 + $0x33] sm:$0xff]
        %v2250 = vld [vmem:[%s1344 + $0x43] sm:$0xff]
        %v2251 = vld [vmem:[%s1344 + $0x53] sm:$0xff]
        %v2252 = vld [vmem:[%s1344 + $0x63] sm:$0xff]
        %v2253 = vld [vmem:[%s1344 + $0x73] sm:$0xff]
        %v2254 = vlaneseq
        %v2255 = vshrl.u32 %v2254, 7
        %v2256 = vsub.s32 2, %v2255
        %v2257 = vrot.slane %v1740, %v2256
        %v2258 = vmul.f32 %v2246, %v2257
        %v2259 = vmul.f32 %v2247, %v2257
        %v2260 = vmul.f32 %v2248, %v2257
        %v2261 = vmul.f32 %v2249, %v2257
        %v2262 = vmul.f32 %v2250, %v2257
        %v2263 = vmul.f32 %v2251, %v2257
        %v2264 = vmul.f32 %v2252, %v2257
        %v2265 = vmul.f32 %v2253, %v2257
        %v2266 = vadd.f32 %v2238, %v2258
        %v2267 = vadd.f32 %v2239, %v2259
        %v2268 = vadd.f32 %v2240, %v2260
        %v2269 = vadd.f32 %v2241, %v2261
        %v2270 = vadd.f32 %v2242, %v2262
        %v2271 = vadd.f32 %v2243, %v2263
        %v2272 = vadd.f32 %v2244, %v2264
        %v2273 = vadd.f32 %v2245, %v2265
        %v2274 = vld [vmem:[%s1344 + $0x4] sm:$0xff]
        %v2275 = vld [vmem:[%s1344 + $0x14] sm:$0xff]
        %v2276 = vld [vmem:[%s1344 + $0x24] sm:$0xff]
        %v2277 = vld [vmem:[%s1344 + $0x34] sm:$0xff]
        %v2278 = vld [vmem:[%s1344 + $0x44] sm:$0xff]
        %v2279 = vld [vmem:[%s1344 + $0x54] sm:$0xff]
        %v2280 = vld [vmem:[%s1344 + $0x64] sm:$0xff]
        %v2281 = vld [vmem:[%s1344 + $0x74] sm:$0xff]
        %v2282 = vlaneseq
        %v2283 = vshrl.u32 %v2282, 7
        %v2284 = vsub.s32 3, %v2283
        %v2285 = vrot.slane %v1740, %v2284
        %v2286 = vmul.f32 %v2274, %v2285
        %v2287 = vmul.f32 %v2275, %v2285
        %v2288 = vmul.f32 %v2276, %v2285
        %v2289 = vmul.f32 %v2277, %v2285
        %v2290 = vmul.f32 %v2278, %v2285
        %v2291 = vmul.f32 %v2279, %v2285
        %v2292 = vmul.f32 %v2280, %v2285
        %v2293 = vmul.f32 %v2281, %v2285
        %v2294 = vadd.f32 %v2266, %v2286
        %v2295 = vadd.f32 %v2267, %v2287
        %v2296 = vadd.f32 %v2268, %v2288
        %v2297 = vadd.f32 %v2269, %v2289
        %v2298 = vadd.f32 %v2270, %v2290
        %v2299 = vadd.f32 %v2271, %v2291
        %v2300 = vadd.f32 %v2272, %v2292
        %v2301 = vadd.f32 %v2273, %v2293
        %v2302 = vld [vmem:[%s1485] sm:$0xff]
        %v2303 = vld [vmem:[%s1485 + $0x10] sm:$0xff]
        %v2304 = vld [vmem:[%s1485 + $0x20] sm:$0xff]
        %v2305 = vld [vmem:[%s1485 + $0x30] sm:$0xff]
        %v2306 = vld [vmem:[%s1485 + $0x40] sm:$0xff]
        %v2307 = vld [vmem:[%s1485 + $0x50] sm:$0xff]
        %v2308 = vld [vmem:[%s1485 + $0x60] sm:$0xff]
        %v2309 = vld [vmem:[%s1485 + $0x70] sm:$0xff]
        %v2310 = vlaneseq
        %v2311 = vshrl.u32 %v2310, 7
        %v2312 = vsub.s32 4, %v2311
        %v2313 = vrot.slane %v1740, %v2312
        %v2314 = vmul.f32 %v2302, %v2313
        %v2315 = vmul.f32 %v2303, %v2313
        %v2316 = vmul.f32 %v2304, %v2313
        %v2317 = vmul.f32 %v2305, %v2313
        %v2318 = vmul.f32 %v2306, %v2313
        %v2319 = vmul.f32 %v2307, %v2313
        %v2320 = vmul.f32 %v2308, %v2313
        %v2321 = vmul.f32 %v2309, %v2313
        %v2322 = vadd.f32 %v2294, %v2314
        %v2323 = vadd.f32 %v2295, %v2315
        %v2324 = vadd.f32 %v2296, %v2316
        %v2325 = vadd.f32 %v2297, %v2317
        %v2326 = vadd.f32 %v2298, %v2318
        %v2327 = vadd.f32 %v2299, %v2319
        %v2328 = vadd.f32 %v2300, %v2320
        %v2329 = vadd.f32 %v2301, %v2321
        %v2330 = vld [vmem:[%s1485 + $0x1] sm:$0xff]
        %v2331 = vld [vmem:[%s1485 + $0x11] sm:$0xff]
        %v2332 = vld [vmem:[%s1485 + $0x21] sm:$0xff]
        %v2333 = vld [vmem:[%s1485 + $0x31] sm:$0xff]
        %v2334 = vld [vmem:[%s1485 + $0x41] sm:$0xff]
        %v2335 = vld [vmem:[%s1485 + $0x51] sm:$0xff]
        %v2336 = vld [vmem:[%s1485 + $0x61] sm:$0xff]
        %v2337 = vld [vmem:[%s1485 + $0x71] sm:$0xff]
        %v2338 = vlaneseq
        %v2339 = vshrl.u32 %v2338, 7
        %v2340 = vsub.s32 5, %v2339
        %v2341 = vrot.slane %v1740, %v2340
        %v2342 = vmul.f32 %v2330, %v2341
        %v2343 = vmul.f32 %v2331, %v2341
        %v2344 = vmul.f32 %v2332, %v2341
        %v2345 = vmul.f32 %v2333, %v2341
        %v2346 = vmul.f32 %v2334, %v2341
        %v2347 = vmul.f32 %v2335, %v2341
        %v2348 = vmul.f32 %v2336, %v2341
        %v2349 = vmul.f32 %v2337, %v2341
        %v2350 = vadd.f32 %v2322, %v2342
        %v2351 = vadd.f32 %v2323, %v2343
        %v2352 = vadd.f32 %v2324, %v2344
        %v2353 = vadd.f32 %v2325, %v2345
        %v2354 = vadd.f32 %v2326, %v2346
        %v2355 = vadd.f32 %v2327, %v2347
        %v2356 = vadd.f32 %v2328, %v2348
        %v2357 = vadd.f32 %v2329, %v2349
        %v2358 = vld [vmem:[%s1485 + $0x2] sm:$0xff]
        %v2359 = vld [vmem:[%s1485 + $0x12] sm:$0xff]
        %v2360 = vld [vmem:[%s1485 + $0x22] sm:$0xff]
        %v2361 = vld [vmem:[%s1485 + $0x32] sm:$0xff]
        %v2362 = vld [vmem:[%s1485 + $0x42] sm:$0xff]
        %v2363 = vld [vmem:[%s1485 + $0x52] sm:$0xff]
        %v2364 = vld [vmem:[%s1485 + $0x62] sm:$0xff]
        %v2365 = vld [vmem:[%s1485 + $0x72] sm:$0xff]
        %v2366 = vlaneseq
        %v2367 = vshrl.u32 %v2366, 7
        %v2368 = vsub.s32 6, %v2367
        %v2369 = vrot.slane %v1740, %v2368
        %v2370 = vmul.f32 %v2358, %v2369
        %v2371 = vmul.f32 %v2359, %v2369
        %v2372 = vmul.f32 %v2360, %v2369
        %v2373 = vmul.f32 %v2361, %v2369
        %v2374 = vmul.f32 %v2362, %v2369
        %v2375 = vmul.f32 %v2363, %v2369
        %v2376 = vmul.f32 %v2364, %v2369
        %v2377 = vmul.f32 %v2365, %v2369
        %v2378 = vadd.f32 %v2350, %v2370
        %v2379 = vadd.f32 %v2351, %v2371
        %v2380 = vadd.f32 %v2352, %v2372
        %v2381 = vadd.f32 %v2353, %v2373
        %v2382 = vadd.f32 %v2354, %v2374
        %v2383 = vadd.f32 %v2355, %v2375
        %v2384 = vadd.f32 %v2356, %v2376
        %v2385 = vadd.f32 %v2357, %v2377
        %v2386 = vld [vmem:[%s1485 + $0x3] sm:$0xff]
        %v2387 = vld [vmem:[%s1485 + $0x13] sm:$0xff]
        %v2388 = vld [vmem:[%s1485 + $0x23] sm:$0xff]
        %v2389 = vld [vmem:[%s1485 + $0x33] sm:$0xff]
        %v2390 = vld [vmem:[%s1485 + $0x43] sm:$0xff]
        %v2391 = vld [vmem:[%s1485 + $0x53] sm:$0xff]
        %v2392 = vld [vmem:[%s1485 + $0x63] sm:$0xff]
        %v2393 = vld [vmem:[%s1485 + $0x73] sm:$0xff]
        %v2394 = vlaneseq
        %v2395 = vshrl.u32 %v2394, 7
        %v2396 = vsub.s32 7, %v2395
        %v2397 = vrot.slane %v1740, %v2396
        %v2398 = vmul.f32 %v2386, %v2397
        %v2399 = vmul.f32 %v2387, %v2397
        %v2400 = vmul.f32 %v2388, %v2397
        %v2401 = vmul.f32 %v2389, %v2397
        %v2402 = vmul.f32 %v2390, %v2397
        %v2403 = vmul.f32 %v2391, %v2397
        %v2404 = vmul.f32 %v2392, %v2397
        %v2405 = vmul.f32 %v2393, %v2397
        %v2406 = vadd.f32 %v2378, %v2398
        %v2407 = vadd.f32 %v2379, %v2399
        %v2408 = vadd.f32 %v2380, %v2400
        %v2409 = vadd.f32 %v2381, %v2401
        %v2410 = vadd.f32 %v2382, %v2402
        %v2411 = vadd.f32 %v2383, %v2403
        %v2412 = vadd.f32 %v2384, %v2404
        %v2413 = vadd.f32 %v2385, %v2405
        %v2414 = vld [vmem:[%s1485 + $0x4] sm:$0xff]
        %v2415 = vld [vmem:[%s1485 + $0x14] sm:$0xff]
        %v2416 = vld [vmem:[%s1485 + $0x24] sm:$0xff]
        %v2417 = vld [vmem:[%s1485 + $0x34] sm:$0xff]
        %v2418 = vld [vmem:[%s1485 + $0x44] sm:$0xff]
        %v2419 = vld [vmem:[%s1485 + $0x54] sm:$0xff]
        %v2420 = vld [vmem:[%s1485 + $0x64] sm:$0xff]
        %v2421 = vld [vmem:[%s1485 + $0x74] sm:$0xff]
        %v2422 = vlaneseq
        %v2423 = vshrl.u32 %v2422, 7
        %v2424 = vsub.s32 0, %v2423
        %v2425 = vrot.slane %v1741, %v2424
        %v2426 = vmul.f32 %v2414, %v2425
        %v2427 = vmul.f32 %v2415, %v2425
        %v2428 = vmul.f32 %v2416, %v2425
        %v2429 = vmul.f32 %v2417, %v2425
        %v2430 = vmul.f32 %v2418, %v2425
        %v2431 = vmul.f32 %v2419, %v2425
        %v2432 = vmul.f32 %v2420, %v2425
        %v2433 = vmul.f32 %v2421, %v2425
        %v2434 = vadd.f32 %v2406, %v2426
        %v2435 = vadd.f32 %v2407, %v2427
        %v2436 = vadd.f32 %v2408, %v2428
        %v2437 = vadd.f32 %v2409, %v2429
        %v2438 = vadd.f32 %v2410, %v2430
        %v2439 = vadd.f32 %v2411, %v2431
        %v2440 = vadd.f32 %v2412, %v2432
        %v2441 = vadd.f32 %v2413, %v2433
        %v2442 = vpack.c.bf16 %v2435, %v2434
        %v2443 = vpack.c.bf16 %v2437, %v2436
        %v2444 = vpack.c.bf16 %v2439, %v2438
        %v2445 = vpack.c.bf16 %v2441, %v2440
        %v2446 = vld [vmem:[%s13] sm:$0xf]
        %v2447 = vld [vmem:[%s13 + $0x4] sm:$0xf]
        %v2448 = vld [vmem:[%s14] sm:$0x1]
        %v2450 = vlaneseq
        %v2451 = vshrl.u32 %v2450, 7
        %v2452 = vsub.s32 0, %v2451
        %v2453 = vrot.slane %v2448, %v2452
        %v2457 = vunpack.c.l.b16 %v2446
        %v2458 = vunpack.c.l.b16 %v2447
        %v2459 = vpack.c.b16 %v2458, %v2457
        %v2462 = vsel %vm595, %v2442, 0
        %v2465 = vsel %vm595, %v2443, 0
        %v2468 = vsel %vm595, %v2444, 0
        %v2471 = vsel %vm595, %v2445, 0
        %2473 = vmatprep.subr.bf16.mxu0 0
        %2474 = vmatpush1.bf16.msra.mxu0 %v2459
        %2475 = vmatprep.subr.bf16.mxu0 0
        %2476 = vmatpush1.bf16.msra.mxu0 0
        %2477 = vmatprep.subr.bf16.mxu0 0
        %2478 = vmatpush1.bf16.msra.mxu0 0
        %2479 = vmatprep.subr.bf16.mxu0 0
        %2480 = vmatpush1.bf16.msra.mxu0 0
        %2481 = vmatprep.subr.bf16.mxu0 0
        %2482 = vmatpush1.bf16.msra.mxu0 0
        %2483 = vmatprep.subr.bf16.mxu0 0
        %2484 = vmatpush1.bf16.msra.mxu0 0
        %2485 = vmatprep.subr.bf16.mxu0 0
        %2486 = vmatpush1.bf16.msra.mxu0 0
        %2487 = vmatprep.subr.bf16.mxu0 0
        %2488 = vmatpush1.bf16.msra.mxu0 0
        %2489 = vmatprep.subr.bf16.mxu0 0
        %2490 = vmatpush1.bf16.msra.mxu0 0
        %2491 = vmatprep.subr.bf16.mxu0 0
        %2492 = vmatpush1.bf16.msra.mxu0 0
        %2493 = vmatprep.subr.bf16.mxu0 0
        %2494 = vmatpush1.bf16.msra.mxu0 0
        %2495 = vmatprep.subr.bf16.mxu0 0
        %2496 = vmatpush1.bf16.msra.mxu0 0
        %2497 = vmatprep.subr.bf16.mxu0 0
        %2498 = vmatpush1.bf16.msra.mxu0 0
        %2499 = vmatprep.subr.bf16.mxu0 0
        %2500 = vmatpush1.bf16.msra.mxu0 0
        %2501 = vmatprep.subr.bf16.mxu0 0
        %2502 = vmatpush1.bf16.msra.mxu0 0
        %2503 = vmatprep.subr.bf16.mxu0 0
        %2504 = vmatpush1.bf16.msra.mxu0 0
        %2505 = vmatprep.mubr.bf16.mxu0 0
        %2506 = vmatmul.mubr.bf16.gmra.mrb[0].mxu0 %v2462
        %v2507 = vpop.f32.mrb[0].mxu0
        %v2508 = vadd.f32 %v2453, %v2507
        %v2509 = vpop.f32.mrb[0].mxu0
        %v2510 = vpop.f32.mrb[0].mxu0
        %v2511 = vadd.f32 %v2453, %v2510
        %v2512 = vpop.f32.mrb[0].mxu0
        %2513 = vmatprep.mubr.bf16.mxu0 0
        %2514 = vmatmul.mubr.bf16.gmra.mrb[0].mxu0 %v2465
        %v2515 = vpop.f32.mrb[0].mxu0
        %v2516 = vadd.f32 %v2453, %v2515
        %v2517 = vpop.f32.mrb[0].mxu0
        %v2518 = vpop.f32.mrb[0].mxu0
        %v2519 = vadd.f32 %v2453, %v2518
        %v2520 = vpop.f32.mrb[0].mxu0
        %2521 = vmatprep.mubr.bf16.mxu0 0
        %2522 = vmatmul.mubr.bf16.gmra.mrb[0].mxu0 %v2468
        %v2523 = vpop.f32.mrb[0].mxu0
        %v2524 = vadd.f32 %v2453, %v2523
        %v2525 = vpop.f32.mrb[0].mxu0
        %v2526 = vpop.f32.mrb[0].mxu0
        %v2527 = vadd.f32 %v2453, %v2526
        %v2528 = vpop.f32.mrb[0].mxu0
        %2529 = vmatprep.mubr.bf16.mxu0 0
        %2530 = vmatmul.mubr.bf16.gmra.mrb[0].mxu0 %v2471
        %v2531 = vpop.f32.mrb[0].mxu0
        %v2532 = vadd.f32 %v2453, %v2531
        %v2533 = vpop.f32.mrb[0].mxu0
        %v2534 = vpop.f32.mrb[0].mxu0
        %v2535 = vadd.f32 %v2453, %v2534
        %v2536 = vpop.f32.mrb[0].mxu0
        %2537 = vdwg.mxu0
        %2546 = vrot.lane.b32.xlu0 %v903, 112
        %v2547 = vpop.permute.xlu0 %2546
        %2548 = vrot.lane.b32.xlu0 %v904, 112
        %v2549 = vpop.permute.xlu0 %2548
        %2550 = vrot.lane.b32.xlu0 %v905, 112
        %v2551 = vpop.permute.xlu0 %2550
        %2552 = vrot.lane.b32.xlu0 %v906, 112
        %v2553 = vpop.permute.xlu0 %2552
        %2554 = vrot.lane.b32.xlu0 %v907, 112
        %v2555 = vpop.permute.xlu0 %2554
        %2556 = vrot.lane.b32.xlu0 %v908, 112
        %v2557 = vpop.permute.xlu0 %2556
        %2558 = vrot.lane.b32.xlu0 %v909, 112
        %v2559 = vpop.permute.xlu0 %2558
        %2560 = vrot.lane.b32.xlu0 %v910, 112
        %v2561 = vpop.permute.xlu0 %2560
        %2570 = vst.msk [vmem:[%s631 + $0x1] sm:$0xff] %vm624, %v2547
        %2571 = vst.msk [vmem:[%s631 + $0x11] sm:$0xff] %vm624, %v2549
        %2572 = vst.msk [vmem:[%s631 + $0x21] sm:$0xff] %vm624, %v2551
        %2573 = vst.msk [vmem:[%s631 + $0x31] sm:$0xff] %vm624, %v2553
        %2574 = vst.msk [vmem:[%s631 + $0x41] sm:$0xff] %vm624, %v2555
        %2575 = vst.msk [vmem:[%s631 + $0x51] sm:$0xff] %vm624, %v2557
        %2576 = vst.msk [vmem:[%s631 + $0x61] sm:$0xff] %vm624, %v2559
        %2577 = vst.msk [vmem:[%s631 + $0x71] sm:$0xff] %vm624, %v2561
        %v2578 = vld [vmem:[%s9] sm:$0xff]
        %v2579 = vld [vmem:[%s9 + $0x8] sm:$0x1]
        %v2580 = vld [vmem:[#allocation3] sm:$0xff]
        %v2581 = vld [vmem:[#allocation3 + $0x10] sm:$0xff]
        %v2582 = vld [vmem:[#allocation3 + $0x20] sm:$0xff]
        %v2583 = vld [vmem:[#allocation3 + $0x30] sm:$0xff]
        %v2584 = vld [vmem:[#allocation3 + $0x40] sm:$0xff]
        %v2585 = vld [vmem:[#allocation3 + $0x50] sm:$0xff]
        %v2586 = vld [vmem:[#allocation3 + $0x60] sm:$0xff]
        %v2587 = vld [vmem:[#allocation3 + $0x70] sm:$0xff]
        %v2588 = vlaneseq
        %v2589 = vshrl.u32 %v2588, 7
        %v2590 = vsub.s32 0, %v2589
        %v2591 = vrot.slane %v2578, %v2590
        %v2592 = vmul.f32 %v2580, %v2591
        %v2593 = vmul.f32 %v2581, %v2591
        %v2594 = vmul.f32 %v2582, %v2591
        %v2595 = vmul.f32 %v2583, %v2591
        %v2596 = vmul.f32 %v2584, %v2591
        %v2597 = vmul.f32 %v2585, %v2591
        %v2598 = vmul.f32 %v2586, %v2591
        %v2599 = vmul.f32 %v2587, %v2591
        %v2600 = vadd.f32 %v2592, 0.0
        %v2601 = vadd.f32 %v2593, 0.0
        %v2602 = vadd.f32 %v2594, 0.0
        %v2603 = vadd.f32 %v2595, 0.0
        %v2604 = vadd.f32 %v2596, 0.0
        %v2605 = vadd.f32 %v2597, 0.0
        %v2606 = vadd.f32 %v2598, 0.0
        %v2607 = vadd.f32 %v2599, 0.0
        %v2608 = vld [vmem:[#allocation3 + $0x1] sm:$0xff]
        %v2609 = vld [vmem:[#allocation3 + $0x11] sm:$0xff]
        %v2610 = vld [vmem:[#allocation3 + $0x21] sm:$0xff]
        %v2611 = vld [vmem:[#allocation3 + $0x31] sm:$0xff]
        %v2612 = vld [vmem:[#allocation3 + $0x41] sm:$0xff]
        %v2613 = vld [vmem:[#allocation3 + $0x51] sm:$0xff]
        %v2614 = vld [vmem:[#allocation3 + $0x61] sm:$0xff]
        %v2615 = vld [vmem:[#allocation3 + $0x71] sm:$0xff]
        %v2616 = vlaneseq
        %v2617 = vshrl.u32 %v2616, 7
        %v2618 = vsub.s32 1, %v2617
        %v2619 = vrot.slane %v2578, %v2618
        %v2620 = vmul.f32 %v2608, %v2619
        %v2621 = vmul.f32 %v2609, %v2619
        %v2622 = vmul.f32 %v2610, %v2619
        %v2623 = vmul.f32 %v2611, %v2619
        %v2624 = vmul.f32 %v2612, %v2619
        %v2625 = vmul.f32 %v2613, %v2619
        %v2626 = vmul.f32 %v2614, %v2619
        %v2627 = vmul.f32 %v2615, %v2619
        %v2628 = vadd.f32 %v2600, %v2620
        %v2629 = vadd.f32 %v2601, %v2621
        %v2630 = vadd.f32 %v2602, %v2622
        %v2631 = vadd.f32 %v2603, %v2623
        %v2632 = vadd.f32 %v2604, %v2624
        %v2633 = vadd.f32 %v2605, %v2625
        %v2634 = vadd.f32 %v2606, %v2626
        %v2635 = vadd.f32 %v2607, %v2627
        %v2636 = vld [vmem:[#allocation3 + $0x2] sm:$0xff]
        %v2637 = vld [vmem:[#allocation3 + $0x12] sm:$0xff]
        %v2638 = vld [vmem:[#allocation3 + $0x22] sm:$0xff]
        %v2639 = vld [vmem:[#allocation3 + $0x32] sm:$0xff]
        %v2640 = vld [vmem:[#allocation3 + $0x42] sm:$0xff]
        %v2641 = vld [vmem:[#allocation3 + $0x52] sm:$0xff]
        %v2642 = vld [vmem:[#allocation3 + $0x62] sm:$0xff]
        %v2643 = vld [vmem:[#allocation3 + $0x72] sm:$0xff]
        %v2644 = vlaneseq
        %v2645 = vshrl.u32 %v2644, 7
        %v2646 = vsub.s32 2, %v2645
        %v2647 = vrot.slane %v2578, %v2646
        %v2648 = vmul.f32 %v2636, %v2647
        %v2649 = vmul.f32 %v2637, %v2647
        %v2650 = vmul.f32 %v2638, %v2647
        %v2651 = vmul.f32 %v2639, %v2647
        %v2652 = vmul.f32 %v2640, %v2647
        %v2653 = vmul.f32 %v2641, %v2647
        %v2654 = vmul.f32 %v2642, %v2647
        %v2655 = vmul.f32 %v2643, %v2647
        %v2656 = vadd.f32 %v2628, %v2648
        %v2657 = vadd.f32 %v2629, %v2649
        %v2658 = vadd.f32 %v2630, %v2650
        %v2659 = vadd.f32 %v2631, %v2651
        %v2660 = vadd.f32 %v2632, %v2652
        %v2661 = vadd.f32 %v2633, %v2653
        %v2662 = vadd.f32 %v2634, %v2654
        %v2663 = vadd.f32 %v2635, %v2655
        %v2664 = vld [vmem:[%s631] sm:$0xff]
        %v2665 = vld [vmem:[%s631 + $0x10] sm:$0xff]
        %v2666 = vld [vmem:[%s631 + $0x20] sm:$0xff]
        %v2667 = vld [vmem:[%s631 + $0x30] sm:$0xff]
        %v2668 = vld [vmem:[%s631 + $0x40] sm:$0xff]
        %v2669 = vld [vmem:[%s631 + $0x50] sm:$0xff]
        %v2670 = vld [vmem:[%s631 + $0x60] sm:$0xff]
        %v2671 = vld [vmem:[%s631 + $0x70] sm:$0xff]
        %v2672 = vlaneseq
        %v2673 = vshrl.u32 %v2672, 7
        %v2674 = vsub.s32 3, %v2673
        %v2675 = vrot.slane %v2578, %v2674
        %v2676 = vmul.f32 %v2664, %v2675
        %v2677 = vmul.f32 %v2665, %v2675
        %v2678 = vmul.f32 %v2666, %v2675
        %v2679 = vmul.f32 %v2667, %v2675
        %v2680 = vmul.f32 %v2668, %v2675
        %v2681 = vmul.f32 %v2669, %v2675
        %v2682 = vmul.f32 %v2670, %v2675
        %v2683 = vmul.f32 %v2671, %v2675
        %v2684 = vadd.f32 %v2656, %v2676
        %v2685 = vadd.f32 %v2657, %v2677
        %v2686 = vadd.f32 %v2658, %v2678
        %v2687 = vadd.f32 %v2659, %v2679
        %v2688 = vadd.f32 %v2660, %v2680
        %v2689 = vadd.f32 %v2661, %v2681
        %v2690 = vadd.f32 %v2662, %v2682
        %v2691 = vadd.f32 %v2663, %v2683
        %v2692 = vld [vmem:[%s631 + $0x1] sm:$0xff]
        %v2693 = vld [vmem:[%s631 + $0x11] sm:$0xff]
        %v2694 = vld [vmem:[%s631 + $0x21] sm:$0xff]
        %v2695 = vld [vmem:[%s631 + $0x31] sm:$0xff]
        %v2696 = vld [vmem:[%s631 + $0x41] sm:$0xff]
        %v2697 = vld [vmem:[%s631 + $0x51] sm:$0xff]
        %v2698 = vld [vmem:[%s631 + $0x61] sm:$0xff]
        %v2699 = vld [vmem:[%s631 + $0x71] sm:$0xff]
        %v2700 = vlaneseq
        %v2701 = vshrl.u32 %v2700, 7
        %v2702 = vsub.s32 4, %v2701
        %v2703 = vrot.slane %v2578, %v2702
        %v2704 = vmul.f32 %v2692, %v2703
        %v2705 = vmul.f32 %v2693, %v2703
        %v2706 = vmul.f32 %v2694, %v2703
        %v2707 = vmul.f32 %v2695, %v2703
        %v2708 = vmul.f32 %v2696, %v2703
        %v2709 = vmul.f32 %v2697, %v2703
        %v2710 = vmul.f32 %v2698, %v2703
        %v2711 = vmul.f32 %v2699, %v2703
        %v2712 = vadd.f32 %v2684, %v2704
        %v2713 = vadd.f32 %v2685, %v2705
        %v2714 = vadd.f32 %v2686, %v2706
        %v2715 = vadd.f32 %v2687, %v2707
        %v2716 = vadd.f32 %v2688, %v2708
        %v2717 = vadd.f32 %v2689, %v2709
        %v2718 = vadd.f32 %v2690, %v2710
        %v2719 = vadd.f32 %v2691, %v2711
        %v2720 = vld [vmem:[%s631 + $0x2] sm:$0xff]
        %v2721 = vld [vmem:[%s631 + $0x12] sm:$0xff]
        %v2722 = vld [vmem:[%s631 + $0x22] sm:$0xff]
        %v2723 = vld [vmem:[%s631 + $0x32] sm:$0xff]
        %v2724 = vld [vmem:[%s631 + $0x42] sm:$0xff]
        %v2725 = vld [vmem:[%s631 + $0x52] sm:$0xff]
        %v2726 = vld [vmem:[%s631 + $0x62] sm:$0xff]
        %v2727 = vld [vmem:[%s631 + $0x72] sm:$0xff]
        %v2728 = vlaneseq
        %v2729 = vshrl.u32 %v2728, 7
        %v2730 = vsub.s32 5, %v2729
        %v2731 = vrot.slane %v2578, %v2730
        %v2732 = vmul.f32 %v2720, %v2731
        %v2733 = vmul.f32 %v2721, %v2731
        %v2734 = vmul.f32 %v2722, %v2731
        %v2735 = vmul.f32 %v2723, %v2731
        %v2736 = vmul.f32 %v2724, %v2731
        %v2737 = vmul.f32 %v2725, %v2731
        %v2738 = vmul.f32 %v2726, %v2731
        %v2739 = vmul.f32 %v2727, %v2731
        %v2740 = vadd.f32 %v2712, %v2732
        %v2741 = vadd.f32 %v2713, %v2733
        %v2742 = vadd.f32 %v2714, %v2734
        %v2743 = vadd.f32 %v2715, %v2735
        %v2744 = vadd.f32 %v2716, %v2736
        %v2745 = vadd.f32 %v2717, %v2737
        %v2746 = vadd.f32 %v2718, %v2738
        %v2747 = vadd.f32 %v2719, %v2739
        %s2748 = scalar_lea.vmem [#allocation3], 32
        %v2749 = vld [vmem:[%s2748] sm:$0xff]
        %v2750 = vld [vmem:[%s2748 + $0x10] sm:$0xff]
        %v2751 = vld [vmem:[%s2748 + $0x20] sm:$0xff]
        %v2752 = vld [vmem:[%s2748 + $0x30] sm:$0xff]
        %v2753 = vld [vmem:[%s2748 + $0x40] sm:$0xff]
        %v2754 = vld [vmem:[%s2748 + $0x50] sm:$0xff]
        %v2755 = vld [vmem:[%s2748 + $0x60] sm:$0xff]
        %v2756 = vld [vmem:[%s2748 + $0x70] sm:$0xff]
        %v2757 = vlaneseq
        %v2758 = vshrl.u32 %v2757, 7
        %v2759 = vsub.s32 6, %v2758
        %v2760 = vrot.slane %v2578, %v2759
        %v2761 = vmul.f32 %v2749, %v2760
        %v2762 = vmul.f32 %v2750, %v2760
        %v2763 = vmul.f32 %v2751, %v2760
        %v2764 = vmul.f32 %v2752, %v2760
        %v2765 = vmul.f32 %v2753, %v2760
        %v2766 = vmul.f32 %v2754, %v2760
        %v2767 = vmul.f32 %v2755, %v2760
        %v2768 = vmul.f32 %v2756, %v2760
        %v2769 = vadd.f32 %v2740, %v2761
        %v2770 = vadd.f32 %v2741, %v2762
        %v2771 = vadd.f32 %v2742, %v2763
        %v2772 = vadd.f32 %v2743, %v2764
        %v2773 = vadd.f32 %v2744, %v2765
        %v2774 = vadd.f32 %v2745, %v2766
        %v2775 = vadd.f32 %v2746, %v2767
        %v2776 = vadd.f32 %v2747, %v2768
        %v2777 = vld [vmem:[%s2748 + $0x1] sm:$0xff]
        %v2778 = vld [vmem:[%s2748 + $0x11] sm:$0xff]
        %v2779 = vld [vmem:[%s2748 + $0x21] sm:$0xff]
        %v2780 = vld [vmem:[%s2748 + $0x31] sm:$0xff]
        %v2781 = vld [vmem:[%s2748 + $0x41] sm:$0xff]
        %v2782 = vld [vmem:[%s2748 + $0x51] sm:$0xff]
        %v2783 = vld [vmem:[%s2748 + $0x61] sm:$0xff]
        %v2784 = vld [vmem:[%s2748 + $0x71] sm:$0xff]
        %v2785 = vlaneseq
        %v2786 = vshrl.u32 %v2785, 7
        %v2787 = vsub.s32 7, %v2786
        %v2788 = vrot.slane %v2578, %v2787
        %v2789 = vmul.f32 %v2777, %v2788
        %v2790 = vmul.f32 %v2778, %v2788
        %v2791 = vmul.f32 %v2779, %v2788
        %v2792 = vmul.f32 %v2780, %v2788
        %v2793 = vmul.f32 %v2781, %v2788
        %v2794 = vmul.f32 %v2782, %v2788
        %v2795 = vmul.f32 %v2783, %v2788
        %v2796 = vmul.f32 %v2784, %v2788
        %v2797 = vadd.f32 %v2769, %v2789
        %v2798 = vadd.f32 %v2770, %v2790
        %v2799 = vadd.f32 %v2771, %v2791
        %v2800 = vadd.f32 %v2772, %v2792
        %v2801 = vadd.f32 %v2773, %v2793
        %v2802 = vadd.f32 %v2774, %v2794
        %v2803 = vadd.f32 %v2775, %v2795
        %v2804 = vadd.f32 %v2776, %v2796
        %v2805 = vld [vmem:[%s2748 + $0x2] sm:$0xff]
        %v2806 = vld [vmem:[%s2748 + $0x12] sm:$0xff]
        %v2807 = vld [vmem:[%s2748 + $0x22] sm:$0xff]
        %v2808 = vld [vmem:[%s2748 + $0x32] sm:$0xff]
        %v2809 = vld [vmem:[%s2748 + $0x42] sm:$0xff]
        %v2810 = vld [vmem:[%s2748 + $0x52] sm:$0xff]
        %v2811 = vld [vmem:[%s2748 + $0x62] sm:$0xff]
        %v2812 = vld [vmem:[%s2748 + $0x72] sm:$0xff]
        %v2813 = vlaneseq
        %v2814 = vshrl.u32 %v2813, 7
        %v2815 = vsub.s32 0, %v2814
        %v2816 = vrot.slane %v2579, %v2815
        %v2817 = vmul.f32 %v2805, %v2816
        %v2818 = vmul.f32 %v2806, %v2816
        %v2819 = vmul.f32 %v2807, %v2816
        %v2820 = vmul.f32 %v2808, %v2816
        %v2821 = vmul.f32 %v2809, %v2816
        %v2822 = vmul.f32 %v2810, %v2816
        %v2823 = vmul.f32 %v2811, %v2816
        %v2824 = vmul.f32 %v2812, %v2816
        %v2825 = vadd.f32 %v2797, %v2817
        %v2826 = vadd.f32 %v2798, %v2818
        %v2827 = vadd.f32 %v2799, %v2819
        %v2828 = vadd.f32 %v2800, %v2820
        %v2829 = vadd.f32 %v2801, %v2821
        %v2830 = vadd.f32 %v2802, %v2822
        %v2831 = vadd.f32 %v2803, %v2823
        %v2832 = vadd.f32 %v2804, %v2824
        %v2833 = vpack.c.bf16 %v2826, %v2825
        %v2834 = vpack.c.bf16 %v2828, %v2827
        %v2835 = vpack.c.bf16 %v2830, %v2829
        %v2836 = vpack.c.bf16 %v2832, %v2831
        %v2837 = vld [vmem:[%s10] sm:$0xf]
        %v2838 = vld [vmem:[%s10 + $0x4] sm:$0xf]
        %v2839 = vld [vmem:[%s10 + $0x8] sm:$0xf]
        %v2840 = vld [vmem:[%s11] sm:$0x1]
        %v2842 = vlaneseq
        %v2843 = vshrl.u32 %v2842, 7
        %v2844 = vsub.s32 0, %v2843
        %v2845 = vrot.slane %v2840, %v2844
        %v2850 = vunpack.c.l.b16 %v2837
        %v2851 = vunpack.c.l.b16 %v2838
        %v2852 = vunpack.c.l.b16 %v2839
        %v2853 = vpack.c.b16 %v2851, %v2850
        %v2854 = vpack.c.b16 %v2852, %v2852
        %v2857 = vsel %vm624, %v2833, 0
        %v2860 = vsel %vm624, %v2834, 0
        %v2863 = vsel %vm624, %v2835, 0
        %v2866 = vsel %vm624, %v2836, 0
        %vm2868 = vcmask 1043456
        %v2870 = vsel %vm2868, %v2854, 0
        %2872 = vmatprep.subr.bf16.mxu0 0
        %2873 = vmatpush1.bf16.msra.mxu0 %v2853
        %2874 = vmatprep.subr.bf16.mxu0 0
        %2875 = vmatpush1.bf16.msra.mxu0 %v2870
        %2876 = vmatprep.subr.bf16.mxu0 0
        %2877 = vmatpush1.bf16.msra.mxu0 0
        %2878 = vmatprep.subr.bf16.mxu0 0
        %2879 = vmatpush1.bf16.msra.mxu0 0
        %2880 = vmatprep.subr.bf16.mxu0 0
        %2881 = vmatpush1.bf16.msra.mxu0 0
        %2882 = vmatprep.subr.bf16.mxu0 0
        %2883 = vmatpush1.bf16.msra.mxu0 0
        %2884 = vmatprep.subr.bf16.mxu0 0
        %2885 = vmatpush1.bf16.msra.mxu0 0
        %2886 = vmatprep.subr.bf16.mxu0 0
        %2887 = vmatpush1.bf16.msra.mxu0 0
        %2888 = vmatprep.subr.bf16.mxu0 0
        %2889 = vmatpush1.bf16.msra.mxu0 0
        %2890 = vmatprep.subr.bf16.mxu0 0
        %2891 = vmatpush1.bf16.msra.mxu0 0
        %2892 = vmatprep.subr.bf16.mxu0 0
        %2893 = vmatpush1.bf16.msra.mxu0 0
        %2894 = vmatprep.subr.bf16.mxu0 0
        %2895 = vmatpush1.bf16.msra.mxu0 0
        %2896 = vmatprep.subr.bf16.mxu0 0
        %2897 = vmatpush1.bf16.msra.mxu0 0
        %2898 = vmatprep.subr.bf16.mxu0 0
        %2899 = vmatpush1.bf16.msra.mxu0 0
        %2900 = vmatprep.subr.bf16.mxu0 0
        %2901 = vmatpush1.bf16.msra.mxu0 0
        %2902 = vmatprep.subr.bf16.mxu0 0
        %2903 = vmatpush1.bf16.msra.mxu0 0
        %2904 = vmatprep.mubr.bf16.mxu0 0
        %2905 = vmatmul.mubr.bf16.gmra.mrb[0].mxu0 %v2857
        %v2906 = vpop.f32.mrb[0].mxu0
        %v2907 = vadd.f32 %v2845, %v2906
        %v2908 = vpop.f32.mrb[0].mxu0
        %v2909 = vpop.f32.mrb[0].mxu0
        %v2910 = vadd.f32 %v2845, %v2909
        %v2911 = vpop.f32.mrb[0].mxu0
        %2912 = vmatprep.mubr.bf16.mxu0 0
        %2913 = vmatmul.mubr.bf16.gmra.mrb[0].mxu0 %v2860
        %v2914 = vpop.f32.mrb[0].mxu0
        %v2915 = vadd.f32 %v2845, %v2914
        %v2916 = vpop.f32.mrb[0].mxu0
        %v2917 = vpop.f32.mrb[0].mxu0
        %v2918 = vadd.f32 %v2845, %v2917
        %v2919 = vpop.f32.mrb[0].mxu0
        %2920 = vmatprep.mubr.bf16.mxu0 0
        %2921 = vmatmul.mubr.bf16.gmra.mrb[0].mxu0 %v2863
        %v2922 = vpop.f32.mrb[0].mxu0
        %v2923 = vadd.f32 %v2845, %v2922
        %v2924 = vpop.f32.mrb[0].mxu0
        %v2925 = vpop.f32.mrb[0].mxu0
        %v2926 = vadd.f32 %v2845, %v2925
        %v2927 = vpop.f32.mrb[0].mxu0
        %2928 = vmatprep.mubr.bf16.mxu0 0
        %2929 = vmatmul.mubr.bf16.gmra.mrb[0].mxu0 %v2866
        %v2930 = vpop.f32.mrb[0].mxu0
        %v2931 = vadd.f32 %v2845, %v2930
        %v2932 = vpop.f32.mrb[0].mxu0
        %v2933 = vpop.f32.mrb[0].mxu0
        %v2934 = vadd.f32 %v2845, %v2933
        %v2935 = vpop.f32.mrb[0].mxu0
        %2936 = vdwg.mxu0
        %v2937 = vmax.f32 %v2907, 0.0
        %v2938 = vmax.f32 %v2910, 0.0
        %v2939 = vmax.f32 %v2915, 0.0
        %v2940 = vmax.f32 %v2918, 0.0
        %v2941 = vmax.f32 %v2923, 0.0
        %v2942 = vmax.f32 %v2926, 0.0
        %v2943 = vmax.f32 %v2931, 0.0
        %v2944 = vmax.f32 %v2934, 0.0
        %2945 = vst.msk [vmem:[%s631 + $0x1] sm:$0xff] %vm624, %v2937
        %2946 = vst.msk [vmem:[%s631 + $0x11] sm:$0xff] %vm624, %v2938
        %2947 = vst.msk [vmem:[%s631 + $0x21] sm:$0xff] %vm624, %v2939
        %2948 = vst.msk [vmem:[%s631 + $0x31] sm:$0xff] %vm624, %v2940
        %2949 = vst.msk [vmem:[%s631 + $0x41] sm:$0xff] %vm624, %v2941
        %2950 = vst.msk [vmem:[%s631 + $0x51] sm:$0xff] %vm624, %v2942
        %2951 = vst.msk [vmem:[%s631 + $0x61] sm:$0xff] %vm624, %v2943
        %2952 = vst.msk [vmem:[%s631 + $0x71] sm:$0xff] %vm624, %v2944
        %v2953 = vld [vmem:[%s15] sm:$0xff]
        %v2954 = vld [vmem:[%s15 + $0x8] sm:$0x1]
        %v2955 = vld [vmem:[#allocation3] sm:$0xff]
        %v2956 = vld [vmem:[#allocation3 + $0x10] sm:$0xff]
        %v2957 = vld [vmem:[#allocation3 + $0x20] sm:$0xff]
        %v2958 = vld [vmem:[#allocation3 + $0x30] sm:$0xff]
        %v2959 = vld [vmem:[#allocation3 + $0x40] sm:$0xff]
        %v2960 = vld [vmem:[#allocation3 + $0x50] sm:$0xff]
        %v2961 = vld [vmem:[#allocation3 + $0x60] sm:$0xff]
        %v2962 = vld [vmem:[#allocation3 + $0x70] sm:$0xff]
        %v2963 = vlaneseq
        %v2964 = vshrl.u32 %v2963, 7
        %v2965 = vsub.s32 0, %v2964
        %v2966 = vrot.slane %v2953, %v2965
        %v2967 = vmul.f32 %v2955, %v2966
        %v2968 = vmul.f32 %v2956, %v2966
        %v2969 = vmul.f32 %v2957, %v2966
        %v2970 = vmul.f32 %v2958, %v2966
        %v2971 = vmul.f32 %v2959, %v2966
        %v2972 = vmul.f32 %v2960, %v2966
        %v2973 = vmul.f32 %v2961, %v2966
        %v2974 = vmul.f32 %v2962, %v2966
        %v2975 = vadd.f32 %v2967, 0.0
        %v2976 = vadd.f32 %v2968, 0.0
        %v2977 = vadd.f32 %v2969, 0.0
        %v2978 = vadd.f32 %v2970, 0.0
        %v2979 = vadd.f32 %v2971, 0.0
        %v2980 = vadd.f32 %v2972, 0.0
        %v2981 = vadd.f32 %v2973, 0.0
        %v2982 = vadd.f32 %v2974, 0.0
        %v2983 = vld [vmem:[#allocation3 + $0x1] sm:$0xff]
        %v2984 = vld [vmem:[#allocation3 + $0x11] sm:$0xff]
        %v2985 = vld [vmem:[#allocation3 + $0x21] sm:$0xff]
        %v2986 = vld [vmem:[#allocation3 + $0x31] sm:$0xff]
        %v2987 = vld [vmem:[#allocation3 + $0x41] sm:$0xff]
        %v2988 = vld [vmem:[#allocation3 + $0x51] sm:$0xff]
        %v2989 = vld [vmem:[#allocation3 + $0x61] sm:$0xff]
        %v2990 = vld [vmem:[#allocation3 + $0x71] sm:$0xff]
        %v2991 = vlaneseq
        %v2992 = vshrl.u32 %v2991, 7
        %v2993 = vsub.s32 1, %v2992
        %v2994 = vrot.slane %v2953, %v2993
        %v2995 = vmul.f32 %v2983, %v2994
        %v2996 = vmul.f32 %v2984, %v2994
        %v2997 = vmul.f32 %v2985, %v2994
        %v2998 = vmul.f32 %v2986, %v2994
        %v2999 = vmul.f32 %v2987, %v2994
        %v3000 = vmul.f32 %v2988, %v2994
        %v3001 = vmul.f32 %v2989, %v2994
        %v3002 = vmul.f32 %v2990, %v2994
        %v3003 = vadd.f32 %v2975, %v2995
        %v3004 = vadd.f32 %v2976, %v2996
        %v3005 = vadd.f32 %v2977, %v2997
        %v3006 = vadd.f32 %v2978, %v2998
        %v3007 = vadd.f32 %v2979, %v2999
        %v3008 = vadd.f32 %v2980, %v3000
        %v3009 = vadd.f32 %v2981, %v3001
        %v3010 = vadd.f32 %v2982, %v3002
        %v3011 = vld [vmem:[#allocation3 + $0x2] sm:$0xff]
        %v3012 = vld [vmem:[#allocation3 + $0x12] sm:$0xff]
        %v3013 = vld [vmem:[#allocation3 + $0x22] sm:$0xff]
        %v3014 = vld [vmem:[#allocation3 + $0x32] sm:$0xff]
        %v3015 = vld [vmem:[#allocation3 + $0x42] sm:$0xff]
        %v3016 = vld [vmem:[#allocation3 + $0x52] sm:$0xff]
        %v3017 = vld [vmem:[#allocation3 + $0x62] sm:$0xff]
        %v3018 = vld [vmem:[#allocation3 + $0x72] sm:$0xff]
        %v3019 = vlaneseq
        %v3020 = vshrl.u32 %v3019, 7
        %v3021 = vsub.s32 2, %v3020
        %v3022 = vrot.slane %v2953, %v3021
        %v3023 = vmul.f32 %v3011, %v3022
        %v3024 = vmul.f32 %v3012, %v3022
        %v3025 = vmul.f32 %v3013, %v3022
        %v3026 = vmul.f32 %v3014, %v3022
        %v3027 = vmul.f32 %v3015, %v3022
        %v3028 = vmul.f32 %v3016, %v3022
        %v3029 = vmul.f32 %v3017, %v3022
        %v3030 = vmul.f32 %v3018, %v3022
        %v3031 = vadd.f32 %v3003, %v3023
        %v3032 = vadd.f32 %v3004, %v3024
        %v3033 = vadd.f32 %v3005, %v3025
        %v3034 = vadd.f32 %v3006, %v3026
        %v3035 = vadd.f32 %v3007, %v3027
        %v3036 = vadd.f32 %v3008, %v3028
        %v3037 = vadd.f32 %v3009, %v3029
        %v3038 = vadd.f32 %v3010, %v3030
        %v3039 = vld [vmem:[%s631] sm:$0xff]
        %v3040 = vld [vmem:[%s631 + $0x10] sm:$0xff]
        %v3041 = vld [vmem:[%s631 + $0x20] sm:$0xff]
        %v3042 = vld [vmem:[%s631 + $0x30] sm:$0xff]
        %v3043 = vld [vmem:[%s631 + $0x40] sm:$0xff]
        %v3044 = vld [vmem:[%s631 + $0x50] sm:$0xff]
        %v3045 = vld [vmem:[%s631 + $0x60] sm:$0xff]
        %v3046 = vld [vmem:[%s631 + $0x70] sm:$0xff]
        %v3047 = vlaneseq
        %v3048 = vshrl.u32 %v3047, 7
        %v3049 = vsub.s32 3, %v3048
        %v3050 = vrot.slane %v2953, %v3049
        %v3051 = vmul.f32 %v3039, %v3050
        %v3052 = vmul.f32 %v3040, %v3050
        %v3053 = vmul.f32 %v3041, %v3050
        %v3054 = vmul.f32 %v3042, %v3050
        %v3055 = vmul.f32 %v3043, %v3050
        %v3056 = vmul.f32 %v3044, %v3050
        %v3057 = vmul.f32 %v3045, %v3050
        %v3058 = vmul.f32 %v3046, %v3050
        %v3059 = vadd.f32 %v3031, %v3051
        %v3060 = vadd.f32 %v3032, %v3052
        %v3061 = vadd.f32 %v3033, %v3053
        %v3062 = vadd.f32 %v3034, %v3054
        %v3063 = vadd.f32 %v3035, %v3055
        %v3064 = vadd.f32 %v3036, %v3056
        %v3065 = vadd.f32 %v3037, %v3057
        %v3066 = vadd.f32 %v3038, %v3058
        %v3067 = vld [vmem:[%s631 + $0x1] sm:$0xff]
        %v3068 = vld [vmem:[%s631 + $0x11] sm:$0xff]
        %v3069 = vld [vmem:[%s631 + $0x21] sm:$0xff]
        %v3070 = vld [vmem:[%s631 + $0x31] sm:$0xff]
        %v3071 = vld [vmem:[%s631 + $0x41] sm:$0xff]
        %v3072 = vld [vmem:[%s631 + $0x51] sm:$0xff]
        %v3073 = vld [vmem:[%s631 + $0x61] sm:$0xff]
        %v3074 = vld [vmem:[%s631 + $0x71] sm:$0xff]
        %v3075 = vlaneseq
        %v3076 = vshrl.u32 %v3075, 7
        %v3077 = vsub.s32 4, %v3076
        %v3078 = vrot.slane %v2953, %v3077
        %v3079 = vmul.f32 %v3067, %v3078
        %v3080 = vmul.f32 %v3068, %v3078
        %v3081 = vmul.f32 %v3069, %v3078
        %v3082 = vmul.f32 %v3070, %v3078
        %v3083 = vmul.f32 %v3071, %v3078
        %v3084 = vmul.f32 %v3072, %v3078
        %v3085 = vmul.f32 %v3073, %v3078
        %v3086 = vmul.f32 %v3074, %v3078
        %v3087 = vadd.f32 %v3059, %v3079
        %v3088 = vadd.f32 %v3060, %v3080
        %v3089 = vadd.f32 %v3061, %v3081
        %v3090 = vadd.f32 %v3062, %v3082
        %v3091 = vadd.f32 %v3063, %v3083
        %v3092 = vadd.f32 %v3064, %v3084
        %v3093 = vadd.f32 %v3065, %v3085
        %v3094 = vadd.f32 %v3066, %v3086
        %v3095 = vld [vmem:[%s631 + $0x2] sm:$0xff]
        %v3096 = vld [vmem:[%s631 + $0x12] sm:$0xff]
        %v3097 = vld [vmem:[%s631 + $0x22] sm:$0xff]
        %v3098 = vld [vmem:[%s631 + $0x32] sm:$0xff]
        %v3099 = vld [vmem:[%s631 + $0x42] sm:$0xff]
        %v3100 = vld [vmem:[%s631 + $0x52] sm:$0xff]
        %v3101 = vld [vmem:[%s631 + $0x62] sm:$0xff]
        %v3102 = vld [vmem:[%s631 + $0x72] sm:$0xff]
        %v3103 = vlaneseq
        %v3104 = vshrl.u32 %v3103, 7
        %v3105 = vsub.s32 5, %v3104
        %v3106 = vrot.slane %v2953, %v3105
        %v3107 = vmul.f32 %v3095, %v3106
        %v3108 = vmul.f32 %v3096, %v3106
        %v3109 = vmul.f32 %v3097, %v3106
        %v3110 = vmul.f32 %v3098, %v3106
        %v3111 = vmul.f32 %v3099, %v3106
        %v3112 = vmul.f32 %v3100, %v3106
        %v3113 = vmul.f32 %v3101, %v3106
        %v3114 = vmul.f32 %v3102, %v3106
        %v3115 = vadd.f32 %v3087, %v3107
        %v3116 = vadd.f32 %v3088, %v3108
        %v3117 = vadd.f32 %v3089, %v3109
        %v3118 = vadd.f32 %v3090, %v3110
        %v3119 = vadd.f32 %v3091, %v3111
        %v3120 = vadd.f32 %v3092, %v3112
        %v3121 = vadd.f32 %v3093, %v3113
        %v3122 = vadd.f32 %v3094, %v3114
        %v3123 = vld [vmem:[%s2748] sm:$0xff]
        %v3124 = vld [vmem:[%s2748 + $0x10] sm:$0xff]
        %v3125 = vld [vmem:[%s2748 + $0x20] sm:$0xff]
        %v3126 = vld [vmem:[%s2748 + $0x30] sm:$0xff]
        %v3127 = vld [vmem:[%s2748 + $0x40] sm:$0xff]
        %v3128 = vld [vmem:[%s2748 + $0x50] sm:$0xff]
        %v3129 = vld [vmem:[%s2748 + $0x60] sm:$0xff]
        %v3130 = vld [vmem:[%s2748 + $0x70] sm:$0xff]
        %v3131 = vlaneseq
        %v3132 = vshrl.u32 %v3131, 7
        %v3133 = vsub.s32 6, %v3132
        %v3134 = vrot.slane %v2953, %v3133
        %v3135 = vmul.f32 %v3123, %v3134
        %v3136 = vmul.f32 %v3124, %v3134
        %v3137 = vmul.f32 %v3125, %v3134
        %v3138 = vmul.f32 %v3126, %v3134
        %v3139 = vmul.f32 %v3127, %v3134
        %v3140 = vmul.f32 %v3128, %v3134
        %v3141 = vmul.f32 %v3129, %v3134
        %v3142 = vmul.f32 %v3130, %v3134
        %v3143 = vadd.f32 %v3115, %v3135
        %v3144 = vadd.f32 %v3116, %v3136
        %v3145 = vadd.f32 %v3117, %v3137
        %v3146 = vadd.f32 %v3118, %v3138
        %v3147 = vadd.f32 %v3119, %v3139
        %v3148 = vadd.f32 %v3120, %v3140
        %v3149 = vadd.f32 %v3121, %v3141
        %v3150 = vadd.f32 %v3122, %v3142
        %v3151 = vld [vmem:[%s2748 + $0x1] sm:$0xff]
        %v3152 = vld [vmem:[%s2748 + $0x11] sm:$0xff]
        %v3153 = vld [vmem:[%s2748 + $0x21] sm:$0xff]
        %v3154 = vld [vmem:[%s2748 + $0x31] sm:$0xff]
        %v3155 = vld [vmem:[%s2748 + $0x41] sm:$0xff]
        %v3156 = vld [vmem:[%s2748 + $0x51] sm:$0xff]
        %v3157 = vld [vmem:[%s2748 + $0x61] sm:$0xff]
        %v3158 = vld [vmem:[%s2748 + $0x71] sm:$0xff]
        %v3159 = vlaneseq
        %v3160 = vshrl.u32 %v3159, 7
        %v3161 = vsub.s32 7, %v3160
        %v3162 = vrot.slane %v2953, %v3161
        %v3163 = vmul.f32 %v3151, %v3162
        %v3164 = vmul.f32 %v3152, %v3162
        %v3165 = vmul.f32 %v3153, %v3162
        %v3166 = vmul.f32 %v3154, %v3162
        %v3167 = vmul.f32 %v3155, %v3162
        %v3168 = vmul.f32 %v3156, %v3162
        %v3169 = vmul.f32 %v3157, %v3162
        %v3170 = vmul.f32 %v3158, %v3162
        %v3171 = vadd.f32 %v3143, %v3163
        %v3172 = vadd.f32 %v3144, %v3164
        %v3173 = vadd.f32 %v3145, %v3165
        %v3174 = vadd.f32 %v3146, %v3166
        %v3175 = vadd.f32 %v3147, %v3167
        %v3176 = vadd.f32 %v3148, %v3168
        %v3177 = vadd.f32 %v3149, %v3169
        %v3178 = vadd.f32 %v3150, %v3170
        %v3179 = vld [vmem:[%s2748 + $0x2] sm:$0xff]
        %v3180 = vld [vmem:[%s2748 + $0x12] sm:$0xff]
        %v3181 = vld [vmem:[%s2748 + $0x22] sm:$0xff]
        %v3182 = vld [vmem:[%s2748 + $0x32] sm:$0xff]
        %v3183 = vld [vmem:[%s2748 + $0x42] sm:$0xff]
        %v3184 = vld [vmem:[%s2748 + $0x52] sm:$0xff]
        %v3185 = vld [vmem:[%s2748 + $0x62] sm:$0xff]
        %v3186 = vld [vmem:[%s2748 + $0x72] sm:$0xff]
        %v3187 = vlaneseq
        %v3188 = vshrl.u32 %v3187, 7
        %v3189 = vsub.s32 0, %v3188
        %v3190 = vrot.slane %v2954, %v3189
        %v3191 = vmul.f32 %v3179, %v3190
        %v3192 = vmul.f32 %v3180, %v3190
        %v3193 = vmul.f32 %v3181, %v3190
        %v3194 = vmul.f32 %v3182, %v3190
        %v3195 = vmul.f32 %v3183, %v3190
        %v3196 = vmul.f32 %v3184, %v3190
        %v3197 = vmul.f32 %v3185, %v3190
        %v3198 = vmul.f32 %v3186, %v3190
        %v3199 = vadd.f32 %v3171, %v3191
        %v3200 = vadd.f32 %v3172, %v3192
        %v3201 = vadd.f32 %v3173, %v3193
        %v3202 = vadd.f32 %v3174, %v3194
        %v3203 = vadd.f32 %v3175, %v3195
        %v3204 = vadd.f32 %v3176, %v3196
        %v3205 = vadd.f32 %v3177, %v3197
        %v3206 = vadd.f32 %v3178, %v3198
        %v3207 = vpack.c.bf16 %v3200, %v3199
        %v3208 = vpack.c.bf16 %v3202, %v3201
        %v3209 = vpack.c.bf16 %v3204, %v3203
        %v3210 = vpack.c.bf16 %v3206, %v3205
        %v3211 = vld [vmem:[%s16] sm:$0xf]
        %v3212 = vld [vmem:[%s16 + $0x4] sm:$0xf]
        %v3213 = vld [vmem:[%s16 + $0x8] sm:$0xf]
        %v3214 = vld [vmem:[%s17] sm:$0x1]
        %v3216 = vlaneseq
        %v3217 = vshrl.u32 %v3216, 7
        %v3218 = vsub.s32 0, %v3217
        %v3219 = vrot.slane %v3214, %v3218
        %v3224 = vunpack.c.l.b16 %v3211
        %v3225 = vunpack.c.l.b16 %v3212
        %v3226 = vunpack.c.l.b16 %v3213
        %v3227 = vpack.c.b16 %v3225, %v3224
        %v3228 = vpack.c.b16 %v3226, %v3226
        %v3231 = vsel %vm624, %v3207, 0
        %v3234 = vsel %vm624, %v3208, 0
        %v3237 = vsel %vm624, %v3209, 0
        %v3240 = vsel %vm624, %v3210, 0
        %v3243 = vsel %vm2868, %v3228, 0
        %3245 = vmatprep.subr.bf16.mxu0 0
        %3246 = vmatpush1.bf16.msra.mxu0 %v3227
        %3247 = vmatprep.subr.bf16.mxu0 0
        %3248 = vmatpush1.bf16.msra.mxu0 %v3243
        %3249 = vmatprep.subr.bf16.mxu0 0
        %3250 = vmatpush1.bf16.msra.mxu0 0
        %3251 = vmatprep.subr.bf16.mxu0 0
        %3252 = vmatpush1.bf16.msra.mxu0 0
        %3253 = vmatprep.subr.bf16.mxu0 0
        %3254 = vmatpush1.bf16.msra.mxu0 0
        %3255 = vmatprep.subr.bf16.mxu0 0
        %3256 = vmatpush1.bf16.msra.mxu0 0
        %3257 = vmatprep.subr.bf16.mxu0 0
        %3258 = vmatpush1.bf16.msra.mxu0 0
        %3259 = vmatprep.subr.bf16.mxu0 0
        %3260 = vmatpush1.bf16.msra.mxu0 0
        %3261 = vmatprep.subr.bf16.mxu0 0
        %3262 = vmatpush1.bf16.msra.mxu0 0
        %3263 = vmatprep.subr.bf16.mxu0 0
        %3264 = vmatpush1.bf16.msra.mxu0 0
        %3265 = vmatprep.subr.bf16.mxu0 0
        %3266 = vmatpush1.bf16.msra.mxu0 0
        %3267 = vmatprep.subr.bf16.mxu0 0
        %3268 = vmatpush1.bf16.msra.mxu0 0
        %3269 = vmatprep.subr.bf16.mxu0 0
        %3270 = vmatpush1.bf16.msra.mxu0 0
        %3271 = vmatprep.subr.bf16.mxu0 0
        %3272 = vmatpush1.bf16.msra.mxu0 0
        %3273 = vmatprep.subr.bf16.mxu0 0
        %3274 = vmatpush1.bf16.msra.mxu0 0
        %3275 = vmatprep.subr.bf16.mxu0 0
        %3276 = vmatpush1.bf16.msra.mxu0 0
        %3277 = vmatprep.mubr.bf16.mxu0 0
        %3278 = vmatmul.mubr.bf16.gmra.mrb[0].mxu0 %v3231
        %v3279 = vpop.f32.mrb[0].mxu0
        %v3280 = vadd.f32 %v3219, %v3279
        %v3281 = vpop.f32.mrb[0].mxu0
        %v3282 = vpop.f32.mrb[0].mxu0
        %v3283 = vadd.f32 %v3219, %v3282
        %v3284 = vpop.f32.mrb[0].mxu0
        %3285 = vmatprep.mubr.bf16.mxu0 0
        %3286 = vmatmul.mubr.bf16.gmra.mrb[0].mxu0 %v3234
        %v3287 = vpop.f32.mrb[0].mxu0
        %v3288 = vadd.f32 %v3219, %v3287
        %v3289 = vpop.f32.mrb[0].mxu0
        %v3290 = vpop.f32.mrb[0].mxu0
        %v3291 = vadd.f32 %v3219, %v3290
        %v3292 = vpop.f32.mrb[0].mxu0
        %3293 = vmatprep.mubr.bf16.mxu0 0
        %3294 = vmatmul.mubr.bf16.gmra.mrb[0].mxu0 %v3237
        %v3295 = vpop.f32.mrb[0].mxu0
        %v3296 = vadd.f32 %v3219, %v3295
        %v3297 = vpop.f32.mrb[0].mxu0
        %v3298 = vpop.f32.mrb[0].mxu0
        %v3299 = vadd.f32 %v3219, %v3298
        %v3300 = vpop.f32.mrb[0].mxu0
        %3301 = vmatprep.mubr.bf16.mxu0 0
        %3302 = vmatmul.mubr.bf16.gmra.mrb[0].mxu0 %v3240
        %v3303 = vpop.f32.mrb[0].mxu0
        %v3304 = vadd.f32 %v3219, %v3303
        %v3305 = vpop.f32.mrb[0].mxu0
        %v3306 = vpop.f32.mrb[0].mxu0
        %v3307 = vadd.f32 %v3219, %v3306
        %v3308 = vpop.f32.mrb[0].mxu0
        %3309 = vdwg.mxu0
        %3310 = vst.msk [vmem:[%s654 + $0x1] sm:$0xff] %vm595, %v895
        %3311 = vst.msk [vmem:[%s654 + $0x11] sm:$0xff] %vm595, %v896
        %3312 = vst.msk [vmem:[%s654 + $0x21] sm:$0xff] %vm595, %v897
        %3313 = vst.msk [vmem:[%s654 + $0x31] sm:$0xff] %vm595, %v898
        %3314 = vst.msk [vmem:[%s654 + $0x41] sm:$0xff] %vm595, %v899
        %3315 = vst.msk [vmem:[%s654 + $0x51] sm:$0xff] %vm595, %v900
        %3316 = vst.msk [vmem:[%s654 + $0x61] sm:$0xff] %vm595, %v901
        %3317 = vst.msk [vmem:[%s654 + $0x71] sm:$0xff] %vm595, %v902
        %v3318 = vld [vmem:[#allocation4] sm:$0xff]
        %v3319 = vld [vmem:[#allocation4 + $0x10] sm:$0xff]
        %v3320 = vld [vmem:[#allocation4 + $0x20] sm:$0xff]
        %v3321 = vld [vmem:[#allocation4 + $0x30] sm:$0xff]
        %v3322 = vld [vmem:[#allocation4 + $0x40] sm:$0xff]
        %v3323 = vld [vmem:[#allocation4 + $0x50] sm:$0xff]
        %v3324 = vld [vmem:[#allocation4 + $0x60] sm:$0xff]
        %v3325 = vld [vmem:[#allocation4 + $0x70] sm:$0xff]
        %v3326 = vadd.f32 %v3318, 0.0
        %v3327 = vadd.f32 %v3319, 0.0
        %v3328 = vadd.f32 %v3320, 0.0
        %v3329 = vadd.f32 %v3321, 0.0
        %v3330 = vadd.f32 %v3322, 0.0
        %v3331 = vadd.f32 %v3323, 0.0
        %v3332 = vadd.f32 %v3324, 0.0
        %v3333 = vadd.f32 %v3325, 0.0
        %v3334 = vld [vmem:[#allocation4 + $0x1] sm:$0xff]
        %v3335 = vld [vmem:[#allocation4 + $0x11] sm:$0xff]
        %v3336 = vld [vmem:[#allocation4 + $0x21] sm:$0xff]
        %v3337 = vld [vmem:[#allocation4 + $0x31] sm:$0xff]
        %v3338 = vld [vmem:[#allocation4 + $0x41] sm:$0xff]
        %v3339 = vld [vmem:[#allocation4 + $0x51] sm:$0xff]
        %v3340 = vld [vmem:[#allocation4 + $0x61] sm:$0xff]
        %v3341 = vld [vmem:[#allocation4 + $0x71] sm:$0xff]
        %v3342 = vadd.f32 %v3326, %v3334
        %v3343 = vadd.f32 %v3327, %v3335
        %v3344 = vadd.f32 %v3328, %v3336
        %v3345 = vadd.f32 %v3329, %v3337
        %v3346 = vadd.f32 %v3330, %v3338
        %v3347 = vadd.f32 %v3331, %v3339
        %v3348 = vadd.f32 %v3332, %v3340
        %v3349 = vadd.f32 %v3333, %v3341
        %v3350 = vld [vmem:[#allocation4 + $0x2] sm:$0xff]
        %v3351 = vld [vmem:[#allocation4 + $0x12] sm:$0xff]
        %v3352 = vld [vmem:[#allocation4 + $0x22] sm:$0xff]
        %v3353 = vld [vmem:[#allocation4 + $0x32] sm:$0xff]
        %v3354 = vld [vmem:[#allocation4 + $0x42] sm:$0xff]
        %v3355 = vld [vmem:[#allocation4 + $0x52] sm:$0xff]
        %v3356 = vld [vmem:[#allocation4 + $0x62] sm:$0xff]
        %v3357 = vld [vmem:[#allocation4 + $0x72] sm:$0xff]
        %v3358 = vadd.f32 %v3342, %v3350
        %v3359 = vadd.f32 %v3343, %v3351
        %v3360 = vadd.f32 %v3344, %v3352
        %v3361 = vadd.f32 %v3345, %v3353
        %v3362 = vadd.f32 %v3346, %v3354
        %v3363 = vadd.f32 %v3347, %v3355
        %v3364 = vadd.f32 %v3348, %v3356
        %v3365 = vadd.f32 %v3349, %v3357
        %v3366 = vld [vmem:[%s654] sm:$0xff]
        %v3367 = vld [vmem:[%s654 + $0x10] sm:$0xff]
        %v3368 = vld [vmem:[%s654 + $0x20] sm:$0xff]
        %v3369 = vld [vmem:[%s654 + $0x30] sm:$0xff]
        %v3370 = vld [vmem:[%s654 + $0x40] sm:$0xff]
        %v3371 = vld [vmem:[%s654 + $0x50] sm:$0xff]
        %v3372 = vld [vmem:[%s654 + $0x60] sm:$0xff]
        %v3373 = vld [vmem:[%s654 + $0x70] sm:$0xff]
        %v3374 = vadd.f32 %v3358, %v3366
        %v3375 = vadd.f32 %v3359, %v3367
        %v3376 = vadd.f32 %v3360, %v3368
        %v3377 = vadd.f32 %v3361, %v3369
        %v3378 = vadd.f32 %v3362, %v3370
        %v3379 = vadd.f32 %v3363, %v3371
        %v3380 = vadd.f32 %v3364, %v3372
        %v3381 = vadd.f32 %v3365, %v3373
        %v3382 = vld [vmem:[%s654 + $0x1] sm:$0xff]
        %v3383 = vld [vmem:[%s654 + $0x11] sm:$0xff]
        %v3384 = vld [vmem:[%s654 + $0x21] sm:$0xff]
        %v3385 = vld [vmem:[%s654 + $0x31] sm:$0xff]
        %v3386 = vld [vmem:[%s654 + $0x41] sm:$0xff]
        %v3387 = vld [vmem:[%s654 + $0x51] sm:$0xff]
        %v3388 = vld [vmem:[%s654 + $0x61] sm:$0xff]
        %v3389 = vld [vmem:[%s654 + $0x71] sm:$0xff]
        %v3390 = vadd.f32 %v3374, %v3382
        %v3391 = vadd.f32 %v3375, %v3383
        %v3392 = vadd.f32 %v3376, %v3384
        %v3393 = vadd.f32 %v3377, %v3385
        %v3394 = vadd.f32 %v3378, %v3386
        %v3395 = vadd.f32 %v3379, %v3387
        %v3396 = vadd.f32 %v3380, %v3388
        %v3397 = vadd.f32 %v3381, %v3389
        %v3398 = vld [vmem:[%s654 + $0x2] sm:$0xff]
        %v3399 = vld [vmem:[%s654 + $0x12] sm:$0xff]
        %v3400 = vld [vmem:[%s654 + $0x22] sm:$0xff]
        %v3401 = vld [vmem:[%s654 + $0x32] sm:$0xff]
        %v3402 = vld [vmem:[%s654 + $0x42] sm:$0xff]
        %v3403 = vld [vmem:[%s654 + $0x52] sm:$0xff]
        %v3404 = vld [vmem:[%s654 + $0x62] sm:$0xff]
        %v3405 = vld [vmem:[%s654 + $0x72] sm:$0xff]
        %v3406 = vadd.f32 %v3390, %v3398
        %v3407 = vadd.f32 %v3391, %v3399
        %v3408 = vadd.f32 %v3392, %v3400
        %v3409 = vadd.f32 %v3393, %v3401
        %v3410 = vadd.f32 %v3394, %v3402
        %v3411 = vadd.f32 %v3395, %v3403
        %v3412 = vadd.f32 %v3396, %v3404
        %v3413 = vadd.f32 %v3397, %v3405
        %s3414 = scalar_lea.vmem [#allocation4], 32
        %v3415 = vld [vmem:[%s3414] sm:$0xff]
        %v3416 = vld [vmem:[%s3414 + $0x10] sm:$0xff]
        %v3417 = vld [vmem:[%s3414 + $0x20] sm:$0xff]
        %v3418 = vld [vmem:[%s3414 + $0x30] sm:$0xff]
        %v3419 = vld [vmem:[%s3414 + $0x40] sm:$0xff]
        %v3420 = vld [vmem:[%s3414 + $0x50] sm:$0xff]
        %v3421 = vld [vmem:[%s3414 + $0x60] sm:$0xff]
        %v3422 = vld [vmem:[%s3414 + $0x70] sm:$0xff]
        %v3423 = vadd.f32 %v3406, %v3415
        %v3424 = vadd.f32 %v3407, %v3416
        %v3425 = vadd.f32 %v3408, %v3417
        %v3426 = vadd.f32 %v3409, %v3418
        %v3427 = vadd.f32 %v3410, %v3419
        %v3428 = vadd.f32 %v3411, %v3420
        %v3429 = vadd.f32 %v3412, %v3421
        %v3430 = vadd.f32 %v3413, %v3422
        %v3431 = vld [vmem:[%s3414 + $0x1] sm:$0xff]
        %v3432 = vld [vmem:[%s3414 + $0x11] sm:$0xff]
        %v3433 = vld [vmem:[%s3414 + $0x21] sm:$0xff]
        %v3434 = vld [vmem:[%s3414 + $0x31] sm:$0xff]
        %v3435 = vld [vmem:[%s3414 + $0x41] sm:$0xff]
        %v3436 = vld [vmem:[%s3414 + $0x51] sm:$0xff]
        %v3437 = vld [vmem:[%s3414 + $0x61] sm:$0xff]
        %v3438 = vld [vmem:[%s3414 + $0x71] sm:$0xff]
        %v3439 = vadd.f32 %v3423, %v3431
        %v3440 = vadd.f32 %v3424, %v3432
        %v3441 = vadd.f32 %v3425, %v3433
        %v3442 = vadd.f32 %v3426, %v3434
        %v3443 = vadd.f32 %v3427, %v3435
        %v3444 = vadd.f32 %v3428, %v3436
        %v3445 = vadd.f32 %v3429, %v3437
        %v3446 = vadd.f32 %v3430, %v3438
        %v3447 = vld [vmem:[%s3414 + $0x2] sm:$0xff]
        %v3448 = vld [vmem:[%s3414 + $0x12] sm:$0xff]
        %v3449 = vld [vmem:[%s3414 + $0x22] sm:$0xff]
        %v3450 = vld [vmem:[%s3414 + $0x32] sm:$0xff]
        %v3451 = vld [vmem:[%s3414 + $0x42] sm:$0xff]
        %v3452 = vld [vmem:[%s3414 + $0x52] sm:$0xff]
        %v3453 = vld [vmem:[%s3414 + $0x62] sm:$0xff]
        %v3454 = vld [vmem:[%s3414 + $0x72] sm:$0xff]
        %v3455 = vadd.f32 %v3439, %v3447
        %v3456 = vadd.f32 %v3440, %v3448
        %v3457 = vadd.f32 %v3441, %v3449
        %v3458 = vadd.f32 %v3442, %v3450
        %v3459 = vadd.f32 %v3443, %v3451
        %v3460 = vadd.f32 %v3444, %v3452
        %v3461 = vadd.f32 %v3445, %v3453
        %v3462 = vadd.f32 %v3446, %v3454
        %v3463 = vld [vmem:[%s2] sm:$0xff]
        %v3464 = vld [vmem:[%s2 + $0x8] sm:$0xff]
        %v3465 = vld [vmem:[%s2 + $0x10] sm:$0xff]
        %v3466 = vld [vmem:[%s2 + $0x18] sm:$0xff]
        %v3467 = vld [vmem:[%s2 + $0x20] sm:$0xff]
        %v3468 = vld [vmem:[%s2 + $0x28] sm:$0xff]
        %v3469 = vld [vmem:[%s2 + $0x30] sm:$0xff]
        %v3470 = vld [vmem:[%s2 + $0x38] sm:$0xff]
        %3472 = vset.pattern.permute.xlu0 0
        %3473 = vperm.xlu0 %3472, %v3463
        %v3474 = vpop.permute.xlu0 %3473
        %3477 = vset.pattern.permute.xlu0 0
        %3478 = vperm.xlu0 %3477, %v3464
        %v3479 = vpop.permute.xlu0 %3478
        %3482 = vset.pattern.permute.xlu0 0
        %3483 = vperm.xlu0 %3482, %v3465
        %v3484 = vpop.permute.xlu0 %3483
        %3487 = vset.pattern.permute.xlu0 0
        %3488 = vperm.xlu0 %3487, %v3466
        %v3489 = vpop.permute.xlu0 %3488
        %3492 = vset.pattern.permute.xlu0 0
        %3493 = vperm.xlu0 %3492, %v3467
        %v3494 = vpop.permute.xlu0 %3493
        %3497 = vset.pattern.permute.xlu0 0
        %3498 = vperm.xlu0 %3497, %v3468
        %v3499 = vpop.permute.xlu0 %3498
        %3502 = vset.pattern.permute.xlu0 0
        %3503 = vperm.xlu0 %3502, %v3469
        %v3504 = vpop.permute.xlu0 %3503
        %3507 = vset.pattern.permute.xlu0 0
        %3508 = vperm.xlu0 %3507, %v3470
        %v3509 = vpop.permute.xlu0 %3508
        %v3511 = vmul.f32 %v3455, %v3474
        %v3512 = vmul.f32 %v3456, %v3479
        %v3513 = vmul.f32 %v3457, %v3484
        %v3514 = vmul.f32 %v3458, %v3489
        %v3515 = vmul.f32 %v3459, %v3494
        %v3516 = vmul.f32 %v3460, %v3499
        %v3517 = vmul.f32 %v3461, %v3504
        %v3518 = vmul.f32 %v3462, %v3509
        %3527 = vrot.lane.b32.xlu0 %v895, 120
        %v3528 = vpop.permute.xlu0 %3527
        %3529 = vrot.lane.b32.xlu0 %v896, 120
        %v3530 = vpop.permute.xlu0 %3529
        %3531 = vrot.lane.b32.xlu0 %v897, 120
        %v3532 = vpop.permute.xlu0 %3531
        %3533 = vrot.lane.b32.xlu0 %v898, 120
        %v3534 = vpop.permute.xlu0 %3533
        %3535 = vrot.lane.b32.xlu0 %v899, 120
        %v3536 = vpop.permute.xlu0 %3535
        %3537 = vrot.lane.b32.xlu0 %v900, 120
        %v3538 = vpop.permute.xlu0 %3537
        %3539 = vrot.lane.b32.xlu0 %v901, 120
        %v3540 = vpop.permute.xlu0 %3539
        %3541 = vrot.lane.b32.xlu0 %v902, 120
        %v3542 = vpop.permute.xlu0 %3541
        %vm3551 = vcmask 64512
        %3552 = vst.msk [vmem:[%s583] sm:$0xff] %vm3551, %v3528
        %3553 = vst.msk [vmem:[%s583 + $0x8] sm:$0xff] %vm3551, %v3530
        %3554 = vst.msk [vmem:[%s583 + $0x10] sm:$0xff] %vm3551, %v3532
        %3555 = vst.msk [vmem:[%s583 + $0x18] sm:$0xff] %vm3551, %v3534
        %3556 = vst.msk [vmem:[%s583 + $0x20] sm:$0xff] %vm3551, %v3536
        %3557 = vst.msk [vmem:[%s583 + $0x28] sm:$0xff] %vm3551, %v3538
        %3558 = vst.msk [vmem:[%s583 + $0x30] sm:$0xff] %vm3551, %v3540
        %3559 = vst.msk [vmem:[%s583 + $0x38] sm:$0xff] %vm3551, %v3542
        %v3560 = vadd.f32 %v2508, %v3280
        %v3561 = vadd.f32 %v2511, %v3283
        %v3562 = vadd.f32 %v2516, %v3288
        %v3563 = vadd.f32 %v2519, %v3291
        %v3564 = vadd.f32 %v2524, %v3296
        %v3565 = vadd.f32 %v2527, %v3299
        %v3566 = vadd.f32 %v2532, %v3304
        %v3567 = vadd.f32 %v2535, %v3307
        %3576 = vrot.lane.b32.xlu0 %v3560, 8
        %v3577 = vpop.permute.xlu0 %3576
        %3578 = vrot.lane.b32.xlu0 %v3561, 8
        %v3579 = vpop.permute.xlu0 %3578
        %3580 = vrot.lane.b32.xlu0 %v3562, 8
        %v3581 = vpop.permute.xlu0 %3580
        %3582 = vrot.lane.b32.xlu0 %v3563, 8
        %v3583 = vpop.permute.xlu0 %3582
        %3584 = vrot.lane.b32.xlu0 %v3564, 8
        %v3585 = vpop.permute.xlu0 %3584
        %3586 = vrot.lane.b32.xlu0 %v3565, 8
        %v3587 = vpop.permute.xlu0 %3586
        %3588 = vrot.lane.b32.xlu0 %v3566, 8
        %v3589 = vpop.permute.xlu0 %3588
        %3590 = vrot.lane.b32.xlu0 %v3567, 8
        %v3591 = vpop.permute.xlu0 %3590
        %vm3600 = vcmask 130112
        %3601 = vst.msk [vmem:[%s583] sm:$0xff] %vm3600, %v3577
        %3602 = vst.msk [vmem:[%s583 + $0x8] sm:$0xff] %vm3600, %v3579
        %3603 = vst.msk [vmem:[%s583 + $0x10] sm:$0xff] %vm3600, %v3581
        %3604 = vst.msk [vmem:[%s583 + $0x18] sm:$0xff] %vm3600, %v3583
        %3605 = vst.msk [vmem:[%s583 + $0x20] sm:$0xff] %vm3600, %v3585
        %3606 = vst.msk [vmem:[%s583 + $0x28] sm:$0xff] %vm3600, %v3587
        %3607 = vst.msk [vmem:[%s583 + $0x30] sm:$0xff] %vm3600, %v3589
        %3608 = vst.msk [vmem:[%s583 + $0x38] sm:$0xff] %vm3600, %v3591
        %vm3609 = vcmask 195712
        %3610 = vst.msk [vmem:[%s583] sm:$0xff] %vm3609, %v3577
        %3611 = vst.msk [vmem:[%s583 + $0x8] sm:$0xff] %vm3609, %v3579
        %3612 = vst.msk [vmem:[%s583 + $0x10] sm:$0xff] %vm3609, %v3581
        %3613 = vst.msk [vmem:[%s583 + $0x18] sm:$0xff] %vm3609, %v3583
        %3614 = vst.msk [vmem:[%s583 + $0x20] sm:$0xff] %vm3609, %v3585
        %3615 = vst.msk [vmem:[%s583 + $0x28] sm:$0xff] %vm3609, %v3587
        %3616 = vst.msk [vmem:[%s583 + $0x30] sm:$0xff] %vm3609, %v3589
        %3617 = vst.msk [vmem:[%s583 + $0x38] sm:$0xff] %vm3609, %v3591
        %v3618 = vadd.f32 %v3511, %v3528
        %v3619 = vadd.f32 %v3512, %v3530
        %v3620 = vadd.f32 %v3513, %v3532
        %v3621 = vadd.f32 %v3514, %v3534
        %v3622 = vadd.f32 %v3515, %v3536
        %v3623 = vadd.f32 %v3516, %v3538
        %v3624 = vadd.f32 %v3517, %v3540
        %v3625 = vadd.f32 %v3518, %v3542
        %3634 = vrot.lane.b32.xlu0 %v3618, 24
        %v3635 = vpop.permute.xlu0 %3634
        %3636 = vrot.lane.b32.xlu0 %v3619, 24
        %v3637 = vpop.permute.xlu0 %3636
        %3638 = vrot.lane.b32.xlu0 %v3620, 24
        %v3639 = vpop.permute.xlu0 %3638
        %3640 = vrot.lane.b32.xlu0 %v3621, 24
        %v3641 = vpop.permute.xlu0 %3640
        %3642 = vrot.lane.b32.xlu0 %v3622, 24
        %v3643 = vpop.permute.xlu0 %3642
        %3644 = vrot.lane.b32.xlu0 %v3623, 24
        %v3645 = vpop.permute.xlu0 %3644
        %3646 = vrot.lane.b32.xlu0 %v3624, 24
        %v3647 = vpop.permute.xlu0 %3646
        %3648 = vrot.lane.b32.xlu0 %v3625, 24
        %v3649 = vpop.permute.xlu0 %3648
        %vm3658 = vcmask 261312
        %3659 = vst.msk [vmem:[%s583] sm:$0xff] %vm3658, %v3635
        %3660 = vst.msk [vmem:[%s583 + $0x8] sm:$0xff] %vm3658, %v3637
        %3661 = vst.msk [vmem:[%s583 + $0x10] sm:$0xff] %vm3658, %v3639
        %3662 = vst.msk [vmem:[%s583 + $0x18] sm:$0xff] %vm3658, %v3641
        %3663 = vst.msk [vmem:[%s583 + $0x20] sm:$0xff] %vm3658, %v3643
        %3664 = vst.msk [vmem:[%s583 + $0x28] sm:$0xff] %vm3658, %v3645
        %3665 = vst.msk [vmem:[%s583 + $0x30] sm:$0xff] %vm3658, %v3647
        %3666 = vst.msk [vmem:[%s583 + $0x38] sm:$0xff] %vm3658, %v3649
        %v3667 = vadd.f32 %v3511, %v3511
        %v3668 = vadd.f32 %v3512, %v3512
        %v3669 = vadd.f32 %v3513, %v3513
        %v3670 = vadd.f32 %v3514, %v3514
        %v3671 = vadd.f32 %v3515, %v3515
        %v3672 = vadd.f32 %v3516, %v3516
        %v3673 = vadd.f32 %v3517, %v3517
        %v3674 = vadd.f32 %v3518, %v3518
        %3683 = vrot.lane.b32.xlu0 %v3667, 24
        %v3684 = vpop.permute.xlu0 %3683
        %3685 = vrot.lane.b32.xlu0 %v3668, 24
        %v3686 = vpop.permute.xlu0 %3685
        %3687 = vrot.lane.b32.xlu0 %v3669, 24
        %v3688 = vpop.permute.xlu0 %3687
        %3689 = vrot.lane.b32.xlu0 %v3670, 24
        %v3690 = vpop.permute.xlu0 %3689
        %3691 = vrot.lane.b32.xlu0 %v3671, 24
        %v3692 = vpop.permute.xlu0 %3691
        %3693 = vrot.lane.b32.xlu0 %v3672, 24
        %v3694 = vpop.permute.xlu0 %3693
        %3695 = vrot.lane.b32.xlu0 %v3673, 24
        %v3696 = vpop.permute.xlu0 %3695
        %3697 = vrot.lane.b32.xlu0 %v3674, 24
        %v3698 = vpop.permute.xlu0 %3697
        %vm3707 = vcmask 326912
        %3708 = vst.msk [vmem:[%s583] sm:$0xff] %vm3707, %v3684
        %3709 = vst.msk [vmem:[%s583 + $0x8] sm:$0xff] %vm3707, %v3686
        %3710 = vst.msk [vmem:[%s583 + $0x10] sm:$0xff] %vm3707, %v3688
        %3711 = vst.msk [vmem:[%s583 + $0x18] sm:$0xff] %vm3707, %v3690
        %3712 = vst.msk [vmem:[%s583 + $0x20] sm:$0xff] %vm3707, %v3692
        %3713 = vst.msk [vmem:[%s583 + $0x28] sm:$0xff] %vm3707, %v3694
        %3714 = vst.msk [vmem:[%s583 + $0x30] sm:$0xff] %vm3707, %v3696
        %3715 = vst.msk [vmem:[%s583 + $0x38] sm:$0xff] %vm3707, %v3698
        %3716 = vrot.lane.b32.xlu0 %v895, 16
        %v3717 = vpop.permute.xlu0 %3716
        %3718 = vrot.lane.b32.xlu0 %v896, 16
        %v3719 = vpop.permute.xlu0 %3718
        %3720 = vrot.lane.b32.xlu0 %v897, 16
        %v3721 = vpop.permute.xlu0 %3720
        %3722 = vrot.lane.b32.xlu0 %v898, 16
        %v3723 = vpop.permute.xlu0 %3722
        %3724 = vrot.lane.b32.xlu0 %v899, 16
        %v3725 = vpop.permute.xlu0 %3724
        %3726 = vrot.lane.b32.xlu0 %v900, 16
        %v3727 = vpop.permute.xlu0 %3726
        %3728 = vrot.lane.b32.xlu0 %v901, 16
        %v3729 = vpop.permute.xlu0 %3728
        %3730 = vrot.lane.b32.xlu0 %v902, 16
        %v3731 = vpop.permute.xlu0 %3730
        %v3740 = vadd.f32 %v3280, %v3717
        %v3741 = vadd.f32 %v3283, %v3719
        %v3742 = vadd.f32 %v3288, %v3721
        %v3743 = vadd.f32 %v3291, %v3723
        %v3744 = vadd.f32 %v3296, %v3725
        %v3745 = vadd.f32 %v3299, %v3727
        %v3746 = vadd.f32 %v3304, %v3729
        %v3747 = vadd.f32 %v3307, %v3731
        %3756 = vrot.lane.b32.xlu0 %v3740, 24
        %v3757 = vpop.permute.xlu0 %3756
        %3758 = vrot.lane.b32.xlu0 %v3741, 24
        %v3759 = vpop.permute.xlu0 %3758
        %3760 = vrot.lane.b32.xlu0 %v3742, 24
        %v3761 = vpop.permute.xlu0 %3760
        %3762 = vrot.lane.b32.xlu0 %v3743, 24
        %v3763 = vpop.permute.xlu0 %3762
        %3764 = vrot.lane.b32.xlu0 %v3744, 24
        %v3765 = vpop.permute.xlu0 %3764
        %3766 = vrot.lane.b32.xlu0 %v3745, 24
        %v3767 = vpop.permute.xlu0 %3766
        %3768 = vrot.lane.b32.xlu0 %v3746, 24
        %v3769 = vpop.permute.xlu0 %3768
        %3770 = vrot.lane.b32.xlu0 %v3747, 24
        %v3771 = vpop.permute.xlu0 %3770
        %vm3780 = vcmask 392512
        %3781 = vst.msk [vmem:[%s583] sm:$0xff] %vm3780, %v3757
        %3782 = vst.msk [vmem:[%s583 + $0x8] sm:$0xff] %vm3780, %v3759
        %3783 = vst.msk [vmem:[%s583 + $0x10] sm:$0xff] %vm3780, %v3761
        %3784 = vst.msk [vmem:[%s583 + $0x18] sm:$0xff] %vm3780, %v3763
        %3785 = vst.msk [vmem:[%s583 + $0x20] sm:$0xff] %vm3780, %v3765
        %3786 = vst.msk [vmem:[%s583 + $0x28] sm:$0xff] %vm3780, %v3767
        %3787 = vst.msk [vmem:[%s583 + $0x30] sm:$0xff] %vm3780, %v3769
        %3788 = vst.msk [vmem:[%s583 + $0x38] sm:$0xff] %vm3780, %v3771
        %s3789 = sand.u32 %s428, 1
        %s3790 = scalar_lea.sflag [#allocation6], %s3789
        %s3791 = sand.u32 %s428, 1
        %s3792 = smul.addr %s3791, 64
        %s3793 = scalar_lea.vmem [#allocation5], %s3792
        // Predicated region
        $region93: #{first_cell_forward.1} parent=91 // pred_check
          %p3794 = pneg %p438
        $region94: #{first_cell_forward.1} parent=91 // pred_check_branch
          %3796 = sbr.rel (%p3794) target = $region96
        $region95: #{first_cell_forward.1} parent=91 // pred_region
          %s3798 = ssub.s32 1024, 1024
          %3799 = vsyncadd %s3790, %s3798
          %s3800 = smul.addr %s32, 8
          %s3801 = smul.addr %s3800, 128
          %s3802 = scalar_lea.hbm %s18, %s3801
          %s3803 = sshll.u32 %s3793, 4
          %s3804 = int_to_ptr.vmem [resolvable:$true] %s3803
          %3809 = dma.vmem_to_hbm [thread:$0]  %s3804, 1024, %s3802, %s3790, 128, 128, 8
        $region96: #{first_cell_forward.1} parent=91 // pred_fallthru
          _
      $region92: #{first_cell_forward.1} parent=5 // pred_fallthru
        _
      %p3810 = scmp.le.s32.totalorder 2, %s27
      // Predicated region
      $region97: #{first_cell_forward.1} parent=5 // pred_check
        %p3811 = pneg %p3810
      $region98: #{first_cell_forward.1} parent=5 // pred_check_branch
        %3813 = sbr.rel (%p3811) target = $region100
      $region99: #{first_cell_forward.1} parent=5 // pred_region
        %s3814 = ssub.s32 %s27, 2
        // Predicated region
        $region101: #{first_cell_forward.1} parent=99 // pred_check
          %p3815 = pneg %p444
        $region102: #{first_cell_forward.1} parent=99 // pred_check_branch
          %3817 = sbr.rel (%p3815) target = $region104
        $region103: #{first_cell_forward.1} parent=99 // pred_region
          %s3818 = sand.u32 %s429, 1
          %s3819 = scalar_lea.sflag [#allocation6], %s3818
          %s3820 = sand.u32 %s429, 1
          %s3821 = smul.addr %s3820, 64
          %s3822 = scalar_lea.vmem [#allocation5], %s3821
          %3823 = dma.done %s3819, 1024
        $region104: #{first_cell_forward.1} parent=99 // pred_fallthru
          _
      $region100: #{first_cell_forward.1} parent=5 // pred_fallthru
        _
    $region6: #{first_cell_forward.1} parent=1 // loop_footer
      %s31 = sadd.s32 1, %s27
    $region7: #{first_cell_forward.1} parent=1 // loop_footer_branch
      %26 = sbr.rel target = $region3
    $region8: #{first_cell_forward.1} parent=1 // loop_exit
      _
    %3824 = vsyncpa [#allocation6], 1
    %s3825 = scalar_lea.sflag [#allocation6], 1
    %3826 = vsyncpa %s3825, 1

</llo_original>
